<compile_context>
chip_gen: v7x
topology: tpu7x:2x2x1
jax: 0.10.0
libtpu: 0.0.40
codegen_flags: <defaults>
</compile_context>

<pallas_src>
import functools

import jax
import jax.numpy as jnp
from jax.experimental import pallas as pl
from jax.experimental.pallas import tpu as pltpu


def _upsample2x_kernel(x_ref, o_ref):
    # x_ref: (Pb, tH, W) block; o_ref: (Pb, tH, 4W) block.
    x = x_ref[...]
    pb, th, w = x.shape
    # W-doubled slab: wide[..., 2j + b] = x[..., j]  (b in {0, 1}).
    wide = jnp.broadcast_to(x[:, :, :, None], (pb, th, w, 2)).reshape(pb, th, 2 * w)
    # Row duplication is contiguous in the (P, H, 4W) output view: each output
    # super-row is [wide | wide]; one lane-aligned full-block store.
    o_ref[...] = jnp.concatenate([wide, wide], axis=-1)


def _choose_block(P, H, W, itemsize, target_in_bytes):
    """Pick (planes-per-block, rows-per-block) targeting ~target_in_bytes input."""
    plane_bytes = H * W * itemsize
    if plane_bytes <= target_in_bytes:
        # Small planes: fuse many (N*C) planes per grid step, full H.
        pb = int(min(P, max(1, target_in_bytes // plane_bytes)))
        th = H
    else:
        # Large planes: one plane per step, tile H on a sublane-aligned multiple.
        pb = 1
        sub = max(8, 32 // itemsize)          # 8 for f32, 16 for bf16, 32 for int8
        row_bytes = W * itemsize
        th = int(max(sub, (target_in_bytes // row_bytes) // sub * sub))
        th = min(th, H)
    return pb, th


@functools.partial(jax.jit, static_argnames=("target_in_bytes",))
def upsample_nearest_2x(x, *, target_in_bytes=1 << 20):
    """x: (N, C, H, W) -> (N, C, 2H, 2W), nearest-neighbor 2x upsampling."""
    N, C, H, W = x.shape
    P = N * C
    itemsize = jnp.dtype(x.dtype).itemsize

    pb, th = _choose_block(P, H, W, itemsize, target_in_bytes)
    grid = (pl.cdiv(P, pb), pl.cdiv(H, th))

    in_block = pb * th * W * itemsize
    out_block = 4 * in_block
    # Double-buffered pipeline footprint + slack; stays under v7x's 64 MiB VMEM.
    vmem_limit = int(min(max(2 * (in_block + out_block) + (4 << 20), 32 << 20),
                         56 << 20))

    xr = x.reshape(P, H, W)

    out = pl.pallas_call(
        _upsample2x_kernel,
        out_shape=jax.ShapeDtypeStruct((P, H, 4 * W), x.dtype),
        grid_spec=pltpu.PrefetchScalarGridSpec(
            num_scalar_prefetch=0,
            grid=grid,
            in_specs=[pl.BlockSpec((pb, th, W), lambda p, h: (p, h, 0))],
            out_specs=pl.BlockSpec((pb, th, 4 * W), lambda p, h: (p, h, 0)),
        ),
        compiler_params=pltpu.CompilerParams(
            dimension_semantics=("parallel", "parallel"),
            vmem_limit_bytes=vmem_limit,
        ),
        cost_estimate=pl.CostEstimate(
            flops=0,
            transcendentals=0,
            bytes_accessed=5 * P * H * W * itemsize,  # 1x read + 4x write
        ),
    )(xr)

    # (P, H, 4W) is a contiguous, bit-identical view of (N, C, 2H, 2W).
    return out.reshape(N, C, 2 * H, 2 * W)


if __name__ == "__main__":
    key = jax.random.PRNGKey(0)
    # Small NCHW input consistent with the module's forward.
    x = jax.random.normal(key, (2, 4, 16, 16), dtype=jnp.float32)

    y = upsample_nearest_2x(x)
    y = jax.block_until_ready(y)

    # Reference: nearest-neighbor 2x == repeat each pixel 2x along H and W.
    ref = jnp.repeat(jnp.repeat(x, 2, axis=2), 2, axis=3)
    assert y.shape == (2, 4, 32, 32), y.shape
    assert y.dtype == x.dtype
    assert bool(jnp.array_equal(y, ref))

    print("KERNEL_OK")
</pallas_src>

<mosaic_0001>
module attributes {stable_mosaic.version = 11 : i64} {
  func.func @_upsample2x_kernel(%arg0: i32, %arg1: i32, %arg2: memref<8x16x16xf32, #tpu.memory_space<vmem>>, %arg3: memref<8x16x64xf32, #tpu.memory_space<vmem>>) attributes {dimension_semantics = [#tpu.dimension_semantics<parallel>, #tpu.dimension_semantics<parallel>], iteration_bounds = array<i64: 1, 1>, scalar_prefetch = 0 : i64, scratch_operands = 0 : i64, tpu.core_type = #tpu.core_type<tc>, window_params = [{transform_indices = @transform_0, window_bounds = array<i64: 8, 16, 16>}, {transform_indices = @transform_1, window_bounds = array<i64: 8, 16, 64>}]} {
    %c0 = arith.constant 0 : index
    %c0_0 = arith.constant 0 : index
    %c0_1 = arith.constant 0 : index
    %0 = vector.load %arg2[%c0, %c0_0, %c0_1] : memref<8x16x16xf32, #tpu.memory_space<vmem>>, vector<8x16x16xf32>
    %1 = vector.shape_cast %0 : vector<8x16x16xf32> to vector<8x16x16x1xf32>
    %2 = vector.shape_cast %1 : vector<8x16x16x1xf32> to vector<8x16x16x1xf32>
    %3 = vector.broadcast %2 : vector<8x16x16x1xf32> to vector<8x16x16x2xf32>
    %4 = vector.shape_cast %3 : vector<8x16x16x2xf32> to vector<8x16x32xf32>
    %5 = tpu.concatenate %4, %4 in 2 : vector<8x16x32xf32>, vector<8x16x32xf32> -> vector<8x16x64xf32>
    %c0_2 = arith.constant 0 : index
    %c0_3 = arith.constant 0 : index
    %c0_4 = arith.constant 0 : index
    %6 = vector.load %arg3[%c0_2, %c0_3, %c0_4] : memref<8x16x64xf32, #tpu.memory_space<vmem>>, vector<8x16x64xf32>
    tpu.vector_store %arg3[%c0_2, %c0_3, %c0_4], %5 {strides = array<i32>} : memref<8x16x64xf32, #tpu.memory_space<vmem>>, vector<8x16x64xf32>,
    return
  }
  func.func @transform_0(%arg0: i32, %arg1: i32) -> (i32, i32, i32) {
    %c0_i32 = arith.constant 0 : i32
    %c0_i32_0 = arith.constant 0 : i32
    return %arg0, %arg1, %c0_i32 : i32, i32, i32
  }
  func.func @transform_1(%arg0: i32, %arg1: i32) -> (i32, i32, i32) {
    %c0_i32 = arith.constant 0 : i32
    %c0_i32_0 = arith.constant 0 : i32
    return %arg0, %arg1, %c0_i32 : i32, i32, i32
  }
}

</mosaic_0001>

<llo_original>
// kernel: upsample_nearest_2x.1
$region0: #{upsample_nearest_2x.1}
  #allocation0 [shape = 'u32[]', space=smem, size = 0x4, offset = 0x4, fixed_abs, tag = 'smem constant byte address 0x4 - core index']
  #allocation1 [shape = 'u32[144,128]{1,0:T(1,128)}', space=vmem, size = 0x12000, scoped, tag = 'internal scratch']
  %s0 = inlined_call_operand.hbm [shape: f32[8,16,16], index: 0, kind: input, shape index: {}]
  %s1 = inlined_call_operand.vmem [shape: f32[8,16,64], index: 1, kind: output, shape index: {}]
  %s2 = sld [smem:[#allocation0]]
  $region18: #{upsample_nearest_2x.1} parent=0
    _
  %s4 = ssub.s32 1, %s2
  %s5 = scalar_select 0, %s4, %s2
  $region1: #{upsample_nearest_2x.1} parent=0
    #allocation2 [shape = 'u8[65536]{0}', space=vmem, size = 0x10000, scoped, tag = 'input window, operand 0, single buffered']
    #allocation3 [shape = 's32[1]{0}', space=sflag, size = 0x4, scoped, tag = 'scoped memory for upsample_nearest_2x.1']
    %6 = vsyncpa [#allocation3], 0
    // Predicated region
    $region2: #{upsample_nearest_2x.1} parent=1 // pred_check
      _
    $region3: #{upsample_nearest_2x.1} parent=1 // pred_check_branch
      %8 = sbr.rel (0) target = $region5
    $region4: #{upsample_nearest_2x.1} parent=1 // pred_region
      %s10 = ssub.s32 2048, 2048
      %11 = vsyncadd [#allocation3], %s10
      %s12 = sshll.u32 [#allocation2], 4
      %s13 = int_to_ptr.vmem [resolvable:$true] %s12
      %18 = dma.hbm_to_vmem [thread:$0]  %s0, 2048, %s13, [#allocation3], 128, 128, 8
    $region5: #{upsample_nearest_2x.1} parent=1 // pred_fallthru
      _
    // Predicated region
    $region6: #{upsample_nearest_2x.1} parent=1 // pred_check
      _
    $region7: #{upsample_nearest_2x.1} parent=1 // pred_check_branch
      %20 = sbr.rel (0) target = $region9
    $region8: #{upsample_nearest_2x.1} parent=1 // pred_region
      %21 = dma.done [#allocation3], 2048
    $region9: #{upsample_nearest_2x.1} parent=1 // pred_fallthru
      _
    %v22 = vld [vmem:[#allocation2] sm:$0xff]
    %v23 = vld [vmem:[#allocation2 + $0x8] sm:$0xff]
    %v24 = vld [vmem:[#allocation2 + $0x10] sm:$0xff]
    %v25 = vld [vmem:[#allocation2 + $0x18] sm:$0xff]
    %v26 = vld [vmem:[#allocation2 + $0x20] sm:$0xff]
    %v27 = vld [vmem:[#allocation2 + $0x28] sm:$0xff]
    %v28 = vld [vmem:[#allocation2 + $0x30] sm:$0xff]
    %v29 = vld [vmem:[#allocation2 + $0x38] sm:$0xff]
    %v30 = vld [vmem:[#allocation2 + $0x40] sm:$0xff]
    %v31 = vld [vmem:[#allocation2 + $0x48] sm:$0xff]
    %v32 = vld [vmem:[#allocation2 + $0x50] sm:$0xff]
    %v33 = vld [vmem:[#allocation2 + $0x58] sm:$0xff]
    %v34 = vld [vmem:[#allocation2 + $0x60] sm:$0xff]
    %v35 = vld [vmem:[#allocation2 + $0x68] sm:$0xff]
    %v36 = vld [vmem:[#allocation2 + $0x70] sm:$0xff]
    %v37 = vld [vmem:[#allocation2 + $0x78] sm:$0xff]
    %v38 = vlaneseq
    %v39 = vshrl.u32 %v38, 7
    %v40 = vsub.s32 0, %v39
    %v41 = vrot.slane %v22, %v40
    %43 = vbcast.lane.b32.xlu0 %v41, 256
    %v44 = vpop.permute.xlu0 %43
    %s46 = sor.u32 256, 8
    %47 = vbcast.lane.b32.xlu0 %v41, %s46
    %v48 = vpop.permute.xlu0 %47
    %v49 = vlaneseq
    %v50 = vshrl.u32 %v49, 7
    %v51 = vsub.s32 1, %v50
    %v52 = vrot.slane %v22, %v51
    %54 = vbcast.lane.b32.xlu0 %v52, 256
    %v55 = vpop.permute.xlu0 %54
    %s57 = sor.u32 256, 8
    %58 = vbcast.lane.b32.xlu0 %v52, %s57
    %v59 = vpop.permute.xlu0 %58
    %v60 = vlaneseq
    %v61 = vshrl.u32 %v60, 7
    %v62 = vsub.s32 2, %v61
    %v63 = vrot.slane %v22, %v62
    %65 = vbcast.lane.b32.xlu0 %v63, 256
    %v66 = vpop.permute.xlu0 %65
    %s68 = sor.u32 256, 8
    %69 = vbcast.lane.b32.xlu0 %v63, %s68
    %v70 = vpop.permute.xlu0 %69
    %v71 = vlaneseq
    %v72 = vshrl.u32 %v71, 7
    %v73 = vsub.s32 3, %v72
    %v74 = vrot.slane %v22, %v73
    %76 = vbcast.lane.b32.xlu0 %v74, 256
    %v77 = vpop.permute.xlu0 %76
    %s79 = sor.u32 256, 8
    %80 = vbcast.lane.b32.xlu0 %v74, %s79
    %v81 = vpop.permute.xlu0 %80
    %v82 = vlaneseq
    %v83 = vshrl.u32 %v82, 7
    %v84 = vsub.s32 4, %v83
    %v85 = vrot.slane %v22, %v84
    %87 = vbcast.lane.b32.xlu0 %v85, 256
    %v88 = vpop.permute.xlu0 %87
    %s90 = sor.u32 256, 8
    %91 = vbcast.lane.b32.xlu0 %v85, %s90
    %v92 = vpop.permute.xlu0 %91
    %v93 = vlaneseq
    %v94 = vshrl.u32 %v93, 7
    %v95 = vsub.s32 5, %v94
    %v96 = vrot.slane %v22, %v95
    %98 = vbcast.lane.b32.xlu0 %v96, 256
    %v99 = vpop.permute.xlu0 %98
    %s101 = sor.u32 256, 8
    %102 = vbcast.lane.b32.xlu0 %v96, %s101
    %v103 = vpop.permute.xlu0 %102
    %v104 = vlaneseq
    %v105 = vshrl.u32 %v104, 7
    %v106 = vsub.s32 6, %v105
    %v107 = vrot.slane %v22, %v106
    %109 = vbcast.lane.b32.xlu0 %v107, 256
    %v110 = vpop.permute.xlu0 %109
    %s112 = sor.u32 256, 8
    %113 = vbcast.lane.b32.xlu0 %v107, %s112
    %v114 = vpop.permute.xlu0 %113
    %v115 = vlaneseq
    %v116 = vshrl.u32 %v115, 7
    %v117 = vsub.s32 7, %v116
    %v118 = vrot.slane %v22, %v117
    %120 = vbcast.lane.b32.xlu0 %v118, 256
    %v121 = vpop.permute.xlu0 %120
    %s123 = sor.u32 256, 8
    %124 = vbcast.lane.b32.xlu0 %v118, %s123
    %v125 = vpop.permute.xlu0 %124
    %v126 = vlaneseq
    %v127 = vshrl.u32 %v126, 7
    %v128 = vsub.s32 0, %v127
    %v129 = vrot.slane %v23, %v128
    %131 = vbcast.lane.b32.xlu0 %v129, 256
    %v132 = vpop.permute.xlu0 %131
    %s134 = sor.u32 256, 8
    %135 = vbcast.lane.b32.xlu0 %v129, %s134
    %v136 = vpop.permute.xlu0 %135
    %v137 = vlaneseq
    %v138 = vshrl.u32 %v137, 7
    %v139 = vsub.s32 1, %v138
    %v140 = vrot.slane %v23, %v139
    %142 = vbcast.lane.b32.xlu0 %v140, 256
    %v143 = vpop.permute.xlu0 %142
    %s145 = sor.u32 256, 8
    %146 = vbcast.lane.b32.xlu0 %v140, %s145
    %v147 = vpop.permute.xlu0 %146
    %v148 = vlaneseq
    %v149 = vshrl.u32 %v148, 7
    %v150 = vsub.s32 2, %v149
    %v151 = vrot.slane %v23, %v150
    %153 = vbcast.lane.b32.xlu0 %v151, 256
    %v154 = vpop.permute.xlu0 %153
    %s156 = sor.u32 256, 8
    %157 = vbcast.lane.b32.xlu0 %v151, %s156
    %v158 = vpop.permute.xlu0 %157
    %v159 = vlaneseq
    %v160 = vshrl.u32 %v159, 7
    %v161 = vsub.s32 3, %v160
    %v162 = vrot.slane %v23, %v161
    %164 = vbcast.lane.b32.xlu0 %v162, 256
    %v165 = vpop.permute.xlu0 %164
    %s167 = sor.u32 256, 8
    %168 = vbcast.lane.b32.xlu0 %v162, %s167
    %v169 = vpop.permute.xlu0 %168
    %v170 = vlaneseq
    %v171 = vshrl.u32 %v170, 7
    %v172 = vsub.s32 4, %v171
    %v173 = vrot.slane %v23, %v172
    %175 = vbcast.lane.b32.xlu0 %v173, 256
    %v176 = vpop.permute.xlu0 %175
    %s178 = sor.u32 256, 8
    %179 = vbcast.lane.b32.xlu0 %v173, %s178
    %v180 = vpop.permute.xlu0 %179
    %v181 = vlaneseq
    %v182 = vshrl.u32 %v181, 7
    %v183 = vsub.s32 5, %v182
    %v184 = vrot.slane %v23, %v183
    %186 = vbcast.lane.b32.xlu0 %v184, 256
    %v187 = vpop.permute.xlu0 %186
    %s189 = sor.u32 256, 8
    %190 = vbcast.lane.b32.xlu0 %v184, %s189
    %v191 = vpop.permute.xlu0 %190
    %v192 = vlaneseq
    %v193 = vshrl.u32 %v192, 7
    %v194 = vsub.s32 6, %v193
    %v195 = vrot.slane %v23, %v194
    %197 = vbcast.lane.b32.xlu0 %v195, 256
    %v198 = vpop.permute.xlu0 %197
    %s200 = sor.u32 256, 8
    %201 = vbcast.lane.b32.xlu0 %v195, %s200
    %v202 = vpop.permute.xlu0 %201
    %v203 = vlaneseq
    %v204 = vshrl.u32 %v203, 7
    %v205 = vsub.s32 7, %v204
    %v206 = vrot.slane %v23, %v205
    %208 = vbcast.lane.b32.xlu0 %v206, 256
    %v209 = vpop.permute.xlu0 %208
    %s211 = sor.u32 256, 8
    %212 = vbcast.lane.b32.xlu0 %v206, %s211
    %v213 = vpop.permute.xlu0 %212
    %v214 = vlaneseq
    %v215 = vshrl.u32 %v214, 7
    %v216 = vsub.s32 0, %v215
    %v217 = vrot.slane %v24, %v216
    %219 = vbcast.lane.b32.xlu0 %v217, 256
    %v220 = vpop.permute.xlu0 %219
    %s222 = sor.u32 256, 8
    %223 = vbcast.lane.b32.xlu0 %v217, %s222
    %v224 = vpop.permute.xlu0 %223
    %v225 = vlaneseq
    %v226 = vshrl.u32 %v225, 7
    %v227 = vsub.s32 1, %v226
    %v228 = vrot.slane %v24, %v227
    %230 = vbcast.lane.b32.xlu0 %v228, 256
    %v231 = vpop.permute.xlu0 %230
    %s233 = sor.u32 256, 8
    %234 = vbcast.lane.b32.xlu0 %v228, %s233
    %v235 = vpop.permute.xlu0 %234
    %v236 = vlaneseq
    %v237 = vshrl.u32 %v236, 7
    %v238 = vsub.s32 2, %v237
    %v239 = vrot.slane %v24, %v238
    %241 = vbcast.lane.b32.xlu0 %v239, 256
    %v242 = vpop.permute.xlu0 %241
    %s244 = sor.u32 256, 8
    %245 = vbcast.lane.b32.xlu0 %v239, %s244
    %v246 = vpop.permute.xlu0 %245
    %v247 = vlaneseq
    %v248 = vshrl.u32 %v247, 7
    %v249 = vsub.s32 3, %v248
    %v250 = vrot.slane %v24, %v249
    %252 = vbcast.lane.b32.xlu0 %v250, 256
    %v253 = vpop.permute.xlu0 %252
    %s255 = sor.u32 256, 8
    %256 = vbcast.lane.b32.xlu0 %v250, %s255
    %v257 = vpop.permute.xlu0 %256
    %v258 = vlaneseq
    %v259 = vshrl.u32 %v258, 7
    %v260 = vsub.s32 4, %v259
    %v261 = vrot.slane %v24, %v260
    %263 = vbcast.lane.b32.xlu0 %v261, 256
    %v264 = vpop.permute.xlu0 %263
    %s266 = sor.u32 256, 8
    %267 = vbcast.lane.b32.xlu0 %v261, %s266
    %v268 = vpop.permute.xlu0 %267
    %v269 = vlaneseq
    %v270 = vshrl.u32 %v269, 7
    %v271 = vsub.s32 5, %v270
    %v272 = vrot.slane %v24, %v271
    %274 = vbcast.lane.b32.xlu0 %v272, 256
    %v275 = vpop.permute.xlu0 %274
    %s277 = sor.u32 256, 8
    %278 = vbcast.lane.b32.xlu0 %v272, %s277
    %v279 = vpop.permute.xlu0 %278
    %v280 = vlaneseq
    %v281 = vshrl.u32 %v280, 7
    %v282 = vsub.s32 6, %v281
    %v283 = vrot.slane %v24, %v282
    %285 = vbcast.lane.b32.xlu0 %v283, 256
    %v286 = vpop.permute.xlu0 %285
    %s288 = sor.u32 256, 8
    %289 = vbcast.lane.b32.xlu0 %v283, %s288
    %v290 = vpop.permute.xlu0 %289
    %v291 = vlaneseq
    %v292 = vshrl.u32 %v291, 7
    %v293 = vsub.s32 7, %v292
    %v294 = vrot.slane %v24, %v293
    %296 = vbcast.lane.b32.xlu0 %v294, 256
    %v297 = vpop.permute.xlu0 %296
    %s299 = sor.u32 256, 8
    %300 = vbcast.lane.b32.xlu0 %v294, %s299
    %v301 = vpop.permute.xlu0 %300
    %v302 = vlaneseq
    %v303 = vshrl.u32 %v302, 7
    %v304 = vsub.s32 0, %v303
    %v305 = vrot.slane %v25, %v304
    %307 = vbcast.lane.b32.xlu0 %v305, 256
    %v308 = vpop.permute.xlu0 %307
    %s310 = sor.u32 256, 8
    %311 = vbcast.lane.b32.xlu0 %v305, %s310
    %v312 = vpop.permute.xlu0 %311
    %v313 = vlaneseq
    %v314 = vshrl.u32 %v313, 7
    %v315 = vsub.s32 1, %v314
    %v316 = vrot.slane %v25, %v315
    %318 = vbcast.lane.b32.xlu0 %v316, 256
    %v319 = vpop.permute.xlu0 %318
    %s321 = sor.u32 256, 8
    %322 = vbcast.lane.b32.xlu0 %v316, %s321
    %v323 = vpop.permute.xlu0 %322
    %v324 = vlaneseq
    %v325 = vshrl.u32 %v324, 7
    %v326 = vsub.s32 2, %v325
    %v327 = vrot.slane %v25, %v326
    %329 = vbcast.lane.b32.xlu0 %v327, 256
    %v330 = vpop.permute.xlu0 %329
    %s332 = sor.u32 256, 8
    %333 = vbcast.lane.b32.xlu0 %v327, %s332
    %v334 = vpop.permute.xlu0 %333
    %v335 = vlaneseq
    %v336 = vshrl.u32 %v335, 7
    %v337 = vsub.s32 3, %v336
    %v338 = vrot.slane %v25, %v337
    %340 = vbcast.lane.b32.xlu0 %v338, 256
    %v341 = vpop.permute.xlu0 %340
    %s343 = sor.u32 256, 8
    %344 = vbcast.lane.b32.xlu0 %v338, %s343
    %v345 = vpop.permute.xlu0 %344
    %v346 = vlaneseq
    %v347 = vshrl.u32 %v346, 7
    %v348 = vsub.s32 4, %v347
    %v349 = vrot.slane %v25, %v348
    %351 = vbcast.lane.b32.xlu0 %v349, 256
    %v352 = vpop.permute.xlu0 %351
    %s354 = sor.u32 256, 8
    %355 = vbcast.lane.b32.xlu0 %v349, %s354
    %v356 = vpop.permute.xlu0 %355
    %v357 = vlaneseq
    %v358 = vshrl.u32 %v357, 7
    %v359 = vsub.s32 5, %v358
    %v360 = vrot.slane %v25, %v359
    %362 = vbcast.lane.b32.xlu0 %v360, 256
    %v363 = vpop.permute.xlu0 %362
    %s365 = sor.u32 256, 8
    %366 = vbcast.lane.b32.xlu0 %v360, %s365
    %v367 = vpop.permute.xlu0 %366
    %v368 = vlaneseq
    %v369 = vshrl.u32 %v368, 7
    %v370 = vsub.s32 6, %v369
    %v371 = vrot.slane %v25, %v370
    %373 = vbcast.lane.b32.xlu0 %v371, 256
    %v374 = vpop.permute.xlu0 %373
    %s376 = sor.u32 256, 8
    %377 = vbcast.lane.b32.xlu0 %v371, %s376
    %v378 = vpop.permute.xlu0 %377
    %v379 = vlaneseq
    %v380 = vshrl.u32 %v379, 7
    %v381 = vsub.s32 7, %v380
    %v382 = vrot.slane %v25, %v381
    %384 = vbcast.lane.b32.xlu0 %v382, 256
    %v385 = vpop.permute.xlu0 %384
    %s387 = sor.u32 256, 8
    %388 = vbcast.lane.b32.xlu0 %v382, %s387
    %v389 = vpop.permute.xlu0 %388
    %v390 = vlaneseq
    %v391 = vshrl.u32 %v390, 7
    %v392 = vsub.s32 0, %v391
    %v393 = vrot.slane %v26, %v392
    %395 = vbcast.lane.b32.xlu0 %v393, 256
    %v396 = vpop.permute.xlu0 %395
    %s398 = sor.u32 256, 8
    %399 = vbcast.lane.b32.xlu0 %v393, %s398
    %v400 = vpop.permute.xlu0 %399
    %v401 = vlaneseq
    %v402 = vshrl.u32 %v401, 7
    %v403 = vsub.s32 1, %v402
    %v404 = vrot.slane %v26, %v403
    %406 = vbcast.lane.b32.xlu0 %v404, 256
    %v407 = vpop.permute.xlu0 %406
    %s409 = sor.u32 256, 8
    %410 = vbcast.lane.b32.xlu0 %v404, %s409
    %v411 = vpop.permute.xlu0 %410
    %v412 = vlaneseq
    %v413 = vshrl.u32 %v412, 7
    %v414 = vsub.s32 2, %v413
    %v415 = vrot.slane %v26, %v414
    %417 = vbcast.lane.b32.xlu0 %v415, 256
    %v418 = vpop.permute.xlu0 %417
    %s420 = sor.u32 256, 8
    %421 = vbcast.lane.b32.xlu0 %v415, %s420
    %v422 = vpop.permute.xlu0 %421
    %v423 = vlaneseq
    %v424 = vshrl.u32 %v423, 7
    %v425 = vsub.s32 3, %v424
    %v426 = vrot.slane %v26, %v425
    %428 = vbcast.lane.b32.xlu0 %v426, 256
    %v429 = vpop.permute.xlu0 %428
    %s431 = sor.u32 256, 8
    %432 = vbcast.lane.b32.xlu0 %v426, %s431
    %v433 = vpop.permute.xlu0 %432
    %v434 = vlaneseq
    %v435 = vshrl.u32 %v434, 7
    %v436 = vsub.s32 4, %v435
    %v437 = vrot.slane %v26, %v436
    %439 = vbcast.lane.b32.xlu0 %v437, 256
    %v440 = vpop.permute.xlu0 %439
    %s442 = sor.u32 256, 8
    %443 = vbcast.lane.b32.xlu0 %v437, %s442
    %v444 = vpop.permute.xlu0 %443
    %v445 = vlaneseq
    %v446 = vshrl.u32 %v445, 7
    %v447 = vsub.s32 5, %v446
    %v448 = vrot.slane %v26, %v447
    %450 = vbcast.lane.b32.xlu0 %v448, 256
    %v451 = vpop.permute.xlu0 %450
    %s453 = sor.u32 256, 8
    %454 = vbcast.lane.b32.xlu0 %v448, %s453
    %v455 = vpop.permute.xlu0 %454
    %v456 = vlaneseq
    %v457 = vshrl.u32 %v456, 7
    %v458 = vsub.s32 6, %v457
    %v459 = vrot.slane %v26, %v458
    %461 = vbcast.lane.b32.xlu0 %v459, 256
    %v462 = vpop.permute.xlu0 %461
    %s464 = sor.u32 256, 8
    %465 = vbcast.lane.b32.xlu0 %v459, %s464
    %v466 = vpop.permute.xlu0 %465
    %v467 = vlaneseq
    %v468 = vshrl.u32 %v467, 7
    %v469 = vsub.s32 7, %v468
    %v470 = vrot.slane %v26, %v469
    %472 = vbcast.lane.b32.xlu0 %v470, 256
    %v473 = vpop.permute.xlu0 %472
    %s475 = sor.u32 256, 8
    %476 = vbcast.lane.b32.xlu0 %v470, %s475
    %v477 = vpop.permute.xlu0 %476
    %v478 = vlaneseq
    %v479 = vshrl.u32 %v478, 7
    %v480 = vsub.s32 0, %v479
    %v481 = vrot.slane %v27, %v480
    %483 = vbcast.lane.b32.xlu0 %v481, 256
    %v484 = vpop.permute.xlu0 %483
    %s486 = sor.u32 256, 8
    %487 = vbcast.lane.b32.xlu0 %v481, %s486
    %v488 = vpop.permute.xlu0 %487
    %v489 = vlaneseq
    %v490 = vshrl.u32 %v489, 7
    %v491 = vsub.s32 1, %v490
    %v492 = vrot.slane %v27, %v491
    %494 = vbcast.lane.b32.xlu0 %v492, 256
    %v495 = vpop.permute.xlu0 %494
    %s497 = sor.u32 256, 8
    %498 = vbcast.lane.b32.xlu0 %v492, %s497
    %v499 = vpop.permute.xlu0 %498
    %v500 = vlaneseq
    %v501 = vshrl.u32 %v500, 7
    %v502 = vsub.s32 2, %v501
    %v503 = vrot.slane %v27, %v502
    %505 = vbcast.lane.b32.xlu0 %v503, 256
    %v506 = vpop.permute.xlu0 %505
    %s508 = sor.u32 256, 8
    %509 = vbcast.lane.b32.xlu0 %v503, %s508
    %v510 = vpop.permute.xlu0 %509
    %v511 = vlaneseq
    %v512 = vshrl.u32 %v511, 7
    %v513 = vsub.s32 3, %v512
    %v514 = vrot.slane %v27, %v513
    %516 = vbcast.lane.b32.xlu0 %v514, 256
    %v517 = vpop.permute.xlu0 %516
    %s519 = sor.u32 256, 8
    %520 = vbcast.lane.b32.xlu0 %v514, %s519
    %v521 = vpop.permute.xlu0 %520
    %v522 = vlaneseq
    %v523 = vshrl.u32 %v522, 7
    %v524 = vsub.s32 4, %v523
    %v525 = vrot.slane %v27, %v524
    %527 = vbcast.lane.b32.xlu0 %v525, 256
    %v528 = vpop.permute.xlu0 %527
    %s530 = sor.u32 256, 8
    %531 = vbcast.lane.b32.xlu0 %v525, %s530
    %v532 = vpop.permute.xlu0 %531
    %v533 = vlaneseq
    %v534 = vshrl.u32 %v533, 7
    %v535 = vsub.s32 5, %v534
    %v536 = vrot.slane %v27, %v535
    %538 = vbcast.lane.b32.xlu0 %v536, 256
    %v539 = vpop.permute.xlu0 %538
    %s541 = sor.u32 256, 8
    %542 = vbcast.lane.b32.xlu0 %v536, %s541
    %v543 = vpop.permute.xlu0 %542
    %v544 = vlaneseq
    %v545 = vshrl.u32 %v544, 7
    %v546 = vsub.s32 6, %v545
    %v547 = vrot.slane %v27, %v546
    %549 = vbcast.lane.b32.xlu0 %v547, 256
    %v550 = vpop.permute.xlu0 %549
    %s552 = sor.u32 256, 8
    %553 = vbcast.lane.b32.xlu0 %v547, %s552
    %v554 = vpop.permute.xlu0 %553
    %v555 = vlaneseq
    %v556 = vshrl.u32 %v555, 7
    %v557 = vsub.s32 7, %v556
    %v558 = vrot.slane %v27, %v557
    %560 = vbcast.lane.b32.xlu0 %v558, 256
    %v561 = vpop.permute.xlu0 %560
    %s563 = sor.u32 256, 8
    %564 = vbcast.lane.b32.xlu0 %v558, %s563
    %v565 = vpop.permute.xlu0 %564
    %v566 = vlaneseq
    %v567 = vshrl.u32 %v566, 7
    %v568 = vsub.s32 0, %v567
    %v569 = vrot.slane %v28, %v568
    %571 = vbcast.lane.b32.xlu0 %v569, 256
    %v572 = vpop.permute.xlu0 %571
    %s574 = sor.u32 256, 8
    %575 = vbcast.lane.b32.xlu0 %v569, %s574
    %v576 = vpop.permute.xlu0 %575
    %v577 = vlaneseq
    %v578 = vshrl.u32 %v577, 7
    %v579 = vsub.s32 1, %v578
    %v580 = vrot.slane %v28, %v579
    %582 = vbcast.lane.b32.xlu0 %v580, 256
    %v583 = vpop.permute.xlu0 %582
    %s585 = sor.u32 256, 8
    %586 = vbcast.lane.b32.xlu0 %v580, %s585
    %v587 = vpop.permute.xlu0 %586
    %v588 = vlaneseq
    %v589 = vshrl.u32 %v588, 7
    %v590 = vsub.s32 2, %v589
    %v591 = vrot.slane %v28, %v590
    %593 = vbcast.lane.b32.xlu0 %v591, 256
    %v594 = vpop.permute.xlu0 %593
    %s596 = sor.u32 256, 8
    %597 = vbcast.lane.b32.xlu0 %v591, %s596
    %v598 = vpop.permute.xlu0 %597
    %v599 = vlaneseq
    %v600 = vshrl.u32 %v599, 7
    %v601 = vsub.s32 3, %v600
    %v602 = vrot.slane %v28, %v601
    %604 = vbcast.lane.b32.xlu0 %v602, 256
    %v605 = vpop.permute.xlu0 %604
    %s607 = sor.u32 256, 8
    %608 = vbcast.lane.b32.xlu0 %v602, %s607
    %v609 = vpop.permute.xlu0 %608
    %v610 = vlaneseq
    %v611 = vshrl.u32 %v610, 7
    %v612 = vsub.s32 4, %v611
    %v613 = vrot.slane %v28, %v612
    %615 = vbcast.lane.b32.xlu0 %v613, 256
    %v616 = vpop.permute.xlu0 %615
    %s618 = sor.u32 256, 8
    %619 = vbcast.lane.b32.xlu0 %v613, %s618
    %v620 = vpop.permute.xlu0 %619
    %v621 = vlaneseq
    %v622 = vshrl.u32 %v621, 7
    %v623 = vsub.s32 5, %v622
    %v624 = vrot.slane %v28, %v623
    %626 = vbcast.lane.b32.xlu0 %v624, 256
    %v627 = vpop.permute.xlu0 %626
    %s629 = sor.u32 256, 8
    %630 = vbcast.lane.b32.xlu0 %v624, %s629
    %v631 = vpop.permute.xlu0 %630
    %v632 = vlaneseq
    %v633 = vshrl.u32 %v632, 7
    %v634 = vsub.s32 6, %v633
    %v635 = vrot.slane %v28, %v634
    %637 = vbcast.lane.b32.xlu0 %v635, 256
    %v638 = vpop.permute.xlu0 %637
    %s640 = sor.u32 256, 8
    %641 = vbcast.lane.b32.xlu0 %v635, %s640
    %v642 = vpop.permute.xlu0 %641
    %v643 = vlaneseq
    %v644 = vshrl.u32 %v643, 7
    %v645 = vsub.s32 7, %v644
    %v646 = vrot.slane %v28, %v645
    %648 = vbcast.lane.b32.xlu0 %v646, 256
    %v649 = vpop.permute.xlu0 %648
    %s651 = sor.u32 256, 8
    %652 = vbcast.lane.b32.xlu0 %v646, %s651
    %v653 = vpop.permute.xlu0 %652
    %v654 = vlaneseq
    %v655 = vshrl.u32 %v654, 7
    %v656 = vsub.s32 0, %v655
    %v657 = vrot.slane %v29, %v656
    %659 = vbcast.lane.b32.xlu0 %v657, 256
    %v660 = vpop.permute.xlu0 %659
    %s662 = sor.u32 256, 8
    %663 = vbcast.lane.b32.xlu0 %v657, %s662
    %v664 = vpop.permute.xlu0 %663
    %v665 = vlaneseq
    %v666 = vshrl.u32 %v665, 7
    %v667 = vsub.s32 1, %v666
    %v668 = vrot.slane %v29, %v667
    %670 = vbcast.lane.b32.xlu0 %v668, 256
    %v671 = vpop.permute.xlu0 %670
    %s673 = sor.u32 256, 8
    %674 = vbcast.lane.b32.xlu0 %v668, %s673
    %v675 = vpop.permute.xlu0 %674
    %v676 = vlaneseq
    %v677 = vshrl.u32 %v676, 7
    %v678 = vsub.s32 2, %v677
    %v679 = vrot.slane %v29, %v678
    %681 = vbcast.lane.b32.xlu0 %v679, 256
    %v682 = vpop.permute.xlu0 %681
    %s684 = sor.u32 256, 8
    %685 = vbcast.lane.b32.xlu0 %v679, %s684
    %v686 = vpop.permute.xlu0 %685
    %v687 = vlaneseq
    %v688 = vshrl.u32 %v687, 7
    %v689 = vsub.s32 3, %v688
    %v690 = vrot.slane %v29, %v689
    %692 = vbcast.lane.b32.xlu0 %v690, 256
    %v693 = vpop.permute.xlu0 %692
    %s695 = sor.u32 256, 8
    %696 = vbcast.lane.b32.xlu0 %v690, %s695
    %v697 = vpop.permute.xlu0 %696
    %v698 = vlaneseq
    %v699 = vshrl.u32 %v698, 7
    %v700 = vsub.s32 4, %v699
    %v701 = vrot.slane %v29, %v700
    %703 = vbcast.lane.b32.xlu0 %v701, 256
    %v704 = vpop.permute.xlu0 %703
    %s706 = sor.u32 256, 8
    %707 = vbcast.lane.b32.xlu0 %v701, %s706
    %v708 = vpop.permute.xlu0 %707
    %v709 = vlaneseq
    %v710 = vshrl.u32 %v709, 7
    %v711 = vsub.s32 5, %v710
    %v712 = vrot.slane %v29, %v711
    %714 = vbcast.lane.b32.xlu0 %v712, 256
    %v715 = vpop.permute.xlu0 %714
    %s717 = sor.u32 256, 8
    %718 = vbcast.lane.b32.xlu0 %v712, %s717
    %v719 = vpop.permute.xlu0 %718
    %v720 = vlaneseq
    %v721 = vshrl.u32 %v720, 7
    %v722 = vsub.s32 6, %v721
    %v723 = vrot.slane %v29, %v722
    %725 = vbcast.lane.b32.xlu0 %v723, 256
    %v726 = vpop.permute.xlu0 %725
    %s728 = sor.u32 256, 8
    %729 = vbcast.lane.b32.xlu0 %v723, %s728
    %v730 = vpop.permute.xlu0 %729
    %v731 = vlaneseq
    %v732 = vshrl.u32 %v731, 7
    %v733 = vsub.s32 7, %v732
    %v734 = vrot.slane %v29, %v733
    %736 = vbcast.lane.b32.xlu0 %v734, 256
    %v737 = vpop.permute.xlu0 %736
    %s739 = sor.u32 256, 8
    %740 = vbcast.lane.b32.xlu0 %v734, %s739
    %v741 = vpop.permute.xlu0 %740
    %v742 = vlaneseq
    %v743 = vshrl.u32 %v742, 7
    %v744 = vsub.s32 0, %v743
    %v745 = vrot.slane %v30, %v744
    %747 = vbcast.lane.b32.xlu0 %v745, 256
    %v748 = vpop.permute.xlu0 %747
    %s750 = sor.u32 256, 8
    %751 = vbcast.lane.b32.xlu0 %v745, %s750
    %v752 = vpop.permute.xlu0 %751
    %v753 = vlaneseq
    %v754 = vshrl.u32 %v753, 7
    %v755 = vsub.s32 1, %v754
    %v756 = vrot.slane %v30, %v755
    %758 = vbcast.lane.b32.xlu0 %v756, 256
    %v759 = vpop.permute.xlu0 %758
    %s761 = sor.u32 256, 8
    %762 = vbcast.lane.b32.xlu0 %v756, %s761
    %v763 = vpop.permute.xlu0 %762
    %v764 = vlaneseq
    %v765 = vshrl.u32 %v764, 7
    %v766 = vsub.s32 2, %v765
    %v767 = vrot.slane %v30, %v766
    %769 = vbcast.lane.b32.xlu0 %v767, 256
    %v770 = vpop.permute.xlu0 %769
    %s772 = sor.u32 256, 8
    %773 = vbcast.lane.b32.xlu0 %v767, %s772
    %v774 = vpop.permute.xlu0 %773
    %v775 = vlaneseq
    %v776 = vshrl.u32 %v775, 7
    %v777 = vsub.s32 3, %v776
    %v778 = vrot.slane %v30, %v777
    %780 = vbcast.lane.b32.xlu0 %v778, 256
    %v781 = vpop.permute.xlu0 %780
    %s783 = sor.u32 256, 8
    %784 = vbcast.lane.b32.xlu0 %v778, %s783
    %v785 = vpop.permute.xlu0 %784
    %v786 = vlaneseq
    %v787 = vshrl.u32 %v786, 7
    %v788 = vsub.s32 4, %v787
    %v789 = vrot.slane %v30, %v788
    %791 = vbcast.lane.b32.xlu0 %v789, 256
    %v792 = vpop.permute.xlu0 %791
    %s794 = sor.u32 256, 8
    %795 = vbcast.lane.b32.xlu0 %v789, %s794
    %v796 = vpop.permute.xlu0 %795
    %v797 = vlaneseq
    %v798 = vshrl.u32 %v797, 7
    %v799 = vsub.s32 5, %v798
    %v800 = vrot.slane %v30, %v799
    %802 = vbcast.lane.b32.xlu0 %v800, 256
    %v803 = vpop.permute.xlu0 %802
    %s805 = sor.u32 256, 8
    %806 = vbcast.lane.b32.xlu0 %v800, %s805
    %v807 = vpop.permute.xlu0 %806
    %v808 = vlaneseq
    %v809 = vshrl.u32 %v808, 7
    %v810 = vsub.s32 6, %v809
    %v811 = vrot.slane %v30, %v810
    %813 = vbcast.lane.b32.xlu0 %v811, 256
    %v814 = vpop.permute.xlu0 %813
    %s816 = sor.u32 256, 8
    %817 = vbcast.lane.b32.xlu0 %v811, %s816
    %v818 = vpop.permute.xlu0 %817
    %v819 = vlaneseq
    %v820 = vshrl.u32 %v819, 7
    %v821 = vsub.s32 7, %v820
    %v822 = vrot.slane %v30, %v821
    %824 = vbcast.lane.b32.xlu0 %v822, 256
    %v825 = vpop.permute.xlu0 %824
    %s827 = sor.u32 256, 8
    %828 = vbcast.lane.b32.xlu0 %v822, %s827
    %v829 = vpop.permute.xlu0 %828
    %v830 = vlaneseq
    %v831 = vshrl.u32 %v830, 7
    %v832 = vsub.s32 0, %v831
    %v833 = vrot.slane %v31, %v832
    %835 = vbcast.lane.b32.xlu0 %v833, 256
    %v836 = vpop.permute.xlu0 %835
    %s838 = sor.u32 256, 8
    %839 = vbcast.lane.b32.xlu0 %v833, %s838
    %v840 = vpop.permute.xlu0 %839
    %v841 = vlaneseq
    %v842 = vshrl.u32 %v841, 7
    %v843 = vsub.s32 1, %v842
    %v844 = vrot.slane %v31, %v843
    %846 = vbcast.lane.b32.xlu0 %v844, 256
    %v847 = vpop.permute.xlu0 %846
    %s849 = sor.u32 256, 8
    %850 = vbcast.lane.b32.xlu0 %v844, %s849
    %v851 = vpop.permute.xlu0 %850
    %v852 = vlaneseq
    %v853 = vshrl.u32 %v852, 7
    %v854 = vsub.s32 2, %v853
    %v855 = vrot.slane %v31, %v854
    %857 = vbcast.lane.b32.xlu0 %v855, 256
    %v858 = vpop.permute.xlu0 %857
    %s860 = sor.u32 256, 8
    %861 = vbcast.lane.b32.xlu0 %v855, %s860
    %v862 = vpop.permute.xlu0 %861
    %v863 = vlaneseq
    %v864 = vshrl.u32 %v863, 7
    %v865 = vsub.s32 3, %v864
    %v866 = vrot.slane %v31, %v865
    %868 = vbcast.lane.b32.xlu0 %v866, 256
    %v869 = vpop.permute.xlu0 %868
    %s871 = sor.u32 256, 8
    %872 = vbcast.lane.b32.xlu0 %v866, %s871
    %v873 = vpop.permute.xlu0 %872
    %v874 = vlaneseq
    %v875 = vshrl.u32 %v874, 7
    %v876 = vsub.s32 4, %v875
    %v877 = vrot.slane %v31, %v876
    %879 = vbcast.lane.b32.xlu0 %v877, 256
    %v880 = vpop.permute.xlu0 %879
    %s882 = sor.u32 256, 8
    %883 = vbcast.lane.b32.xlu0 %v877, %s882
    %v884 = vpop.permute.xlu0 %883
    %v885 = vlaneseq
    %v886 = vshrl.u32 %v885, 7
    %v887 = vsub.s32 5, %v886
    %v888 = vrot.slane %v31, %v887
    %890 = vbcast.lane.b32.xlu0 %v888, 256
    %v891 = vpop.permute.xlu0 %890
    %s893 = sor.u32 256, 8
    %894 = vbcast.lane.b32.xlu0 %v888, %s893
    %v895 = vpop.permute.xlu0 %894
    %v896 = vlaneseq
    %v897 = vshrl.u32 %v896, 7
    %v898 = vsub.s32 6, %v897
    %v899 = vrot.slane %v31, %v898
    %901 = vbcast.lane.b32.xlu0 %v899, 256
    %v902 = vpop.permute.xlu0 %901
    %s904 = sor.u32 256, 8
    %905 = vbcast.lane.b32.xlu0 %v899, %s904
    %v906 = vpop.permute.xlu0 %905
    %v907 = vlaneseq
    %v908 = vshrl.u32 %v907, 7
    %v909 = vsub.s32 7, %v908
    %v910 = vrot.slane %v31, %v909
    %912 = vbcast.lane.b32.xlu0 %v910, 256
    %v913 = vpop.permute.xlu0 %912
    %s915 = sor.u32 256, 8
    %916 = vbcast.lane.b32.xlu0 %v910, %s915
    %v917 = vpop.permute.xlu0 %916
    %v918 = vlaneseq
    %v919 = vshrl.u32 %v918, 7
    %v920 = vsub.s32 0, %v919
    %v921 = vrot.slane %v32, %v920
    %923 = vbcast.lane.b32.xlu0 %v921, 256
    %v924 = vpop.permute.xlu0 %923
    %s926 = sor.u32 256, 8
    %927 = vbcast.lane.b32.xlu0 %v921, %s926
    %v928 = vpop.permute.xlu0 %927
    %v929 = vlaneseq
    %v930 = vshrl.u32 %v929, 7
    %v931 = vsub.s32 1, %v930
    %v932 = vrot.slane %v32, %v931
    %934 = vbcast.lane.b32.xlu0 %v932, 256
    %v935 = vpop.permute.xlu0 %934
    %s937 = sor.u32 256, 8
    %938 = vbcast.lane.b32.xlu0 %v932, %s937
    %v939 = vpop.permute.xlu0 %938
    %v940 = vlaneseq
    %v941 = vshrl.u32 %v940, 7
    %v942 = vsub.s32 2, %v941
    %v943 = vrot.slane %v32, %v942
    %945 = vbcast.lane.b32.xlu0 %v943, 256
    %v946 = vpop.permute.xlu0 %945
    %s948 = sor.u32 256, 8
    %949 = vbcast.lane.b32.xlu0 %v943, %s948
    %v950 = vpop.permute.xlu0 %949
    %v951 = vlaneseq
    %v952 = vshrl.u32 %v951, 7
    %v953 = vsub.s32 3, %v952
    %v954 = vrot.slane %v32, %v953
    %956 = vbcast.lane.b32.xlu0 %v954, 256
    %v957 = vpop.permute.xlu0 %956
    %s959 = sor.u32 256, 8
    %960 = vbcast.lane.b32.xlu0 %v954, %s959
    %v961 = vpop.permute.xlu0 %960
    %v962 = vlaneseq
    %v963 = vshrl.u32 %v962, 7
    %v964 = vsub.s32 4, %v963
    %v965 = vrot.slane %v32, %v964
    %967 = vbcast.lane.b32.xlu0 %v965, 256
    %v968 = vpop.permute.xlu0 %967
    %s970 = sor.u32 256, 8
    %971 = vbcast.lane.b32.xlu0 %v965, %s970
    %v972 = vpop.permute.xlu0 %971
    %v973 = vlaneseq
    %v974 = vshrl.u32 %v973, 7
    %v975 = vsub.s32 5, %v974
    %v976 = vrot.slane %v32, %v975
    %978 = vbcast.lane.b32.xlu0 %v976, 256
    %v979 = vpop.permute.xlu0 %978
    %s981 = sor.u32 256, 8
    %982 = vbcast.lane.b32.xlu0 %v976, %s981
    %v983 = vpop.permute.xlu0 %982
    %v984 = vlaneseq
    %v985 = vshrl.u32 %v984, 7
    %v986 = vsub.s32 6, %v985
    %v987 = vrot.slane %v32, %v986
    %989 = vbcast.lane.b32.xlu0 %v987, 256
    %v990 = vpop.permute.xlu0 %989
    %s992 = sor.u32 256, 8
    %993 = vbcast.lane.b32.xlu0 %v987, %s992
    %v994 = vpop.permute.xlu0 %993
    %v995 = vlaneseq
    %v996 = vshrl.u32 %v995, 7
    %v997 = vsub.s32 7, %v996
    %v998 = vrot.slane %v32, %v997
    %1000 = vbcast.lane.b32.xlu0 %v998, 256
    %v1001 = vpop.permute.xlu0 %1000
    %s1003 = sor.u32 256, 8
    %1004 = vbcast.lane.b32.xlu0 %v998, %s1003
    %v1005 = vpop.permute.xlu0 %1004
    %v1006 = vlaneseq
    %v1007 = vshrl.u32 %v1006, 7
    %v1008 = vsub.s32 0, %v1007
    %v1009 = vrot.slane %v33, %v1008
    %1011 = vbcast.lane.b32.xlu0 %v1009, 256
    %v1012 = vpop.permute.xlu0 %1011
    %s1014 = sor.u32 256, 8
    %1015 = vbcast.lane.b32.xlu0 %v1009, %s1014
    %v1016 = vpop.permute.xlu0 %1015
    %v1017 = vlaneseq
    %v1018 = vshrl.u32 %v1017, 7
    %v1019 = vsub.s32 1, %v1018
    %v1020 = vrot.slane %v33, %v1019
    %1022 = vbcast.lane.b32.xlu0 %v1020, 256
    %v1023 = vpop.permute.xlu0 %1022
    %s1025 = sor.u32 256, 8
    %1026 = vbcast.lane.b32.xlu0 %v1020, %s1025
    %v1027 = vpop.permute.xlu0 %1026
    %v1028 = vlaneseq
    %v1029 = vshrl.u32 %v1028, 7
    %v1030 = vsub.s32 2, %v1029
    %v1031 = vrot.slane %v33, %v1030
    %1033 = vbcast.lane.b32.xlu0 %v1031, 256
    %v1034 = vpop.permute.xlu0 %1033
    %s1036 = sor.u32 256, 8
    %1037 = vbcast.lane.b32.xlu0 %v1031, %s1036
    %v1038 = vpop.permute.xlu0 %1037
    %v1039 = vlaneseq
    %v1040 = vshrl.u32 %v1039, 7
    %v1041 = vsub.s32 3, %v1040
    %v1042 = vrot.slane %v33, %v1041
    %1044 = vbcast.lane.b32.xlu0 %v1042, 256
    %v1045 = vpop.permute.xlu0 %1044
    %s1047 = sor.u32 256, 8
    %1048 = vbcast.lane.b32.xlu0 %v1042, %s1047
    %v1049 = vpop.permute.xlu0 %1048
    %v1050 = vlaneseq
    %v1051 = vshrl.u32 %v1050, 7
    %v1052 = vsub.s32 4, %v1051
    %v1053 = vrot.slane %v33, %v1052
    %1055 = vbcast.lane.b32.xlu0 %v1053, 256
    %v1056 = vpop.permute.xlu0 %1055
    %s1058 = sor.u32 256, 8
    %1059 = vbcast.lane.b32.xlu0 %v1053, %s1058
    %v1060 = vpop.permute.xlu0 %1059
    %v1061 = vlaneseq
    %v1062 = vshrl.u32 %v1061, 7
    %v1063 = vsub.s32 5, %v1062
    %v1064 = vrot.slane %v33, %v1063
    %1066 = vbcast.lane.b32.xlu0 %v1064, 256
    %v1067 = vpop.permute.xlu0 %1066
    %s1069 = sor.u32 256, 8
    %1070 = vbcast.lane.b32.xlu0 %v1064, %s1069
    %v1071 = vpop.permute.xlu0 %1070
    %v1072 = vlaneseq
    %v1073 = vshrl.u32 %v1072, 7
    %v1074 = vsub.s32 6, %v1073
    %v1075 = vrot.slane %v33, %v1074
    %1077 = vbcast.lane.b32.xlu0 %v1075, 256
    %v1078 = vpop.permute.xlu0 %1077
    %s1080 = sor.u32 256, 8
    %1081 = vbcast.lane.b32.xlu0 %v1075, %s1080
    %v1082 = vpop.permute.xlu0 %1081
    %v1083 = vlaneseq
    %v1084 = vshrl.u32 %v1083, 7
    %v1085 = vsub.s32 7, %v1084
    %v1086 = vrot.slane %v33, %v1085
    %1088 = vbcast.lane.b32.xlu0 %v1086, 256
    %v1089 = vpop.permute.xlu0 %1088
    %s1091 = sor.u32 256, 8
    %1092 = vbcast.lane.b32.xlu0 %v1086, %s1091
    %v1093 = vpop.permute.xlu0 %1092
    %v1094 = vlaneseq
    %v1095 = vshrl.u32 %v1094, 7
    %v1096 = vsub.s32 0, %v1095
    %v1097 = vrot.slane %v34, %v1096
    %1099 = vbcast.lane.b32.xlu0 %v1097, 256
    %v1100 = vpop.permute.xlu0 %1099
    %s1102 = sor.u32 256, 8
    %1103 = vbcast.lane.b32.xlu0 %v1097, %s1102
    %v1104 = vpop.permute.xlu0 %1103
    %v1105 = vlaneseq
    %v1106 = vshrl.u32 %v1105, 7
    %v1107 = vsub.s32 1, %v1106
    %v1108 = vrot.slane %v34, %v1107
    %1110 = vbcast.lane.b32.xlu0 %v1108, 256
    %v1111 = vpop.permute.xlu0 %1110
    %s1113 = sor.u32 256, 8
    %1114 = vbcast.lane.b32.xlu0 %v1108, %s1113
    %v1115 = vpop.permute.xlu0 %1114
    %v1116 = vlaneseq
    %v1117 = vshrl.u32 %v1116, 7
    %v1118 = vsub.s32 2, %v1117
    %v1119 = vrot.slane %v34, %v1118
    %1121 = vbcast.lane.b32.xlu0 %v1119, 256
    %v1122 = vpop.permute.xlu0 %1121
    %s1124 = sor.u32 256, 8
    %1125 = vbcast.lane.b32.xlu0 %v1119, %s1124
    %v1126 = vpop.permute.xlu0 %1125
    %v1127 = vlaneseq
    %v1128 = vshrl.u32 %v1127, 7
    %v1129 = vsub.s32 3, %v1128
    %v1130 = vrot.slane %v34, %v1129
    %1132 = vbcast.lane.b32.xlu0 %v1130, 256
    %v1133 = vpop.permute.xlu0 %1132
    %s1135 = sor.u32 256, 8
    %1136 = vbcast.lane.b32.xlu0 %v1130, %s1135
    %v1137 = vpop.permute.xlu0 %1136
    %v1138 = vlaneseq
    %v1139 = vshrl.u32 %v1138, 7
    %v1140 = vsub.s32 4, %v1139
    %v1141 = vrot.slane %v34, %v1140
    %1143 = vbcast.lane.b32.xlu0 %v1141, 256
    %v1144 = vpop.permute.xlu0 %1143
    %s1146 = sor.u32 256, 8
    %1147 = vbcast.lane.b32.xlu0 %v1141, %s1146
    %v1148 = vpop.permute.xlu0 %1147
    %v1149 = vlaneseq
    %v1150 = vshrl.u32 %v1149, 7
    %v1151 = vsub.s32 5, %v1150
    %v1152 = vrot.slane %v34, %v1151
    %1154 = vbcast.lane.b32.xlu0 %v1152, 256
    %v1155 = vpop.permute.xlu0 %1154
    %s1157 = sor.u32 256, 8
    %1158 = vbcast.lane.b32.xlu0 %v1152, %s1157
    %v1159 = vpop.permute.xlu0 %1158
    %v1160 = vlaneseq
    %v1161 = vshrl.u32 %v1160, 7
    %v1162 = vsub.s32 6, %v1161
    %v1163 = vrot.slane %v34, %v1162
    %1165 = vbcast.lane.b32.xlu0 %v1163, 256
    %v1166 = vpop.permute.xlu0 %1165
    %s1168 = sor.u32 256, 8
    %1169 = vbcast.lane.b32.xlu0 %v1163, %s1168
    %v1170 = vpop.permute.xlu0 %1169
    %v1171 = vlaneseq
    %v1172 = vshrl.u32 %v1171, 7
    %v1173 = vsub.s32 7, %v1172
    %v1174 = vrot.slane %v34, %v1173
    %1176 = vbcast.lane.b32.xlu0 %v1174, 256
    %v1177 = vpop.permute.xlu0 %1176
    %s1179 = sor.u32 256, 8
    %1180 = vbcast.lane.b32.xlu0 %v1174, %s1179
    %v1181 = vpop.permute.xlu0 %1180
    %v1182 = vlaneseq
    %v1183 = vshrl.u32 %v1182, 7
    %v1184 = vsub.s32 0, %v1183
    %v1185 = vrot.slane %v35, %v1184
    %1187 = vbcast.lane.b32.xlu0 %v1185, 256
    %v1188 = vpop.permute.xlu0 %1187
    %s1190 = sor.u32 256, 8
    %1191 = vbcast.lane.b32.xlu0 %v1185, %s1190
    %v1192 = vpop.permute.xlu0 %1191
    %v1193 = vlaneseq
    %v1194 = vshrl.u32 %v1193, 7
    %v1195 = vsub.s32 1, %v1194
    %v1196 = vrot.slane %v35, %v1195
    %1198 = vbcast.lane.b32.xlu0 %v1196, 256
    %v1199 = vpop.permute.xlu0 %1198
    %s1201 = sor.u32 256, 8
    %1202 = vbcast.lane.b32.xlu0 %v1196, %s1201
    %v1203 = vpop.permute.xlu0 %1202
    %v1204 = vlaneseq
    %v1205 = vshrl.u32 %v1204, 7
    %v1206 = vsub.s32 2, %v1205
    %v1207 = vrot.slane %v35, %v1206
    %1209 = vbcast.lane.b32.xlu0 %v1207, 256
    %v1210 = vpop.permute.xlu0 %1209
    %s1212 = sor.u32 256, 8
    %1213 = vbcast.lane.b32.xlu0 %v1207, %s1212
    %v1214 = vpop.permute.xlu0 %1213
    %v1215 = vlaneseq
    %v1216 = vshrl.u32 %v1215, 7
    %v1217 = vsub.s32 3, %v1216
    %v1218 = vrot.slane %v35, %v1217
    %1220 = vbcast.lane.b32.xlu0 %v1218, 256
    %v1221 = vpop.permute.xlu0 %1220
    %s1223 = sor.u32 256, 8
    %1224 = vbcast.lane.b32.xlu0 %v1218, %s1223
    %v1225 = vpop.permute.xlu0 %1224
    %v1226 = vlaneseq
    %v1227 = vshrl.u32 %v1226, 7
    %v1228 = vsub.s32 4, %v1227
    %v1229 = vrot.slane %v35, %v1228
    %1231 = vbcast.lane.b32.xlu0 %v1229, 256
    %v1232 = vpop.permute.xlu0 %1231
    %s1234 = sor.u32 256, 8
    %1235 = vbcast.lane.b32.xlu0 %v1229, %s1234
    %v1236 = vpop.permute.xlu0 %1235
    %v1237 = vlaneseq
    %v1238 = vshrl.u32 %v1237, 7
    %v1239 = vsub.s32 5, %v1238
    %v1240 = vrot.slane %v35, %v1239
    %1242 = vbcast.lane.b32.xlu0 %v1240, 256
    %v1243 = vpop.permute.xlu0 %1242
    %s1245 = sor.u32 256, 8
    %1246 = vbcast.lane.b32.xlu0 %v1240, %s1245
    %v1247 = vpop.permute.xlu0 %1246
    %v1248 = vlaneseq
    %v1249 = vshrl.u32 %v1248, 7
    %v1250 = vsub.s32 6, %v1249
    %v1251 = vrot.slane %v35, %v1250
    %1253 = vbcast.lane.b32.xlu0 %v1251, 256
    %v1254 = vpop.permute.xlu0 %1253
    %s1256 = sor.u32 256, 8
    %1257 = vbcast.lane.b32.xlu0 %v1251, %s1256
    %v1258 = vpop.permute.xlu0 %1257
    %v1259 = vlaneseq
    %v1260 = vshrl.u32 %v1259, 7
    %v1261 = vsub.s32 7, %v1260
    %v1262 = vrot.slane %v35, %v1261
    %1264 = vbcast.lane.b32.xlu0 %v1262, 256
    %v1265 = vpop.permute.xlu0 %1264
    %s1267 = sor.u32 256, 8
    %1268 = vbcast.lane.b32.xlu0 %v1262, %s1267
    %v1269 = vpop.permute.xlu0 %1268
    %v1270 = vlaneseq
    %v1271 = vshrl.u32 %v1270, 7
    %v1272 = vsub.s32 0, %v1271
    %v1273 = vrot.slane %v36, %v1272
    %1275 = vbcast.lane.b32.xlu0 %v1273, 256
    %v1276 = vpop.permute.xlu0 %1275
    %s1278 = sor.u32 256, 8
    %1279 = vbcast.lane.b32.xlu0 %v1273, %s1278
    %v1280 = vpop.permute.xlu0 %1279
    %v1281 = vlaneseq
    %v1282 = vshrl.u32 %v1281, 7
    %v1283 = vsub.s32 1, %v1282
    %v1284 = vrot.slane %v36, %v1283
    %1286 = vbcast.lane.b32.xlu0 %v1284, 256
    %v1287 = vpop.permute.xlu0 %1286
    %s1289 = sor.u32 256, 8
    %1290 = vbcast.lane.b32.xlu0 %v1284, %s1289
    %v1291 = vpop.permute.xlu0 %1290
    %v1292 = vlaneseq
    %v1293 = vshrl.u32 %v1292, 7
    %v1294 = vsub.s32 2, %v1293
    %v1295 = vrot.slane %v36, %v1294
    %1297 = vbcast.lane.b32.xlu0 %v1295, 256
    %v1298 = vpop.permute.xlu0 %1297
    %s1300 = sor.u32 256, 8
    %1301 = vbcast.lane.b32.xlu0 %v1295, %s1300
    %v1302 = vpop.permute.xlu0 %1301
    %v1303 = vlaneseq
    %v1304 = vshrl.u32 %v1303, 7
    %v1305 = vsub.s32 3, %v1304
    %v1306 = vrot.slane %v36, %v1305
    %1308 = vbcast.lane.b32.xlu0 %v1306, 256
    %v1309 = vpop.permute.xlu0 %1308
    %s1311 = sor.u32 256, 8
    %1312 = vbcast.lane.b32.xlu0 %v1306, %s1311
    %v1313 = vpop.permute.xlu0 %1312
    %v1314 = vlaneseq
    %v1315 = vshrl.u32 %v1314, 7
    %v1316 = vsub.s32 4, %v1315
    %v1317 = vrot.slane %v36, %v1316
    %1319 = vbcast.lane.b32.xlu0 %v1317, 256
    %v1320 = vpop.permute.xlu0 %1319
    %s1322 = sor.u32 256, 8
    %1323 = vbcast.lane.b32.xlu0 %v1317, %s1322
    %v1324 = vpop.permute.xlu0 %1323
    %v1325 = vlaneseq
    %v1326 = vshrl.u32 %v1325, 7
    %v1327 = vsub.s32 5, %v1326
    %v1328 = vrot.slane %v36, %v1327
    %1330 = vbcast.lane.b32.xlu0 %v1328, 256
    %v1331 = vpop.permute.xlu0 %1330
    %s1333 = sor.u32 256, 8
    %1334 = vbcast.lane.b32.xlu0 %v1328, %s1333
    %v1335 = vpop.permute.xlu0 %1334
    %v1336 = vlaneseq
    %v1337 = vshrl.u32 %v1336, 7
    %v1338 = vsub.s32 6, %v1337
    %v1339 = vrot.slane %v36, %v1338
    %1341 = vbcast.lane.b32.xlu0 %v1339, 256
    %v1342 = vpop.permute.xlu0 %1341
    %s1344 = sor.u32 256, 8
    %1345 = vbcast.lane.b32.xlu0 %v1339, %s1344
    %v1346 = vpop.permute.xlu0 %1345
    %v1347 = vlaneseq
    %v1348 = vshrl.u32 %v1347, 7
    %v1349 = vsub.s32 7, %v1348
    %v1350 = vrot.slane %v36, %v1349
    %1352 = vbcast.lane.b32.xlu0 %v1350, 256
    %v1353 = vpop.permute.xlu0 %1352
    %s1355 = sor.u32 256, 8
    %1356 = vbcast.lane.b32.xlu0 %v1350, %s1355
    %v1357 = vpop.permute.xlu0 %1356
    %v1358 = vlaneseq
    %v1359 = vshrl.u32 %v1358, 7
    %v1360 = vsub.s32 0, %v1359
    %v1361 = vrot.slane %v37, %v1360
    %1363 = vbcast.lane.b32.xlu0 %v1361, 256
    %v1364 = vpop.permute.xlu0 %1363
    %s1366 = sor.u32 256, 8
    %1367 = vbcast.lane.b32.xlu0 %v1361, %s1366
    %v1368 = vpop.permute.xlu0 %1367
    %v1369 = vlaneseq
    %v1370 = vshrl.u32 %v1369, 7
    %v1371 = vsub.s32 1, %v1370
    %v1372 = vrot.slane %v37, %v1371
    %1374 = vbcast.lane.b32.xlu0 %v1372, 256
    %v1375 = vpop.permute.xlu0 %1374
    %s1377 = sor.u32 256, 8
    %1378 = vbcast.lane.b32.xlu0 %v1372, %s1377
    %v1379 = vpop.permute.xlu0 %1378
    %v1380 = vlaneseq
    %v1381 = vshrl.u32 %v1380, 7
    %v1382 = vsub.s32 2, %v1381
    %v1383 = vrot.slane %v37, %v1382
    %1385 = vbcast.lane.b32.xlu0 %v1383, 256
    %v1386 = vpop.permute.xlu0 %1385
    %s1388 = sor.u32 256, 8
    %1389 = vbcast.lane.b32.xlu0 %v1383, %s1388
    %v1390 = vpop.permute.xlu0 %1389
    %v1391 = vlaneseq
    %v1392 = vshrl.u32 %v1391, 7
    %v1393 = vsub.s32 3, %v1392
    %v1394 = vrot.slane %v37, %v1393
    %1396 = vbcast.lane.b32.xlu0 %v1394, 256
    %v1397 = vpop.permute.xlu0 %1396
    %s1399 = sor.u32 256, 8
    %1400 = vbcast.lane.b32.xlu0 %v1394, %s1399
    %v1401 = vpop.permute.xlu0 %1400
    %v1402 = vlaneseq
    %v1403 = vshrl.u32 %v1402, 7
    %v1404 = vsub.s32 4, %v1403
    %v1405 = vrot.slane %v37, %v1404
    %1407 = vbcast.lane.b32.xlu0 %v1405, 256
    %v1408 = vpop.permute.xlu0 %1407
    %s1410 = sor.u32 256, 8
    %1411 = vbcast.lane.b32.xlu0 %v1405, %s1410
    %v1412 = vpop.permute.xlu0 %1411
    %v1413 = vlaneseq
    %v1414 = vshrl.u32 %v1413, 7
    %v1415 = vsub.s32 5, %v1414
    %v1416 = vrot.slane %v37, %v1415
    %1418 = vbcast.lane.b32.xlu0 %v1416, 256
    %v1419 = vpop.permute.xlu0 %1418
    %s1421 = sor.u32 256, 8
    %1422 = vbcast.lane.b32.xlu0 %v1416, %s1421
    %v1423 = vpop.permute.xlu0 %1422
    %v1424 = vlaneseq
    %v1425 = vshrl.u32 %v1424, 7
    %v1426 = vsub.s32 6, %v1425
    %v1427 = vrot.slane %v37, %v1426
    %1429 = vbcast.lane.b32.xlu0 %v1427, 256
    %v1430 = vpop.permute.xlu0 %1429
    %s1432 = sor.u32 256, 8
    %1433 = vbcast.lane.b32.xlu0 %v1427, %s1432
    %v1434 = vpop.permute.xlu0 %1433
    %v1435 = vlaneseq
    %v1436 = vshrl.u32 %v1435, 7
    %v1437 = vsub.s32 7, %v1436
    %v1438 = vrot.slane %v37, %v1437
    %1440 = vbcast.lane.b32.xlu0 %v1438, 256
    %v1441 = vpop.permute.xlu0 %1440
    %s1443 = sor.u32 256, 8
    %1444 = vbcast.lane.b32.xlu0 %v1438, %s1443
    %v1445 = vpop.permute.xlu0 %1444
    %v1446 = vcombine.low %v44, %v66
    %v1447 = vcombine.high %v44, %v66
    %v1449 = vunpack.c.l.s4 1983009808
    %v1450 = vunpack.c.0.s8 %v1449
    %v1451 = vlaneseq
    %v1452 = vshrl.u32 %v1451, 7
    %v1453 = vsub.s32 %v1450, %v1452
    %v1454 = vrot.slane %v1446, %v1453
    %v1456 = vunpack.c.l.s4 1983009808
    %v1457 = vunpack.c.0.s8 %v1456
    %v1458 = vlaneseq
    %v1459 = vshrl.u32 %v1458, 7
    %v1460 = vsub.s32 %v1457, %v1459
    %v1461 = vrot.slane %v1447, %v1460
    %v1462 = vcombine.low %v55, %v77
    %v1463 = vcombine.high %v55, %v77
    %v1465 = vunpack.c.l.s4 1983009808
    %v1466 = vunpack.c.0.s8 %v1465
    %v1467 = vlaneseq
    %v1468 = vshrl.u32 %v1467, 7
    %v1469 = vsub.s32 %v1466, %v1468
    %v1470 = vrot.slane %v1462, %v1469
    %v1472 = vunpack.c.l.s4 1983009808
    %v1473 = vunpack.c.0.s8 %v1472
    %v1474 = vlaneseq
    %v1475 = vshrl.u32 %v1474, 7
    %v1476 = vsub.s32 %v1473, %v1475
    %v1477 = vrot.slane %v1463, %v1476
    %v1478 = vcombine.low %v88, %v110
    %v1479 = vcombine.high %v88, %v110
    %v1481 = vunpack.c.l.s4 1983009808
    %v1482 = vunpack.c.0.s8 %v1481
    %v1483 = vlaneseq
    %v1484 = vshrl.u32 %v1483, 7
    %v1485 = vsub.s32 %v1482, %v1484
    %v1486 = vrot.slane %v1478, %v1485
    %v1488 = vunpack.c.l.s4 1983009808
    %v1489 = vunpack.c.0.s8 %v1488
    %v1490 = vlaneseq
    %v1491 = vshrl.u32 %v1490, 7
    %v1492 = vsub.s32 %v1489, %v1491
    %v1493 = vrot.slane %v1479, %v1492
    %v1494 = vcombine.low %v99, %v121
    %v1495 = vcombine.high %v99, %v121
    %v1497 = vunpack.c.l.s4 1983009808
    %v1498 = vunpack.c.0.s8 %v1497
    %v1499 = vlaneseq
    %v1500 = vshrl.u32 %v1499, 7
    %v1501 = vsub.s32 %v1498, %v1500
    %v1502 = vrot.slane %v1494, %v1501
    %v1504 = vunpack.c.l.s4 1983009808
    %v1505 = vunpack.c.0.s8 %v1504
    %v1506 = vlaneseq
    %v1507 = vshrl.u32 %v1506, 7
    %v1508 = vsub.s32 %v1505, %v1507
    %v1509 = vrot.slane %v1495, %v1508
    %v1510 = vcombine.low %v1454, %v1470
    %v1511 = vcombine.high %v1454, %v1470
    %v1513 = vunpack.c.l.s4 1934713408
    %v1514 = vunpack.c.0.s8 %v1513
    %v1515 = vlaneseq
    %v1516 = vshrl.u32 %v1515, 7
    %v1517 = vsub.s32 %v1514, %v1516
    %v1518 = vrot.slane %v1510, %v1517
    %v1520 = vunpack.c.l.s4 1934713408
    %v1521 = vunpack.c.0.s8 %v1520
    %v1522 = vlaneseq
    %v1523 = vshrl.u32 %v1522, 7
    %v1524 = vsub.s32 %v1521, %v1523
    %v1525 = vrot.slane %v1511, %v1524
    %v1526 = vcombine.low %v1461, %v1477
    %v1527 = vcombine.high %v1461, %v1477
    %v1529 = vunpack.c.l.s4 1934713408
    %v1530 = vunpack.c.0.s8 %v1529
    %v1531 = vlaneseq
    %v1532 = vshrl.u32 %v1531, 7
    %v1533 = vsub.s32 %v1530, %v1532
    %v1534 = vrot.slane %v1526, %v1533
    %v1536 = vunpack.c.l.s4 1934713408
    %v1537 = vunpack.c.0.s8 %v1536
    %v1538 = vlaneseq
    %v1539 = vshrl.u32 %v1538, 7
    %v1540 = vsub.s32 %v1537, %v1539
    %v1541 = vrot.slane %v1527, %v1540
    %v1542 = vcombine.low %v1486, %v1502
    %v1543 = vcombine.high %v1486, %v1502
    %v1545 = vunpack.c.l.s4 1934713408
    %v1546 = vunpack.c.0.s8 %v1545
    %v1547 = vlaneseq
    %v1548 = vshrl.u32 %v1547, 7
    %v1549 = vsub.s32 %v1546, %v1548
    %v1550 = vrot.slane %v1542, %v1549
    %v1552 = vunpack.c.l.s4 1934713408
    %v1553 = vunpack.c.0.s8 %v1552
    %v1554 = vlaneseq
    %v1555 = vshrl.u32 %v1554, 7
    %v1556 = vsub.s32 %v1553, %v1555
    %v1557 = vrot.slane %v1543, %v1556
    %v1558 = vcombine.low %v1493, %v1509
    %v1559 = vcombine.high %v1493, %v1509
    %v1561 = vunpack.c.l.s4 1934713408
    %v1562 = vunpack.c.0.s8 %v1561
    %v1563 = vlaneseq
    %v1564 = vshrl.u32 %v1563, 7
    %v1565 = vsub.s32 %v1562, %v1564
    %v1566 = vrot.slane %v1558, %v1565
    %v1568 = vunpack.c.l.s4 1934713408
    %v1569 = vunpack.c.0.s8 %v1568
    %v1570 = vlaneseq
    %v1571 = vshrl.u32 %v1570, 7
    %v1572 = vsub.s32 %v1569, %v1571
    %v1573 = vrot.slane %v1559, %v1572
    %v1574 = vcombine.low %v1518, %v1550
    %v1575 = vcombine.high %v1518, %v1550
    %v1576 = vcombine.low %v1525, %v1557
    %v1577 = vcombine.high %v1525, %v1557
    %v1578 = vcombine.low %v1534, %v1566
    %v1579 = vcombine.high %v1534, %v1566
    %v1580 = vcombine.low %v1541, %v1573
    %v1581 = vcombine.high %v1541, %v1573
    %v1582 = vcombine.low %v132, %v154
    %v1583 = vcombine.high %v132, %v154
    %v1585 = vunpack.c.l.s4 1983009808
    %v1586 = vunpack.c.0.s8 %v1585
    %v1587 = vlaneseq
    %v1588 = vshrl.u32 %v1587, 7
    %v1589 = vsub.s32 %v1586, %v1588
    %v1590 = vrot.slane %v1582, %v1589
    %v1592 = vunpack.c.l.s4 1983009808
    %v1593 = vunpack.c.0.s8 %v1592
    %v1594 = vlaneseq
    %v1595 = vshrl.u32 %v1594, 7
    %v1596 = vsub.s32 %v1593, %v1595
    %v1597 = vrot.slane %v1583, %v1596
    %v1598 = vcombine.low %v143, %v165
    %v1599 = vcombine.high %v143, %v165
    %v1601 = vunpack.c.l.s4 1983009808
    %v1602 = vunpack.c.0.s8 %v1601
    %v1603 = vlaneseq
    %v1604 = vshrl.u32 %v1603, 7
    %v1605 = vsub.s32 %v1602, %v1604
    %v1606 = vrot.slane %v1598, %v1605
    %v1608 = vunpack.c.l.s4 1983009808
    %v1609 = vunpack.c.0.s8 %v1608
    %v1610 = vlaneseq
    %v1611 = vshrl.u32 %v1610, 7
    %v1612 = vsub.s32 %v1609, %v1611
    %v1613 = vrot.slane %v1599, %v1612
    %v1614 = vcombine.low %v176, %v198
    %v1615 = vcombine.high %v176, %v198
    %v1617 = vunpack.c.l.s4 1983009808
    %v1618 = vunpack.c.0.s8 %v1617
    %v1619 = vlaneseq
    %v1620 = vshrl.u32 %v1619, 7
    %v1621 = vsub.s32 %v1618, %v1620
    %v1622 = vrot.slane %v1614, %v1621
    %v1624 = vunpack.c.l.s4 1983009808
    %v1625 = vunpack.c.0.s8 %v1624
    %v1626 = vlaneseq
    %v1627 = vshrl.u32 %v1626, 7
    %v1628 = vsub.s32 %v1625, %v1627
    %v1629 = vrot.slane %v1615, %v1628
    %v1630 = vcombine.low %v187, %v209
    %v1631 = vcombine.high %v187, %v209
    %v1633 = vunpack.c.l.s4 1983009808
    %v1634 = vunpack.c.0.s8 %v1633
    %v1635 = vlaneseq
    %v1636 = vshrl.u32 %v1635, 7
    %v1637 = vsub.s32 %v1634, %v1636
    %v1638 = vrot.slane %v1630, %v1637
    %v1640 = vunpack.c.l.s4 1983009808
    %v1641 = vunpack.c.0.s8 %v1640
    %v1642 = vlaneseq
    %v1643 = vshrl.u32 %v1642, 7
    %v1644 = vsub.s32 %v1641, %v1643
    %v1645 = vrot.slane %v1631, %v1644
    %v1646 = vcombine.low %v1590, %v1606
    %v1647 = vcombine.high %v1590, %v1606
    %v1649 = vunpack.c.l.s4 1934713408
    %v1650 = vunpack.c.0.s8 %v1649
    %v1651 = vlaneseq
    %v1652 = vshrl.u32 %v1651, 7
    %v1653 = vsub.s32 %v1650, %v1652
    %v1654 = vrot.slane %v1646, %v1653
    %v1656 = vunpack.c.l.s4 1934713408
    %v1657 = vunpack.c.0.s8 %v1656
    %v1658 = vlaneseq
    %v1659 = vshrl.u32 %v1658, 7
    %v1660 = vsub.s32 %v1657, %v1659
    %v1661 = vrot.slane %v1647, %v1660
    %v1662 = vcombine.low %v1597, %v1613
    %v1663 = vcombine.high %v1597, %v1613
    %v1665 = vunpack.c.l.s4 1934713408
    %v1666 = vunpack.c.0.s8 %v1665
    %v1667 = vlaneseq
    %v1668 = vshrl.u32 %v1667, 7
    %v1669 = vsub.s32 %v1666, %v1668
    %v1670 = vrot.slane %v1662, %v1669
    %v1672 = vunpack.c.l.s4 1934713408
    %v1673 = vunpack.c.0.s8 %v1672
    %v1674 = vlaneseq
    %v1675 = vshrl.u32 %v1674, 7
    %v1676 = vsub.s32 %v1673, %v1675
    %v1677 = vrot.slane %v1663, %v1676
    %v1678 = vcombine.low %v1622, %v1638
    %v1679 = vcombine.high %v1622, %v1638
    %v1681 = vunpack.c.l.s4 1934713408
    %v1682 = vunpack.c.0.s8 %v1681
    %v1683 = vlaneseq
    %v1684 = vshrl.u32 %v1683, 7
    %v1685 = vsub.s32 %v1682, %v1684
    %v1686 = vrot.slane %v1678, %v1685
    %v1688 = vunpack.c.l.s4 1934713408
    %v1689 = vunpack.c.0.s8 %v1688
    %v1690 = vlaneseq
    %v1691 = vshrl.u32 %v1690, 7
    %v1692 = vsub.s32 %v1689, %v1691
    %v1693 = vrot.slane %v1679, %v1692
    %v1694 = vcombine.low %v1629, %v1645
    %v1695 = vcombine.high %v1629, %v1645
    %v1697 = vunpack.c.l.s4 1934713408
    %v1698 = vunpack.c.0.s8 %v1697
    %v1699 = vlaneseq
    %v1700 = vshrl.u32 %v1699, 7
    %v1701 = vsub.s32 %v1698, %v1700
    %v1702 = vrot.slane %v1694, %v1701
    %v1704 = vunpack.c.l.s4 1934713408
    %v1705 = vunpack.c.0.s8 %v1704
    %v1706 = vlaneseq
    %v1707 = vshrl.u32 %v1706, 7
    %v1708 = vsub.s32 %v1705, %v1707
    %v1709 = vrot.slane %v1695, %v1708
    %v1710 = vcombine.low %v1654, %v1686
    %v1711 = vcombine.high %v1654, %v1686
    %v1712 = vcombine.low %v1661, %v1693
    %v1713 = vcombine.high %v1661, %v1693
    %v1714 = vcombine.low %v1670, %v1702
    %v1715 = vcombine.high %v1670, %v1702
    %v1716 = vcombine.low %v1677, %v1709
    %v1717 = vcombine.high %v1677, %v1709
    %v1718 = vcombine.low %v48, %v70
    %v1719 = vcombine.high %v48, %v70
    %v1721 = vunpack.c.l.s4 1983009808
    %v1722 = vunpack.c.0.s8 %v1721
    %v1723 = vlaneseq
    %v1724 = vshrl.u32 %v1723, 7
    %v1725 = vsub.s32 %v1722, %v1724
    %v1726 = vrot.slane %v1718, %v1725
    %v1728 = vunpack.c.l.s4 1983009808
    %v1729 = vunpack.c.0.s8 %v1728
    %v1730 = vlaneseq
    %v1731 = vshrl.u32 %v1730, 7
    %v1732 = vsub.s32 %v1729, %v1731
    %v1733 = vrot.slane %v1719, %v1732
    %v1734 = vcombine.low %v59, %v81
    %v1735 = vcombine.high %v59, %v81
    %v1737 = vunpack.c.l.s4 1983009808
    %v1738 = vunpack.c.0.s8 %v1737
    %v1739 = vlaneseq
    %v1740 = vshrl.u32 %v1739, 7
    %v1741 = vsub.s32 %v1738, %v1740
    %v1742 = vrot.slane %v1734, %v1741
    %v1744 = vunpack.c.l.s4 1983009808
    %v1745 = vunpack.c.0.s8 %v1744
    %v1746 = vlaneseq
    %v1747 = vshrl.u32 %v1746, 7
    %v1748 = vsub.s32 %v1745, %v1747
    %v1749 = vrot.slane %v1735, %v1748
    %v1750 = vcombine.low %v92, %v114
    %v1751 = vcombine.high %v92, %v114
    %v1753 = vunpack.c.l.s4 1983009808
    %v1754 = vunpack.c.0.s8 %v1753
    %v1755 = vlaneseq
    %v1756 = vshrl.u32 %v1755, 7
    %v1757 = vsub.s32 %v1754, %v1756
    %v1758 = vrot.slane %v1750, %v1757
    %v1760 = vunpack.c.l.s4 1983009808
    %v1761 = vunpack.c.0.s8 %v1760
    %v1762 = vlaneseq
    %v1763 = vshrl.u32 %v1762, 7
    %v1764 = vsub.s32 %v1761, %v1763
    %v1765 = vrot.slane %v1751, %v1764
    %v1766 = vcombine.low %v103, %v125
    %v1767 = vcombine.high %v103, %v125
    %v1769 = vunpack.c.l.s4 1983009808
    %v1770 = vunpack.c.0.s8 %v1769
    %v1771 = vlaneseq
    %v1772 = vshrl.u32 %v1771, 7
    %v1773 = vsub.s32 %v1770, %v1772
    %v1774 = vrot.slane %v1766, %v1773
    %v1776 = vunpack.c.l.s4 1983009808
    %v1777 = vunpack.c.0.s8 %v1776
    %v1778 = vlaneseq
    %v1779 = vshrl.u32 %v1778, 7
    %v1780 = vsub.s32 %v1777, %v1779
    %v1781 = vrot.slane %v1767, %v1780
    %v1782 = vcombine.low %v1726, %v1742
    %v1783 = vcombine.high %v1726, %v1742
    %v1785 = vunpack.c.l.s4 1934713408
    %v1786 = vunpack.c.0.s8 %v1785
    %v1787 = vlaneseq
    %v1788 = vshrl.u32 %v1787, 7
    %v1789 = vsub.s32 %v1786, %v1788
    %v1790 = vrot.slane %v1782, %v1789
    %v1792 = vunpack.c.l.s4 1934713408
    %v1793 = vunpack.c.0.s8 %v1792
    %v1794 = vlaneseq
    %v1795 = vshrl.u32 %v1794, 7
    %v1796 = vsub.s32 %v1793, %v1795
    %v1797 = vrot.slane %v1783, %v1796
    %v1798 = vcombine.low %v1733, %v1749
    %v1799 = vcombine.high %v1733, %v1749
    %v1801 = vunpack.c.l.s4 1934713408
    %v1802 = vunpack.c.0.s8 %v1801
    %v1803 = vlaneseq
    %v1804 = vshrl.u32 %v1803, 7
    %v1805 = vsub.s32 %v1802, %v1804
    %v1806 = vrot.slane %v1798, %v1805
    %v1808 = vunpack.c.l.s4 1934713408
    %v1809 = vunpack.c.0.s8 %v1808
    %v1810 = vlaneseq
    %v1811 = vshrl.u32 %v1810, 7
    %v1812 = vsub.s32 %v1809, %v1811
    %v1813 = vrot.slane %v1799, %v1812
    %v1814 = vcombine.low %v1758, %v1774
    %v1815 = vcombine.high %v1758, %v1774
    %v1817 = vunpack.c.l.s4 1934713408
    %v1818 = vunpack.c.0.s8 %v1817
    %v1819 = vlaneseq
    %v1820 = vshrl.u32 %v1819, 7
    %v1821 = vsub.s32 %v1818, %v1820
    %v1822 = vrot.slane %v1814, %v1821
    %v1824 = vunpack.c.l.s4 1934713408
    %v1825 = vunpack.c.0.s8 %v1824
    %v1826 = vlaneseq
    %v1827 = vshrl.u32 %v1826, 7
    %v1828 = vsub.s32 %v1825, %v1827
    %v1829 = vrot.slane %v1815, %v1828
    %v1830 = vcombine.low %v1765, %v1781
    %v1831 = vcombine.high %v1765, %v1781
    %v1833 = vunpack.c.l.s4 1934713408
    %v1834 = vunpack.c.0.s8 %v1833
    %v1835 = vlaneseq
    %v1836 = vshrl.u32 %v1835, 7
    %v1837 = vsub.s32 %v1834, %v1836
    %v1838 = vrot.slane %v1830, %v1837
    %v1840 = vunpack.c.l.s4 1934713408
    %v1841 = vunpack.c.0.s8 %v1840
    %v1842 = vlaneseq
    %v1843 = vshrl.u32 %v1842, 7
    %v1844 = vsub.s32 %v1841, %v1843
    %v1845 = vrot.slane %v1831, %v1844
    %v1846 = vcombine.low %v1790, %v1822
    %v1847 = vcombine.high %v1790, %v1822
    %v1848 = vcombine.low %v1797, %v1829
    %v1849 = vcombine.high %v1797, %v1829
    %v1850 = vcombine.low %v1806, %v1838
    %v1851 = vcombine.high %v1806, %v1838
    %v1852 = vcombine.low %v1813, %v1845
    %v1853 = vcombine.high %v1813, %v1845
    %v1854 = vcombine.low %v136, %v158
    %v1855 = vcombine.high %v136, %v158
    %v1857 = vunpack.c.l.s4 1983009808
    %v1858 = vunpack.c.0.s8 %v1857
    %v1859 = vlaneseq
    %v1860 = vshrl.u32 %v1859, 7
    %v1861 = vsub.s32 %v1858, %v1860
    %v1862 = vrot.slane %v1854, %v1861
    %v1864 = vunpack.c.l.s4 1983009808
    %v1865 = vunpack.c.0.s8 %v1864
    %v1866 = vlaneseq
    %v1867 = vshrl.u32 %v1866, 7
    %v1868 = vsub.s32 %v1865, %v1867
    %v1869 = vrot.slane %v1855, %v1868
    %v1870 = vcombine.low %v147, %v169
    %v1871 = vcombine.high %v147, %v169
    %v1873 = vunpack.c.l.s4 1983009808
    %v1874 = vunpack.c.0.s8 %v1873
    %v1875 = vlaneseq
    %v1876 = vshrl.u32 %v1875, 7
    %v1877 = vsub.s32 %v1874, %v1876
    %v1878 = vrot.slane %v1870, %v1877
    %v1880 = vunpack.c.l.s4 1983009808
    %v1881 = vunpack.c.0.s8 %v1880
    %v1882 = vlaneseq
    %v1883 = vshrl.u32 %v1882, 7
    %v1884 = vsub.s32 %v1881, %v1883
    %v1885 = vrot.slane %v1871, %v1884
    %v1886 = vcombine.low %v180, %v202
    %v1887 = vcombine.high %v180, %v202
    %v1889 = vunpack.c.l.s4 1983009808
    %v1890 = vunpack.c.0.s8 %v1889
    %v1891 = vlaneseq
    %v1892 = vshrl.u32 %v1891, 7
    %v1893 = vsub.s32 %v1890, %v1892
    %v1894 = vrot.slane %v1886, %v1893
    %v1896 = vunpack.c.l.s4 1983009808
    %v1897 = vunpack.c.0.s8 %v1896
    %v1898 = vlaneseq
    %v1899 = vshrl.u32 %v1898, 7
    %v1900 = vsub.s32 %v1897, %v1899
    %v1901 = vrot.slane %v1887, %v1900
    %v1902 = vcombine.low %v191, %v213
    %v1903 = vcombine.high %v191, %v213
    %v1905 = vunpack.c.l.s4 1983009808
    %v1906 = vunpack.c.0.s8 %v1905
    %v1907 = vlaneseq
    %v1908 = vshrl.u32 %v1907, 7
    %v1909 = vsub.s32 %v1906, %v1908
    %v1910 = vrot.slane %v1902, %v1909
    %v1912 = vunpack.c.l.s4 1983009808
    %v1913 = vunpack.c.0.s8 %v1912
    %v1914 = vlaneseq
    %v1915 = vshrl.u32 %v1914, 7
    %v1916 = vsub.s32 %v1913, %v1915
    %v1917 = vrot.slane %v1903, %v1916
    %v1918 = vcombine.low %v1862, %v1878
    %v1919 = vcombine.high %v1862, %v1878
    %v1921 = vunpack.c.l.s4 1934713408
    %v1922 = vunpack.c.0.s8 %v1921
    %v1923 = vlaneseq
    %v1924 = vshrl.u32 %v1923, 7
    %v1925 = vsub.s32 %v1922, %v1924
    %v1926 = vrot.slane %v1918, %v1925
    %v1928 = vunpack.c.l.s4 1934713408
    %v1929 = vunpack.c.0.s8 %v1928
    %v1930 = vlaneseq
    %v1931 = vshrl.u32 %v1930, 7
    %v1932 = vsub.s32 %v1929, %v1931
    %v1933 = vrot.slane %v1919, %v1932
    %v1934 = vcombine.low %v1869, %v1885
    %v1935 = vcombine.high %v1869, %v1885
    %v1937 = vunpack.c.l.s4 1934713408
    %v1938 = vunpack.c.0.s8 %v1937
    %v1939 = vlaneseq
    %v1940 = vshrl.u32 %v1939, 7
    %v1941 = vsub.s32 %v1938, %v1940
    %v1942 = vrot.slane %v1934, %v1941
    %v1944 = vunpack.c.l.s4 1934713408
    %v1945 = vunpack.c.0.s8 %v1944
    %v1946 = vlaneseq
    %v1947 = vshrl.u32 %v1946, 7
    %v1948 = vsub.s32 %v1945, %v1947
    %v1949 = vrot.slane %v1935, %v1948
    %v1950 = vcombine.low %v1894, %v1910
    %v1951 = vcombine.high %v1894, %v1910
    %v1953 = vunpack.c.l.s4 1934713408
    %v1954 = vunpack.c.0.s8 %v1953
    %v1955 = vlaneseq
    %v1956 = vshrl.u32 %v1955, 7
    %v1957 = vsub.s32 %v1954, %v1956
    %v1958 = vrot.slane %v1950, %v1957
    %v1960 = vunpack.c.l.s4 1934713408
    %v1961 = vunpack.c.0.s8 %v1960
    %v1962 = vlaneseq
    %v1963 = vshrl.u32 %v1962, 7
    %v1964 = vsub.s32 %v1961, %v1963
    %v1965 = vrot.slane %v1951, %v1964
    %v1966 = vcombine.low %v1901, %v1917
    %v1967 = vcombine.high %v1901, %v1917
    %v1969 = vunpack.c.l.s4 1934713408
    %v1970 = vunpack.c.0.s8 %v1969
    %v1971 = vlaneseq
    %v1972 = vshrl.u32 %v1971, 7
    %v1973 = vsub.s32 %v1970, %v1972
    %v1974 = vrot.slane %v1966, %v1973
    %v1976 = vunpack.c.l.s4 1934713408
    %v1977 = vunpack.c.0.s8 %v1976
    %v1978 = vlaneseq
    %v1979 = vshrl.u32 %v1978, 7
    %v1980 = vsub.s32 %v1977, %v1979
    %v1981 = vrot.slane %v1967, %v1980
    %v1982 = vcombine.low %v1926, %v1958
    %v1983 = vcombine.high %v1926, %v1958
    %v1984 = vcombine.low %v1933, %v1965
    %v1985 = vcombine.high %v1933, %v1965
    %v1986 = vcombine.low %v1942, %v1974
    %v1987 = vcombine.high %v1942, %v1974
    %v1988 = vcombine.low %v1949, %v1981
    %v1989 = vcombine.high %v1949, %v1981
    %v1990 = vcombine.low %v220, %v242
    %v1991 = vcombine.high %v220, %v242
    %v1993 = vunpack.c.l.s4 1983009808
    %v1994 = vunpack.c.0.s8 %v1993
    %v1995 = vlaneseq
    %v1996 = vshrl.u32 %v1995, 7
    %v1997 = vsub.s32 %v1994, %v1996
    %v1998 = vrot.slane %v1990, %v1997
    %v2000 = vunpack.c.l.s4 1983009808
    %v2001 = vunpack.c.0.s8 %v2000
    %v2002 = vlaneseq
    %v2003 = vshrl.u32 %v2002, 7
    %v2004 = vsub.s32 %v2001, %v2003
    %v2005 = vrot.slane %v1991, %v2004
    %v2006 = vcombine.low %v231, %v253
    %v2007 = vcombine.high %v231, %v253
    %v2009 = vunpack.c.l.s4 1983009808
    %v2010 = vunpack.c.0.s8 %v2009
    %v2011 = vlaneseq
    %v2012 = vshrl.u32 %v2011, 7
    %v2013 = vsub.s32 %v2010, %v2012
    %v2014 = vrot.slane %v2006, %v2013
    %v2016 = vunpack.c.l.s4 1983009808
    %v2017 = vunpack.c.0.s8 %v2016
    %v2018 = vlaneseq
    %v2019 = vshrl.u32 %v2018, 7
    %v2020 = vsub.s32 %v2017, %v2019
    %v2021 = vrot.slane %v2007, %v2020
    %v2022 = vcombine.low %v264, %v286
    %v2023 = vcombine.high %v264, %v286
    %v2025 = vunpack.c.l.s4 1983009808
    %v2026 = vunpack.c.0.s8 %v2025
    %v2027 = vlaneseq
    %v2028 = vshrl.u32 %v2027, 7
    %v2029 = vsub.s32 %v2026, %v2028
    %v2030 = vrot.slane %v2022, %v2029
    %v2032 = vunpack.c.l.s4 1983009808
    %v2033 = vunpack.c.0.s8 %v2032
    %v2034 = vlaneseq
    %v2035 = vshrl.u32 %v2034, 7
    %v2036 = vsub.s32 %v2033, %v2035
    %v2037 = vrot.slane %v2023, %v2036
    %v2038 = vcombine.low %v275, %v297
    %v2039 = vcombine.high %v275, %v297
    %v2041 = vunpack.c.l.s4 1983009808
    %v2042 = vunpack.c.0.s8 %v2041
    %v2043 = vlaneseq
    %v2044 = vshrl.u32 %v2043, 7
    %v2045 = vsub.s32 %v2042, %v2044
    %v2046 = vrot.slane %v2038, %v2045
    %v2048 = vunpack.c.l.s4 1983009808
    %v2049 = vunpack.c.0.s8 %v2048
    %v2050 = vlaneseq
    %v2051 = vshrl.u32 %v2050, 7
    %v2052 = vsub.s32 %v2049, %v2051
    %v2053 = vrot.slane %v2039, %v2052
    %v2054 = vcombine.low %v1998, %v2014
    %v2055 = vcombine.high %v1998, %v2014
    %v2057 = vunpack.c.l.s4 1934713408
    %v2058 = vunpack.c.0.s8 %v2057
    %v2059 = vlaneseq
    %v2060 = vshrl.u32 %v2059, 7
    %v2061 = vsub.s32 %v2058, %v2060
    %v2062 = vrot.slane %v2054, %v2061
    %v2064 = vunpack.c.l.s4 1934713408
    %v2065 = vunpack.c.0.s8 %v2064
    %v2066 = vlaneseq
    %v2067 = vshrl.u32 %v2066, 7
    %v2068 = vsub.s32 %v2065, %v2067
    %v2069 = vrot.slane %v2055, %v2068
    %v2070 = vcombine.low %v2005, %v2021
    %v2071 = vcombine.high %v2005, %v2021
    %v2073 = vunpack.c.l.s4 1934713408
    %v2074 = vunpack.c.0.s8 %v2073
    %v2075 = vlaneseq
    %v2076 = vshrl.u32 %v2075, 7
    %v2077 = vsub.s32 %v2074, %v2076
    %v2078 = vrot.slane %v2070, %v2077
    %v2080 = vunpack.c.l.s4 1934713408
    %v2081 = vunpack.c.0.s8 %v2080
    %v2082 = vlaneseq
    %v2083 = vshrl.u32 %v2082, 7
    %v2084 = vsub.s32 %v2081, %v2083
    %v2085 = vrot.slane %v2071, %v2084
    %v2086 = vcombine.low %v2030, %v2046
    %v2087 = vcombine.high %v2030, %v2046
    %v2089 = vunpack.c.l.s4 1934713408
    %v2090 = vunpack.c.0.s8 %v2089
    %v2091 = vlaneseq
    %v2092 = vshrl.u32 %v2091, 7
    %v2093 = vsub.s32 %v2090, %v2092
    %v2094 = vrot.slane %v2086, %v2093
    %v2096 = vunpack.c.l.s4 1934713408
    %v2097 = vunpack.c.0.s8 %v2096
    %v2098 = vlaneseq
    %v2099 = vshrl.u32 %v2098, 7
    %v2100 = vsub.s32 %v2097, %v2099
    %v2101 = vrot.slane %v2087, %v2100
    %v2102 = vcombine.low %v2037, %v2053
    %v2103 = vcombine.high %v2037, %v2053
    %v2105 = vunpack.c.l.s4 1934713408
    %v2106 = vunpack.c.0.s8 %v2105
    %v2107 = vlaneseq
    %v2108 = vshrl.u32 %v2107, 7
    %v2109 = vsub.s32 %v2106, %v2108
    %v2110 = vrot.slane %v2102, %v2109
    %v2112 = vunpack.c.l.s4 1934713408
    %v2113 = vunpack.c.0.s8 %v2112
    %v2114 = vlaneseq
    %v2115 = vshrl.u32 %v2114, 7
    %v2116 = vsub.s32 %v2113, %v2115
    %v2117 = vrot.slane %v2103, %v2116
    %v2118 = vcombine.low %v2062, %v2094
    %v2119 = vcombine.high %v2062, %v2094
    %v2120 = vcombine.low %v2069, %v2101
    %v2121 = vcombine.high %v2069, %v2101
    %v2122 = vcombine.low %v2078, %v2110
    %v2123 = vcombine.high %v2078, %v2110
    %v2124 = vcombine.low %v2085, %v2117
    %v2125 = vcombine.high %v2085, %v2117
    %v2126 = vcombine.low %v308, %v330
    %v2127 = vcombine.high %v308, %v330
    %v2129 = vunpack.c.l.s4 1983009808
    %v2130 = vunpack.c.0.s8 %v2129
    %v2131 = vlaneseq
    %v2132 = vshrl.u32 %v2131, 7
    %v2133 = vsub.s32 %v2130, %v2132
    %v2134 = vrot.slane %v2126, %v2133
    %v2136 = vunpack.c.l.s4 1983009808
    %v2137 = vunpack.c.0.s8 %v2136
    %v2138 = vlaneseq
    %v2139 = vshrl.u32 %v2138, 7
    %v2140 = vsub.s32 %v2137, %v2139
    %v2141 = vrot.slane %v2127, %v2140
    %v2142 = vcombine.low %v319, %v341
    %v2143 = vcombine.high %v319, %v341
    %v2145 = vunpack.c.l.s4 1983009808
    %v2146 = vunpack.c.0.s8 %v2145
    %v2147 = vlaneseq
    %v2148 = vshrl.u32 %v2147, 7
    %v2149 = vsub.s32 %v2146, %v2148
    %v2150 = vrot.slane %v2142, %v2149
    %v2152 = vunpack.c.l.s4 1983009808
    %v2153 = vunpack.c.0.s8 %v2152
    %v2154 = vlaneseq
    %v2155 = vshrl.u32 %v2154, 7
    %v2156 = vsub.s32 %v2153, %v2155
    %v2157 = vrot.slane %v2143, %v2156
    %v2158 = vcombine.low %v352, %v374
    %v2159 = vcombine.high %v352, %v374
    %v2161 = vunpack.c.l.s4 1983009808
    %v2162 = vunpack.c.0.s8 %v2161
    %v2163 = vlaneseq
    %v2164 = vshrl.u32 %v2163, 7
    %v2165 = vsub.s32 %v2162, %v2164
    %v2166 = vrot.slane %v2158, %v2165
    %v2168 = vunpack.c.l.s4 1983009808
    %v2169 = vunpack.c.0.s8 %v2168
    %v2170 = vlaneseq
    %v2171 = vshrl.u32 %v2170, 7
    %v2172 = vsub.s32 %v2169, %v2171
    %v2173 = vrot.slane %v2159, %v2172
    %v2174 = vcombine.low %v363, %v385
    %v2175 = vcombine.high %v363, %v385
    %v2177 = vunpack.c.l.s4 1983009808
    %v2178 = vunpack.c.0.s8 %v2177
    %v2179 = vlaneseq
    %v2180 = vshrl.u32 %v2179, 7
    %v2181 = vsub.s32 %v2178, %v2180
    %v2182 = vrot.slane %v2174, %v2181
    %v2184 = vunpack.c.l.s4 1983009808
    %v2185 = vunpack.c.0.s8 %v2184
    %v2186 = vlaneseq
    %v2187 = vshrl.u32 %v2186, 7
    %v2188 = vsub.s32 %v2185, %v2187
    %v2189 = vrot.slane %v2175, %v2188
    %v2190 = vcombine.low %v2134, %v2150
    %v2191 = vcombine.high %v2134, %v2150
    %v2193 = vunpack.c.l.s4 1934713408
    %v2194 = vunpack.c.0.s8 %v2193
    %v2195 = vlaneseq
    %v2196 = vshrl.u32 %v2195, 7
    %v2197 = vsub.s32 %v2194, %v2196
    %v2198 = vrot.slane %v2190, %v2197
    %v2200 = vunpack.c.l.s4 1934713408
    %v2201 = vunpack.c.0.s8 %v2200
    %v2202 = vlaneseq
    %v2203 = vshrl.u32 %v2202, 7
    %v2204 = vsub.s32 %v2201, %v2203
    %v2205 = vrot.slane %v2191, %v2204
    %v2206 = vcombine.low %v2141, %v2157
    %v2207 = vcombine.high %v2141, %v2157
    %v2209 = vunpack.c.l.s4 1934713408
    %v2210 = vunpack.c.0.s8 %v2209
    %v2211 = vlaneseq
    %v2212 = vshrl.u32 %v2211, 7
    %v2213 = vsub.s32 %v2210, %v2212
    %v2214 = vrot.slane %v2206, %v2213
    %v2216 = vunpack.c.l.s4 1934713408
    %v2217 = vunpack.c.0.s8 %v2216
    %v2218 = vlaneseq
    %v2219 = vshrl.u32 %v2218, 7
    %v2220 = vsub.s32 %v2217, %v2219
    %v2221 = vrot.slane %v2207, %v2220
    %v2222 = vcombine.low %v2166, %v2182
    %v2223 = vcombine.high %v2166, %v2182
    %v2225 = vunpack.c.l.s4 1934713408
    %v2226 = vunpack.c.0.s8 %v2225
    %v2227 = vlaneseq
    %v2228 = vshrl.u32 %v2227, 7
    %v2229 = vsub.s32 %v2226, %v2228
    %v2230 = vrot.slane %v2222, %v2229
    %v2232 = vunpack.c.l.s4 1934713408
    %v2233 = vunpack.c.0.s8 %v2232
    %v2234 = vlaneseq
    %v2235 = vshrl.u32 %v2234, 7
    %v2236 = vsub.s32 %v2233, %v2235
    %v2237 = vrot.slane %v2223, %v2236
    %v2238 = vcombine.low %v2173, %v2189
    %v2239 = vcombine.high %v2173, %v2189
    %v2241 = vunpack.c.l.s4 1934713408
    %v2242 = vunpack.c.0.s8 %v2241
    %v2243 = vlaneseq
    %v2244 = vshrl.u32 %v2243, 7
    %v2245 = vsub.s32 %v2242, %v2244
    %v2246 = vrot.slane %v2238, %v2245
    %v2248 = vunpack.c.l.s4 1934713408
    %v2249 = vunpack.c.0.s8 %v2248
    %v2250 = vlaneseq
    %v2251 = vshrl.u32 %v2250, 7
    %v2252 = vsub.s32 %v2249, %v2251
    %v2253 = vrot.slane %v2239, %v2252
    %v2254 = vcombine.low %v2198, %v2230
    %v2255 = vcombine.high %v2198, %v2230
    %v2256 = vcombine.low %v2205, %v2237
    %v2257 = vcombine.high %v2205, %v2237
    %v2258 = vcombine.low %v2214, %v2246
    %v2259 = vcombine.high %v2214, %v2246
    %v2260 = vcombine.low %v2221, %v2253
    %v2261 = vcombine.high %v2221, %v2253
    %v2262 = vcombine.low %v224, %v246
    %v2263 = vcombine.high %v224, %v246
    %v2265 = vunpack.c.l.s4 1983009808
    %v2266 = vunpack.c.0.s8 %v2265
    %v2267 = vlaneseq
    %v2268 = vshrl.u32 %v2267, 7
    %v2269 = vsub.s32 %v2266, %v2268
    %v2270 = vrot.slane %v2262, %v2269
    %v2272 = vunpack.c.l.s4 1983009808
    %v2273 = vunpack.c.0.s8 %v2272
    %v2274 = vlaneseq
    %v2275 = vshrl.u32 %v2274, 7
    %v2276 = vsub.s32 %v2273, %v2275
    %v2277 = vrot.slane %v2263, %v2276
    %v2278 = vcombine.low %v235, %v257
    %v2279 = vcombine.high %v235, %v257
    %v2281 = vunpack.c.l.s4 1983009808
    %v2282 = vunpack.c.0.s8 %v2281
    %v2283 = vlaneseq
    %v2284 = vshrl.u32 %v2283, 7
    %v2285 = vsub.s32 %v2282, %v2284
    %v2286 = vrot.slane %v2278, %v2285
    %v2288 = vunpack.c.l.s4 1983009808
    %v2289 = vunpack.c.0.s8 %v2288
    %v2290 = vlaneseq
    %v2291 = vshrl.u32 %v2290, 7
    %v2292 = vsub.s32 %v2289, %v2291
    %v2293 = vrot.slane %v2279, %v2292
    %v2294 = vcombine.low %v268, %v290
    %v2295 = vcombine.high %v268, %v290
    %v2297 = vunpack.c.l.s4 1983009808
    %v2298 = vunpack.c.0.s8 %v2297
    %v2299 = vlaneseq
    %v2300 = vshrl.u32 %v2299, 7
    %v2301 = vsub.s32 %v2298, %v2300
    %v2302 = vrot.slane %v2294, %v2301
    %v2304 = vunpack.c.l.s4 1983009808
    %v2305 = vunpack.c.0.s8 %v2304
    %v2306 = vlaneseq
    %v2307 = vshrl.u32 %v2306, 7
    %v2308 = vsub.s32 %v2305, %v2307
    %v2309 = vrot.slane %v2295, %v2308
    %v2310 = vcombine.low %v279, %v301
    %v2311 = vcombine.high %v279, %v301
    %v2313 = vunpack.c.l.s4 1983009808
    %v2314 = vunpack.c.0.s8 %v2313
    %v2315 = vlaneseq
    %v2316 = vshrl.u32 %v2315, 7
    %v2317 = vsub.s32 %v2314, %v2316
    %v2318 = vrot.slane %v2310, %v2317
    %v2320 = vunpack.c.l.s4 1983009808
    %v2321 = vunpack.c.0.s8 %v2320
    %v2322 = vlaneseq
    %v2323 = vshrl.u32 %v2322, 7
    %v2324 = vsub.s32 %v2321, %v2323
    %v2325 = vrot.slane %v2311, %v2324
    %v2326 = vcombine.low %v2270, %v2286
    %v2327 = vcombine.high %v2270, %v2286
    %v2329 = vunpack.c.l.s4 1934713408
    %v2330 = vunpack.c.0.s8 %v2329
    %v2331 = vlaneseq
    %v2332 = vshrl.u32 %v2331, 7
    %v2333 = vsub.s32 %v2330, %v2332
    %v2334 = vrot.slane %v2326, %v2333
    %v2336 = vunpack.c.l.s4 1934713408
    %v2337 = vunpack.c.0.s8 %v2336
    %v2338 = vlaneseq
    %v2339 = vshrl.u32 %v2338, 7
    %v2340 = vsub.s32 %v2337, %v2339
    %v2341 = vrot.slane %v2327, %v2340
    %v2342 = vcombine.low %v2277, %v2293
    %v2343 = vcombine.high %v2277, %v2293
    %v2345 = vunpack.c.l.s4 1934713408
    %v2346 = vunpack.c.0.s8 %v2345
    %v2347 = vlaneseq
    %v2348 = vshrl.u32 %v2347, 7
    %v2349 = vsub.s32 %v2346, %v2348
    %v2350 = vrot.slane %v2342, %v2349
    %v2352 = vunpack.c.l.s4 1934713408
    %v2353 = vunpack.c.0.s8 %v2352
    %v2354 = vlaneseq
    %v2355 = vshrl.u32 %v2354, 7
    %v2356 = vsub.s32 %v2353, %v2355
    %v2357 = vrot.slane %v2343, %v2356
    %v2358 = vcombine.low %v2302, %v2318
    %v2359 = vcombine.high %v2302, %v2318
    %v2361 = vunpack.c.l.s4 1934713408
    %v2362 = vunpack.c.0.s8 %v2361
    %v2363 = vlaneseq
    %v2364 = vshrl.u32 %v2363, 7
    %v2365 = vsub.s32 %v2362, %v2364
    %v2366 = vrot.slane %v2358, %v2365
    %v2368 = vunpack.c.l.s4 1934713408
    %v2369 = vunpack.c.0.s8 %v2368
    %v2370 = vlaneseq
    %v2371 = vshrl.u32 %v2370, 7
    %v2372 = vsub.s32 %v2369, %v2371
    %v2373 = vrot.slane %v2359, %v2372
    %v2374 = vcombine.low %v2309, %v2325
    %v2375 = vcombine.high %v2309, %v2325
    %v2377 = vunpack.c.l.s4 1934713408
    %v2378 = vunpack.c.0.s8 %v2377
    %v2379 = vlaneseq
    %v2380 = vshrl.u32 %v2379, 7
    %v2381 = vsub.s32 %v2378, %v2380
    %v2382 = vrot.slane %v2374, %v2381
    %v2384 = vunpack.c.l.s4 1934713408
    %v2385 = vunpack.c.0.s8 %v2384
    %v2386 = vlaneseq
    %v2387 = vshrl.u32 %v2386, 7
    %v2388 = vsub.s32 %v2385, %v2387
    %v2389 = vrot.slane %v2375, %v2388
    %v2390 = vcombine.low %v2334, %v2366
    %v2391 = vcombine.high %v2334, %v2366
    %v2392 = vcombine.low %v2341, %v2373
    %v2393 = vcombine.high %v2341, %v2373
    %v2394 = vcombine.low %v2350, %v2382
    %v2395 = vcombine.high %v2350, %v2382
    %v2396 = vcombine.low %v2357, %v2389
    %v2397 = vcombine.high %v2357, %v2389
    %v2398 = vcombine.low %v312, %v334
    %v2399 = vcombine.high %v312, %v334
    %v2401 = vunpack.c.l.s4 1983009808
    %v2402 = vunpack.c.0.s8 %v2401
    %v2403 = vlaneseq
    %v2404 = vshrl.u32 %v2403, 7
    %v2405 = vsub.s32 %v2402, %v2404
    %v2406 = vrot.slane %v2398, %v2405
    %v2408 = vunpack.c.l.s4 1983009808
    %v2409 = vunpack.c.0.s8 %v2408
    %v2410 = vlaneseq
    %v2411 = vshrl.u32 %v2410, 7
    %v2412 = vsub.s32 %v2409, %v2411
    %v2413 = vrot.slane %v2399, %v2412
    %v2414 = vcombine.low %v323, %v345
    %v2415 = vcombine.high %v323, %v345
    %v2417 = vunpack.c.l.s4 1983009808
    %v2418 = vunpack.c.0.s8 %v2417
    %v2419 = vlaneseq
    %v2420 = vshrl.u32 %v2419, 7
    %v2421 = vsub.s32 %v2418, %v2420
    %v2422 = vrot.slane %v2414, %v2421
    %v2424 = vunpack.c.l.s4 1983009808
    %v2425 = vunpack.c.0.s8 %v2424
    %v2426 = vlaneseq
    %v2427 = vshrl.u32 %v2426, 7
    %v2428 = vsub.s32 %v2425, %v2427
    %v2429 = vrot.slane %v2415, %v2428
    %v2430 = vcombine.low %v356, %v378
    %v2431 = vcombine.high %v356, %v378
    %v2433 = vunpack.c.l.s4 1983009808
    %v2434 = vunpack.c.0.s8 %v2433
    %v2435 = vlaneseq
    %v2436 = vshrl.u32 %v2435, 7
    %v2437 = vsub.s32 %v2434, %v2436
    %v2438 = vrot.slane %v2430, %v2437
    %v2440 = vunpack.c.l.s4 1983009808
    %v2441 = vunpack.c.0.s8 %v2440
    %v2442 = vlaneseq
    %v2443 = vshrl.u32 %v2442, 7
    %v2444 = vsub.s32 %v2441, %v2443
    %v2445 = vrot.slane %v2431, %v2444
    %v2446 = vcombine.low %v367, %v389
    %v2447 = vcombine.high %v367, %v389
    %v2449 = vunpack.c.l.s4 1983009808
    %v2450 = vunpack.c.0.s8 %v2449
    %v2451 = vlaneseq
    %v2452 = vshrl.u32 %v2451, 7
    %v2453 = vsub.s32 %v2450, %v2452
    %v2454 = vrot.slane %v2446, %v2453
    %v2456 = vunpack.c.l.s4 1983009808
    %v2457 = vunpack.c.0.s8 %v2456
    %v2458 = vlaneseq
    %v2459 = vshrl.u32 %v2458, 7
    %v2460 = vsub.s32 %v2457, %v2459
    %v2461 = vrot.slane %v2447, %v2460
    %v2462 = vcombine.low %v2406, %v2422
    %v2463 = vcombine.high %v2406, %v2422
    %v2465 = vunpack.c.l.s4 1934713408
    %v2466 = vunpack.c.0.s8 %v2465
    %v2467 = vlaneseq
    %v2468 = vshrl.u32 %v2467, 7
    %v2469 = vsub.s32 %v2466, %v2468
    %v2470 = vrot.slane %v2462, %v2469
    %v2472 = vunpack.c.l.s4 1934713408
    %v2473 = vunpack.c.0.s8 %v2472
    %v2474 = vlaneseq
    %v2475 = vshrl.u32 %v2474, 7
    %v2476 = vsub.s32 %v2473, %v2475
    %v2477 = vrot.slane %v2463, %v2476
    %v2478 = vcombine.low %v2413, %v2429
    %v2479 = vcombine.high %v2413, %v2429
    %v2481 = vunpack.c.l.s4 1934713408
    %v2482 = vunpack.c.0.s8 %v2481
    %v2483 = vlaneseq
    %v2484 = vshrl.u32 %v2483, 7
    %v2485 = vsub.s32 %v2482, %v2484
    %v2486 = vrot.slane %v2478, %v2485
    %v2488 = vunpack.c.l.s4 1934713408
    %v2489 = vunpack.c.0.s8 %v2488
    %v2490 = vlaneseq
    %v2491 = vshrl.u32 %v2490, 7
    %v2492 = vsub.s32 %v2489, %v2491
    %v2493 = vrot.slane %v2479, %v2492
    %v2494 = vcombine.low %v2438, %v2454
    %v2495 = vcombine.high %v2438, %v2454
    %v2497 = vunpack.c.l.s4 1934713408
    %v2498 = vunpack.c.0.s8 %v2497
    %v2499 = vlaneseq
    %v2500 = vshrl.u32 %v2499, 7
    %v2501 = vsub.s32 %v2498, %v2500
    %v2502 = vrot.slane %v2494, %v2501
    %v2504 = vunpack.c.l.s4 1934713408
    %v2505 = vunpack.c.0.s8 %v2504
    %v2506 = vlaneseq
    %v2507 = vshrl.u32 %v2506, 7
    %v2508 = vsub.s32 %v2505, %v2507
    %v2509 = vrot.slane %v2495, %v2508
    %v2510 = vcombine.low %v2445, %v2461
    %v2511 = vcombine.high %v2445, %v2461
    %v2513 = vunpack.c.l.s4 1934713408
    %v2514 = vunpack.c.0.s8 %v2513
    %v2515 = vlaneseq
    %v2516 = vshrl.u32 %v2515, 7
    %v2517 = vsub.s32 %v2514, %v2516
    %v2518 = vrot.slane %v2510, %v2517
    %v2520 = vunpack.c.l.s4 1934713408
    %v2521 = vunpack.c.0.s8 %v2520
    %v2522 = vlaneseq
    %v2523 = vshrl.u32 %v2522, 7
    %v2524 = vsub.s32 %v2521, %v2523
    %v2525 = vrot.slane %v2511, %v2524
    %v2526 = vcombine.low %v2470, %v2502
    %v2527 = vcombine.high %v2470, %v2502
    %v2528 = vcombine.low %v2477, %v2509
    %v2529 = vcombine.high %v2477, %v2509
    %v2530 = vcombine.low %v2486, %v2518
    %v2531 = vcombine.high %v2486, %v2518
    %v2532 = vcombine.low %v2493, %v2525
    %v2533 = vcombine.high %v2493, %v2525
    %v2534 = vcombine.low %v396, %v418
    %v2535 = vcombine.high %v396, %v418
    %v2537 = vunpack.c.l.s4 1983009808
    %v2538 = vunpack.c.0.s8 %v2537
    %v2539 = vlaneseq
    %v2540 = vshrl.u32 %v2539, 7
    %v2541 = vsub.s32 %v2538, %v2540
    %v2542 = vrot.slane %v2534, %v2541
    %v2544 = vunpack.c.l.s4 1983009808
    %v2545 = vunpack.c.0.s8 %v2544
    %v2546 = vlaneseq
    %v2547 = vshrl.u32 %v2546, 7
    %v2548 = vsub.s32 %v2545, %v2547
    %v2549 = vrot.slane %v2535, %v2548
    %v2550 = vcombine.low %v407, %v429
    %v2551 = vcombine.high %v407, %v429
    %v2553 = vunpack.c.l.s4 1983009808
    %v2554 = vunpack.c.0.s8 %v2553
    %v2555 = vlaneseq
    %v2556 = vshrl.u32 %v2555, 7
    %v2557 = vsub.s32 %v2554, %v2556
    %v2558 = vrot.slane %v2550, %v2557
    %v2560 = vunpack.c.l.s4 1983009808
    %v2561 = vunpack.c.0.s8 %v2560
    %v2562 = vlaneseq
    %v2563 = vshrl.u32 %v2562, 7
    %v2564 = vsub.s32 %v2561, %v2563
    %v2565 = vrot.slane %v2551, %v2564
    %v2566 = vcombine.low %v440, %v462
    %v2567 = vcombine.high %v440, %v462
    %v2569 = vunpack.c.l.s4 1983009808
    %v2570 = vunpack.c.0.s8 %v2569
    %v2571 = vlaneseq
    %v2572 = vshrl.u32 %v2571, 7
    %v2573 = vsub.s32 %v2570, %v2572
    %v2574 = vrot.slane %v2566, %v2573
    %v2576 = vunpack.c.l.s4 1983009808
    %v2577 = vunpack.c.0.s8 %v2576
    %v2578 = vlaneseq
    %v2579 = vshrl.u32 %v2578, 7
    %v2580 = vsub.s32 %v2577, %v2579
    %v2581 = vrot.slane %v2567, %v2580
    %v2582 = vcombine.low %v451, %v473
    %v2583 = vcombine.high %v451, %v473
    %v2585 = vunpack.c.l.s4 1983009808
    %v2586 = vunpack.c.0.s8 %v2585
    %v2587 = vlaneseq
    %v2588 = vshrl.u32 %v2587, 7
    %v2589 = vsub.s32 %v2586, %v2588
    %v2590 = vrot.slane %v2582, %v2589
    %v2592 = vunpack.c.l.s4 1983009808
    %v2593 = vunpack.c.0.s8 %v2592
    %v2594 = vlaneseq
    %v2595 = vshrl.u32 %v2594, 7
    %v2596 = vsub.s32 %v2593, %v2595
    %v2597 = vrot.slane %v2583, %v2596
    %v2598 = vcombine.low %v2542, %v2558
    %v2599 = vcombine.high %v2542, %v2558
    %v2601 = vunpack.c.l.s4 1934713408
    %v2602 = vunpack.c.0.s8 %v2601
    %v2603 = vlaneseq
    %v2604 = vshrl.u32 %v2603, 7
    %v2605 = vsub.s32 %v2602, %v2604
    %v2606 = vrot.slane %v2598, %v2605
    %v2608 = vunpack.c.l.s4 1934713408
    %v2609 = vunpack.c.0.s8 %v2608
    %v2610 = vlaneseq
    %v2611 = vshrl.u32 %v2610, 7
    %v2612 = vsub.s32 %v2609, %v2611
    %v2613 = vrot.slane %v2599, %v2612
    %v2614 = vcombine.low %v2549, %v2565
    %v2615 = vcombine.high %v2549, %v2565
    %v2617 = vunpack.c.l.s4 1934713408
    %v2618 = vunpack.c.0.s8 %v2617
    %v2619 = vlaneseq
    %v2620 = vshrl.u32 %v2619, 7
    %v2621 = vsub.s32 %v2618, %v2620
    %v2622 = vrot.slane %v2614, %v2621
    %v2624 = vunpack.c.l.s4 1934713408
    %v2625 = vunpack.c.0.s8 %v2624
    %v2626 = vlaneseq
    %v2627 = vshrl.u32 %v2626, 7
    %v2628 = vsub.s32 %v2625, %v2627
    %v2629 = vrot.slane %v2615, %v2628
    %v2630 = vcombine.low %v2574, %v2590
    %v2631 = vcombine.high %v2574, %v2590
    %v2633 = vunpack.c.l.s4 1934713408
    %v2634 = vunpack.c.0.s8 %v2633
    %v2635 = vlaneseq
    %v2636 = vshrl.u32 %v2635, 7
    %v2637 = vsub.s32 %v2634, %v2636
    %v2638 = vrot.slane %v2630, %v2637
    %v2640 = vunpack.c.l.s4 1934713408
    %v2641 = vunpack.c.0.s8 %v2640
    %v2642 = vlaneseq
    %v2643 = vshrl.u32 %v2642, 7
    %v2644 = vsub.s32 %v2641, %v2643
    %v2645 = vrot.slane %v2631, %v2644
    %v2646 = vcombine.low %v2581, %v2597
    %v2647 = vcombine.high %v2581, %v2597
    %v2649 = vunpack.c.l.s4 1934713408
    %v2650 = vunpack.c.0.s8 %v2649
    %v2651 = vlaneseq
    %v2652 = vshrl.u32 %v2651, 7
    %v2653 = vsub.s32 %v2650, %v2652
    %v2654 = vrot.slane %v2646, %v2653
    %v2656 = vunpack.c.l.s4 1934713408
    %v2657 = vunpack.c.0.s8 %v2656
    %v2658 = vlaneseq
    %v2659 = vshrl.u32 %v2658, 7
    %v2660 = vsub.s32 %v2657, %v2659
    %v2661 = vrot.slane %v2647, %v2660
    %v2662 = vcombine.low %v2606, %v2638
    %v2663 = vcombine.high %v2606, %v2638
    %v2664 = vcombine.low %v2613, %v2645
    %v2665 = vcombine.high %v2613, %v2645
    %v2666 = vcombine.low %v2622, %v2654
    %v2667 = vcombine.high %v2622, %v2654
    %v2668 = vcombine.low %v2629, %v2661
    %v2669 = vcombine.high %v2629, %v2661
    %v2670 = vcombine.low %v484, %v506
    %v2671 = vcombine.high %v484, %v506
    %v2673 = vunpack.c.l.s4 1983009808
    %v2674 = vunpack.c.0.s8 %v2673
    %v2675 = vlaneseq
    %v2676 = vshrl.u32 %v2675, 7
    %v2677 = vsub.s32 %v2674, %v2676
    %v2678 = vrot.slane %v2670, %v2677
    %v2680 = vunpack.c.l.s4 1983009808
    %v2681 = vunpack.c.0.s8 %v2680
    %v2682 = vlaneseq
    %v2683 = vshrl.u32 %v2682, 7
    %v2684 = vsub.s32 %v2681, %v2683
    %v2685 = vrot.slane %v2671, %v2684
    %v2686 = vcombine.low %v495, %v517
    %v2687 = vcombine.high %v495, %v517
    %v2689 = vunpack.c.l.s4 1983009808
    %v2690 = vunpack.c.0.s8 %v2689
    %v2691 = vlaneseq
    %v2692 = vshrl.u32 %v2691, 7
    %v2693 = vsub.s32 %v2690, %v2692
    %v2694 = vrot.slane %v2686, %v2693
    %v2696 = vunpack.c.l.s4 1983009808
    %v2697 = vunpack.c.0.s8 %v2696
    %v2698 = vlaneseq
    %v2699 = vshrl.u32 %v2698, 7
    %v2700 = vsub.s32 %v2697, %v2699
    %v2701 = vrot.slane %v2687, %v2700
    %v2702 = vcombine.low %v528, %v550
    %v2703 = vcombine.high %v528, %v550
    %v2705 = vunpack.c.l.s4 1983009808
    %v2706 = vunpack.c.0.s8 %v2705
    %v2707 = vlaneseq
    %v2708 = vshrl.u32 %v2707, 7
    %v2709 = vsub.s32 %v2706, %v2708
    %v2710 = vrot.slane %v2702, %v2709
    %v2712 = vunpack.c.l.s4 1983009808
    %v2713 = vunpack.c.0.s8 %v2712
    %v2714 = vlaneseq
    %v2715 = vshrl.u32 %v2714, 7
    %v2716 = vsub.s32 %v2713, %v2715
    %v2717 = vrot.slane %v2703, %v2716
    %v2718 = vcombine.low %v539, %v561
    %v2719 = vcombine.high %v539, %v561
    %v2721 = vunpack.c.l.s4 1983009808
    %v2722 = vunpack.c.0.s8 %v2721
    %v2723 = vlaneseq
    %v2724 = vshrl.u32 %v2723, 7
    %v2725 = vsub.s32 %v2722, %v2724
    %v2726 = vrot.slane %v2718, %v2725
    %v2728 = vunpack.c.l.s4 1983009808
    %v2729 = vunpack.c.0.s8 %v2728
    %v2730 = vlaneseq
    %v2731 = vshrl.u32 %v2730, 7
    %v2732 = vsub.s32 %v2729, %v2731
    %v2733 = vrot.slane %v2719, %v2732
    %v2734 = vcombine.low %v2678, %v2694
    %v2735 = vcombine.high %v2678, %v2694
    %v2737 = vunpack.c.l.s4 1934713408
    %v2738 = vunpack.c.0.s8 %v2737
    %v2739 = vlaneseq
    %v2740 = vshrl.u32 %v2739, 7
    %v2741 = vsub.s32 %v2738, %v2740
    %v2742 = vrot.slane %v2734, %v2741
    %v2744 = vunpack.c.l.s4 1934713408
    %v2745 = vunpack.c.0.s8 %v2744
    %v2746 = vlaneseq
    %v2747 = vshrl.u32 %v2746, 7
    %v2748 = vsub.s32 %v2745, %v2747
    %v2749 = vrot.slane %v2735, %v2748
    %v2750 = vcombine.low %v2685, %v2701
    %v2751 = vcombine.high %v2685, %v2701
    %v2753 = vunpack.c.l.s4 1934713408
    %v2754 = vunpack.c.0.s8 %v2753
    %v2755 = vlaneseq
    %v2756 = vshrl.u32 %v2755, 7
    %v2757 = vsub.s32 %v2754, %v2756
    %v2758 = vrot.slane %v2750, %v2757
    %v2760 = vunpack.c.l.s4 1934713408
    %v2761 = vunpack.c.0.s8 %v2760
    %v2762 = vlaneseq
    %v2763 = vshrl.u32 %v2762, 7
    %v2764 = vsub.s32 %v2761, %v2763
    %v2765 = vrot.slane %v2751, %v2764
    %v2766 = vcombine.low %v2710, %v2726
    %v2767 = vcombine.high %v2710, %v2726
    %v2769 = vunpack.c.l.s4 1934713408
    %v2770 = vunpack.c.0.s8 %v2769
    %v2771 = vlaneseq
    %v2772 = vshrl.u32 %v2771, 7
    %v2773 = vsub.s32 %v2770, %v2772
    %v2774 = vrot.slane %v2766, %v2773
    %v2776 = vunpack.c.l.s4 1934713408
    %v2777 = vunpack.c.0.s8 %v2776
    %v2778 = vlaneseq
    %v2779 = vshrl.u32 %v2778, 7
    %v2780 = vsub.s32 %v2777, %v2779
    %v2781 = vrot.slane %v2767, %v2780
    %v2782 = vcombine.low %v2717, %v2733
    %v2783 = vcombine.high %v2717, %v2733
    %v2785 = vunpack.c.l.s4 1934713408
    %v2786 = vunpack.c.0.s8 %v2785
    %v2787 = vlaneseq
    %v2788 = vshrl.u32 %v2787, 7
    %v2789 = vsub.s32 %v2786, %v2788
    %v2790 = vrot.slane %v2782, %v2789
    %v2792 = vunpack.c.l.s4 1934713408
    %v2793 = vunpack.c.0.s8 %v2792
    %v2794 = vlaneseq
    %v2795 = vshrl.u32 %v2794, 7
    %v2796 = vsub.s32 %v2793, %v2795
    %v2797 = vrot.slane %v2783, %v2796
    %v2798 = vcombine.low %v2742, %v2774
    %v2799 = vcombine.high %v2742, %v2774
    %v2800 = vcombine.low %v2749, %v2781
    %v2801 = vcombine.high %v2749, %v2781
    %v2802 = vcombine.low %v2758, %v2790
    %v2803 = vcombine.high %v2758, %v2790
    %v2804 = vcombine.low %v2765, %v2797
    %v2805 = vcombine.high %v2765, %v2797
    %v2806 = vcombine.low %v400, %v422
    %v2807 = vcombine.high %v400, %v422
    %v2809 = vunpack.c.l.s4 1983009808
    %v2810 = vunpack.c.0.s8 %v2809
    %v2811 = vlaneseq
    %v2812 = vshrl.u32 %v2811, 7
    %v2813 = vsub.s32 %v2810, %v2812
    %v2814 = vrot.slane %v2806, %v2813
    %v2816 = vunpack.c.l.s4 1983009808
    %v2817 = vunpack.c.0.s8 %v2816
    %v2818 = vlaneseq
    %v2819 = vshrl.u32 %v2818, 7
    %v2820 = vsub.s32 %v2817, %v2819
    %v2821 = vrot.slane %v2807, %v2820
    %v2822 = vcombine.low %v411, %v433
    %v2823 = vcombine.high %v411, %v433
    %v2825 = vunpack.c.l.s4 1983009808
    %v2826 = vunpack.c.0.s8 %v2825
    %v2827 = vlaneseq
    %v2828 = vshrl.u32 %v2827, 7
    %v2829 = vsub.s32 %v2826, %v2828
    %v2830 = vrot.slane %v2822, %v2829
    %v2832 = vunpack.c.l.s4 1983009808
    %v2833 = vunpack.c.0.s8 %v2832
    %v2834 = vlaneseq
    %v2835 = vshrl.u32 %v2834, 7
    %v2836 = vsub.s32 %v2833, %v2835
    %v2837 = vrot.slane %v2823, %v2836
    %v2838 = vcombine.low %v444, %v466
    %v2839 = vcombine.high %v444, %v466
    %v2841 = vunpack.c.l.s4 1983009808
    %v2842 = vunpack.c.0.s8 %v2841
    %v2843 = vlaneseq
    %v2844 = vshrl.u32 %v2843, 7
    %v2845 = vsub.s32 %v2842, %v2844
    %v2846 = vrot.slane %v2838, %v2845
    %v2848 = vunpack.c.l.s4 1983009808
    %v2849 = vunpack.c.0.s8 %v2848
    %v2850 = vlaneseq
    %v2851 = vshrl.u32 %v2850, 7
    %v2852 = vsub.s32 %v2849, %v2851
    %v2853 = vrot.slane %v2839, %v2852
    %v2854 = vcombine.low %v455, %v477
    %v2855 = vcombine.high %v455, %v477
    %v2857 = vunpack.c.l.s4 1983009808
    %v2858 = vunpack.c.0.s8 %v2857
    %v2859 = vlaneseq
    %v2860 = vshrl.u32 %v2859, 7
    %v2861 = vsub.s32 %v2858, %v2860
    %v2862 = vrot.slane %v2854, %v2861
    %v2864 = vunpack.c.l.s4 1983009808
    %v2865 = vunpack.c.0.s8 %v2864
    %v2866 = vlaneseq
    %v2867 = vshrl.u32 %v2866, 7
    %v2868 = vsub.s32 %v2865, %v2867
    %v2869 = vrot.slane %v2855, %v2868
    %v2870 = vcombine.low %v2814, %v2830
    %v2871 = vcombine.high %v2814, %v2830
    %v2873 = vunpack.c.l.s4 1934713408
    %v2874 = vunpack.c.0.s8 %v2873
    %v2875 = vlaneseq
    %v2876 = vshrl.u32 %v2875, 7
    %v2877 = vsub.s32 %v2874, %v2876
    %v2878 = vrot.slane %v2870, %v2877
    %v2880 = vunpack.c.l.s4 1934713408
    %v2881 = vunpack.c.0.s8 %v2880
    %v2882 = vlaneseq
    %v2883 = vshrl.u32 %v2882, 7
    %v2884 = vsub.s32 %v2881, %v2883
    %v2885 = vrot.slane %v2871, %v2884
    %v2886 = vcombine.low %v2821, %v2837
    %v2887 = vcombine.high %v2821, %v2837
    %v2889 = vunpack.c.l.s4 1934713408
    %v2890 = vunpack.c.0.s8 %v2889
    %v2891 = vlaneseq
    %v2892 = vshrl.u32 %v2891, 7
    %v2893 = vsub.s32 %v2890, %v2892
    %v2894 = vrot.slane %v2886, %v2893
    %v2896 = vunpack.c.l.s4 1934713408
    %v2897 = vunpack.c.0.s8 %v2896
    %v2898 = vlaneseq
    %v2899 = vshrl.u32 %v2898, 7
    %v2900 = vsub.s32 %v2897, %v2899
    %v2901 = vrot.slane %v2887, %v2900
    %v2902 = vcombine.low %v2846, %v2862
    %v2903 = vcombine.high %v2846, %v2862
    %v2905 = vunpack.c.l.s4 1934713408
    %v2906 = vunpack.c.0.s8 %v2905
    %v2907 = vlaneseq
    %v2908 = vshrl.u32 %v2907, 7
    %v2909 = vsub.s32 %v2906, %v2908
    %v2910 = vrot.slane %v2902, %v2909
    %v2912 = vunpack.c.l.s4 1934713408
    %v2913 = vunpack.c.0.s8 %v2912
    %v2914 = vlaneseq
    %v2915 = vshrl.u32 %v2914, 7
    %v2916 = vsub.s32 %v2913, %v2915
    %v2917 = vrot.slane %v2903, %v2916
    %v2918 = vcombine.low %v2853, %v2869
    %v2919 = vcombine.high %v2853, %v2869
    %v2921 = vunpack.c.l.s4 1934713408
    %v2922 = vunpack.c.0.s8 %v2921
    %v2923 = vlaneseq
    %v2924 = vshrl.u32 %v2923, 7
    %v2925 = vsub.s32 %v2922, %v2924
    %v2926 = vrot.slane %v2918, %v2925
    %v2928 = vunpack.c.l.s4 1934713408
    %v2929 = vunpack.c.0.s8 %v2928
    %v2930 = vlaneseq
    %v2931 = vshrl.u32 %v2930, 7
    %v2932 = vsub.s32 %v2929, %v2931
    %v2933 = vrot.slane %v2919, %v2932
    %v2934 = vcombine.low %v2878, %v2910
    %v2935 = vcombine.high %v2878, %v2910
    %v2936 = vcombine.low %v2885, %v2917
    %v2937 = vcombine.high %v2885, %v2917
    %v2938 = vcombine.low %v2894, %v2926
    %v2939 = vcombine.high %v2894, %v2926
    %v2940 = vcombine.low %v2901, %v2933
    %v2941 = vcombine.high %v2901, %v2933
    %v2942 = vcombine.low %v488, %v510
    %v2943 = vcombine.high %v488, %v510
    %v2945 = vunpack.c.l.s4 1983009808
    %v2946 = vunpack.c.0.s8 %v2945
    %v2947 = vlaneseq
    %v2948 = vshrl.u32 %v2947, 7
    %v2949 = vsub.s32 %v2946, %v2948
    %v2950 = vrot.slane %v2942, %v2949
    %v2952 = vunpack.c.l.s4 1983009808
    %v2953 = vunpack.c.0.s8 %v2952
    %v2954 = vlaneseq
    %v2955 = vshrl.u32 %v2954, 7
    %v2956 = vsub.s32 %v2953, %v2955
    %v2957 = vrot.slane %v2943, %v2956
    %v2958 = vcombine.low %v499, %v521
    %v2959 = vcombine.high %v499, %v521
    %v2961 = vunpack.c.l.s4 1983009808
    %v2962 = vunpack.c.0.s8 %v2961
    %v2963 = vlaneseq
    %v2964 = vshrl.u32 %v2963, 7
    %v2965 = vsub.s32 %v2962, %v2964
    %v2966 = vrot.slane %v2958, %v2965
    %v2968 = vunpack.c.l.s4 1983009808
    %v2969 = vunpack.c.0.s8 %v2968
    %v2970 = vlaneseq
    %v2971 = vshrl.u32 %v2970, 7
    %v2972 = vsub.s32 %v2969, %v2971
    %v2973 = vrot.slane %v2959, %v2972
    %v2974 = vcombine.low %v532, %v554
    %v2975 = vcombine.high %v532, %v554
    %v2977 = vunpack.c.l.s4 1983009808
    %v2978 = vunpack.c.0.s8 %v2977
    %v2979 = vlaneseq
    %v2980 = vshrl.u32 %v2979, 7
    %v2981 = vsub.s32 %v2978, %v2980
    %v2982 = vrot.slane %v2974, %v2981
    %v2984 = vunpack.c.l.s4 1983009808
    %v2985 = vunpack.c.0.s8 %v2984
    %v2986 = vlaneseq
    %v2987 = vshrl.u32 %v2986, 7
    %v2988 = vsub.s32 %v2985, %v2987
    %v2989 = vrot.slane %v2975, %v2988
    %v2990 = vcombine.low %v543, %v565
    %v2991 = vcombine.high %v543, %v565
    %v2993 = vunpack.c.l.s4 1983009808
    %v2994 = vunpack.c.0.s8 %v2993
    %v2995 = vlaneseq
    %v2996 = vshrl.u32 %v2995, 7
    %v2997 = vsub.s32 %v2994, %v2996
    %v2998 = vrot.slane %v2990, %v2997
    %v3000 = vunpack.c.l.s4 1983009808
    %v3001 = vunpack.c.0.s8 %v3000
    %v3002 = vlaneseq
    %v3003 = vshrl.u32 %v3002, 7
    %v3004 = vsub.s32 %v3001, %v3003
    %v3005 = vrot.slane %v2991, %v3004
    %v3006 = vcombine.low %v2950, %v2966
    %v3007 = vcombine.high %v2950, %v2966
    %v3009 = vunpack.c.l.s4 1934713408
    %v3010 = vunpack.c.0.s8 %v3009
    %v3011 = vlaneseq
    %v3012 = vshrl.u32 %v3011, 7
    %v3013 = vsub.s32 %v3010, %v3012
    %v3014 = vrot.slane %v3006, %v3013
    %v3016 = vunpack.c.l.s4 1934713408
    %v3017 = vunpack.c.0.s8 %v3016
    %v3018 = vlaneseq
    %v3019 = vshrl.u32 %v3018, 7
    %v3020 = vsub.s32 %v3017, %v3019
    %v3021 = vrot.slane %v3007, %v3020
    %v3022 = vcombine.low %v2957, %v2973
    %v3023 = vcombine.high %v2957, %v2973
    %v3025 = vunpack.c.l.s4 1934713408
    %v3026 = vunpack.c.0.s8 %v3025
    %v3027 = vlaneseq
    %v3028 = vshrl.u32 %v3027, 7
    %v3029 = vsub.s32 %v3026, %v3028
    %v3030 = vrot.slane %v3022, %v3029
    %v3032 = vunpack.c.l.s4 1934713408
    %v3033 = vunpack.c.0.s8 %v3032
    %v3034 = vlaneseq
    %v3035 = vshrl.u32 %v3034, 7
    %v3036 = vsub.s32 %v3033, %v3035
    %v3037 = vrot.slane %v3023, %v3036
    %v3038 = vcombine.low %v2982, %v2998
    %v3039 = vcombine.high %v2982, %v2998
    %v3041 = vunpack.c.l.s4 1934713408
    %v3042 = vunpack.c.0.s8 %v3041
    %v3043 = vlaneseq
    %v3044 = vshrl.u32 %v3043, 7
    %v3045 = vsub.s32 %v3042, %v3044
    %v3046 = vrot.slane %v3038, %v3045
    %v3048 = vunpack.c.l.s4 1934713408
    %v3049 = vunpack.c.0.s8 %v3048
    %v3050 = vlaneseq
    %v3051 = vshrl.u32 %v3050, 7
    %v3052 = vsub.s32 %v3049, %v3051
    %v3053 = vrot.slane %v3039, %v3052
    %v3054 = vcombine.low %v2989, %v3005
    %v3055 = vcombine.high %v2989, %v3005
    %v3057 = vunpack.c.l.s4 1934713408
    %v3058 = vunpack.c.0.s8 %v3057
    %v3059 = vlaneseq
    %v3060 = vshrl.u32 %v3059, 7
    %v3061 = vsub.s32 %v3058, %v3060
    %v3062 = vrot.slane %v3054, %v3061
    %v3064 = vunpack.c.l.s4 1934713408
    %v3065 = vunpack.c.0.s8 %v3064
    %v3066 = vlaneseq
    %v3067 = vshrl.u32 %v3066, 7
    %v3068 = vsub.s32 %v3065, %v3067
    %v3069 = vrot.slane %v3055, %v3068
    %v3070 = vcombine.low %v3014, %v3046
    %v3071 = vcombine.high %v3014, %v3046
    %v3072 = vcombine.low %v3021, %v3053
    %v3073 = vcombine.high %v3021, %v3053
    %v3074 = vcombine.low %v3030, %v3062
    %v3075 = vcombine.high %v3030, %v3062
    %v3076 = vcombine.low %v3037, %v3069
    %v3077 = vcombine.high %v3037, %v3069
    %v3078 = vcombine.low %v572, %v594
    %v3079 = vcombine.high %v572, %v594
    %v3081 = vunpack.c.l.s4 1983009808
    %v3082 = vunpack.c.0.s8 %v3081
    %v3083 = vlaneseq
    %v3084 = vshrl.u32 %v3083, 7
    %v3085 = vsub.s32 %v3082, %v3084
    %v3086 = vrot.slane %v3078, %v3085
    %v3088 = vunpack.c.l.s4 1983009808
    %v3089 = vunpack.c.0.s8 %v3088
    %v3090 = vlaneseq
    %v3091 = vshrl.u32 %v3090, 7
    %v3092 = vsub.s32 %v3089, %v3091
    %v3093 = vrot.slane %v3079, %v3092
    %v3094 = vcombine.low %v583, %v605
    %v3095 = vcombine.high %v583, %v605
    %v3097 = vunpack.c.l.s4 1983009808
    %v3098 = vunpack.c.0.s8 %v3097
    %v3099 = vlaneseq
    %v3100 = vshrl.u32 %v3099, 7
    %v3101 = vsub.s32 %v3098, %v3100
    %v3102 = vrot.slane %v3094, %v3101
    %v3104 = vunpack.c.l.s4 1983009808
    %v3105 = vunpack.c.0.s8 %v3104
    %v3106 = vlaneseq
    %v3107 = vshrl.u32 %v3106, 7
    %v3108 = vsub.s32 %v3105, %v3107
    %v3109 = vrot.slane %v3095, %v3108
    %v3110 = vcombine.low %v616, %v638
    %v3111 = vcombine.high %v616, %v638
    %v3113 = vunpack.c.l.s4 1983009808
    %v3114 = vunpack.c.0.s8 %v3113
    %v3115 = vlaneseq
    %v3116 = vshrl.u32 %v3115, 7
    %v3117 = vsub.s32 %v3114, %v3116
    %v3118 = vrot.slane %v3110, %v3117
    %v3120 = vunpack.c.l.s4 1983009808
    %v3121 = vunpack.c.0.s8 %v3120
    %v3122 = vlaneseq
    %v3123 = vshrl.u32 %v3122, 7
    %v3124 = vsub.s32 %v3121, %v3123
    %v3125 = vrot.slane %v3111, %v3124
    %v3126 = vcombine.low %v627, %v649
    %v3127 = vcombine.high %v627, %v649
    %v3129 = vunpack.c.l.s4 1983009808
    %v3130 = vunpack.c.0.s8 %v3129
    %v3131 = vlaneseq
    %v3132 = vshrl.u32 %v3131, 7
    %v3133 = vsub.s32 %v3130, %v3132
    %v3134 = vrot.slane %v3126, %v3133
    %v3136 = vunpack.c.l.s4 1983009808
    %v3137 = vunpack.c.0.s8 %v3136
    %v3138 = vlaneseq
    %v3139 = vshrl.u32 %v3138, 7
    %v3140 = vsub.s32 %v3137, %v3139
    %v3141 = vrot.slane %v3127, %v3140
    %v3142 = vcombine.low %v3086, %v3102
    %v3143 = vcombine.high %v3086, %v3102
    %v3145 = vunpack.c.l.s4 1934713408
    %v3146 = vunpack.c.0.s8 %v3145
    %v3147 = vlaneseq
    %v3148 = vshrl.u32 %v3147, 7
    %v3149 = vsub.s32 %v3146, %v3148
    %v3150 = vrot.slane %v3142, %v3149
    %v3152 = vunpack.c.l.s4 1934713408
    %v3153 = vunpack.c.0.s8 %v3152
    %v3154 = vlaneseq
    %v3155 = vshrl.u32 %v3154, 7
    %v3156 = vsub.s32 %v3153, %v3155
    %v3157 = vrot.slane %v3143, %v3156
    %v3158 = vcombine.low %v3093, %v3109
    %v3159 = vcombine.high %v3093, %v3109
    %v3161 = vunpack.c.l.s4 1934713408
    %v3162 = vunpack.c.0.s8 %v3161
    %v3163 = vlaneseq
    %v3164 = vshrl.u32 %v3163, 7
    %v3165 = vsub.s32 %v3162, %v3164
    %v3166 = vrot.slane %v3158, %v3165
    %v3168 = vunpack.c.l.s4 1934713408
    %v3169 = vunpack.c.0.s8 %v3168
    %v3170 = vlaneseq
    %v3171 = vshrl.u32 %v3170, 7
    %v3172 = vsub.s32 %v3169, %v3171
    %v3173 = vrot.slane %v3159, %v3172
    %v3174 = vcombine.low %v3118, %v3134
    %v3175 = vcombine.high %v3118, %v3134
    %v3177 = vunpack.c.l.s4 1934713408
    %v3178 = vunpack.c.0.s8 %v3177
    %v3179 = vlaneseq
    %v3180 = vshrl.u32 %v3179, 7
    %v3181 = vsub.s32 %v3178, %v3180
    %v3182 = vrot.slane %v3174, %v3181
    %v3184 = vunpack.c.l.s4 1934713408
    %v3185 = vunpack.c.0.s8 %v3184
    %v3186 = vlaneseq
    %v3187 = vshrl.u32 %v3186, 7
    %v3188 = vsub.s32 %v3185, %v3187
    %v3189 = vrot.slane %v3175, %v3188
    %v3190 = vcombine.low %v3125, %v3141
    %v3191 = vcombine.high %v3125, %v3141
    %v3193 = vunpack.c.l.s4 1934713408
    %v3194 = vunpack.c.0.s8 %v3193
    %v3195 = vlaneseq
    %v3196 = vshrl.u32 %v3195, 7
    %v3197 = vsub.s32 %v3194, %v3196
    %v3198 = vrot.slane %v3190, %v3197
    %v3200 = vunpack.c.l.s4 1934713408
    %v3201 = vunpack.c.0.s8 %v3200
    %v3202 = vlaneseq
    %v3203 = vshrl.u32 %v3202, 7
    %v3204 = vsub.s32 %v3201, %v3203
    %v3205 = vrot.slane %v3191, %v3204
    %v3206 = vcombine.low %v3150, %v3182
    %v3207 = vcombine.high %v3150, %v3182
    %v3208 = vcombine.low %v3157, %v3189
    %v3209 = vcombine.high %v3157, %v3189
    %v3210 = vcombine.low %v3166, %v3198
    %v3211 = vcombine.high %v3166, %v3198
    %v3212 = vcombine.low %v3173, %v3205
    %v3213 = vcombine.high %v3173, %v3205
    %v3214 = vcombine.low %v660, %v682
    %v3215 = vcombine.high %v660, %v682
    %v3217 = vunpack.c.l.s4 1983009808
    %v3218 = vunpack.c.0.s8 %v3217
    %v3219 = vlaneseq
    %v3220 = vshrl.u32 %v3219, 7
    %v3221 = vsub.s32 %v3218, %v3220
    %v3222 = vrot.slane %v3214, %v3221
    %v3224 = vunpack.c.l.s4 1983009808
    %v3225 = vunpack.c.0.s8 %v3224
    %v3226 = vlaneseq
    %v3227 = vshrl.u32 %v3226, 7
    %v3228 = vsub.s32 %v3225, %v3227
    %v3229 = vrot.slane %v3215, %v3228
    %v3230 = vcombine.low %v671, %v693
    %v3231 = vcombine.high %v671, %v693
    %v3233 = vunpack.c.l.s4 1983009808
    %v3234 = vunpack.c.0.s8 %v3233
    %v3235 = vlaneseq
    %v3236 = vshrl.u32 %v3235, 7
    %v3237 = vsub.s32 %v3234, %v3236
    %v3238 = vrot.slane %v3230, %v3237
    %v3240 = vunpack.c.l.s4 1983009808
    %v3241 = vunpack.c.0.s8 %v3240
    %v3242 = vlaneseq
    %v3243 = vshrl.u32 %v3242, 7
    %v3244 = vsub.s32 %v3241, %v3243
    %v3245 = vrot.slane %v3231, %v3244
    %v3246 = vcombine.low %v704, %v726
    %v3247 = vcombine.high %v704, %v726
    %v3249 = vunpack.c.l.s4 1983009808
    %v3250 = vunpack.c.0.s8 %v3249
    %v3251 = vlaneseq
    %v3252 = vshrl.u32 %v3251, 7
    %v3253 = vsub.s32 %v3250, %v3252
    %v3254 = vrot.slane %v3246, %v3253
    %v3256 = vunpack.c.l.s4 1983009808
    %v3257 = vunpack.c.0.s8 %v3256
    %v3258 = vlaneseq
    %v3259 = vshrl.u32 %v3258, 7
    %v3260 = vsub.s32 %v3257, %v3259
    %v3261 = vrot.slane %v3247, %v3260
    %v3262 = vcombine.low %v715, %v737
    %v3263 = vcombine.high %v715, %v737
    %v3265 = vunpack.c.l.s4 1983009808
    %v3266 = vunpack.c.0.s8 %v3265
    %v3267 = vlaneseq
    %v3268 = vshrl.u32 %v3267, 7
    %v3269 = vsub.s32 %v3266, %v3268
    %v3270 = vrot.slane %v3262, %v3269
    %v3272 = vunpack.c.l.s4 1983009808
    %v3273 = vunpack.c.0.s8 %v3272
    %v3274 = vlaneseq
    %v3275 = vshrl.u32 %v3274, 7
    %v3276 = vsub.s32 %v3273, %v3275
    %v3277 = vrot.slane %v3263, %v3276
    %v3278 = vcombine.low %v3222, %v3238
    %v3279 = vcombine.high %v3222, %v3238
    %v3281 = vunpack.c.l.s4 1934713408
    %v3282 = vunpack.c.0.s8 %v3281
    %v3283 = vlaneseq
    %v3284 = vshrl.u32 %v3283, 7
    %v3285 = vsub.s32 %v3282, %v3284
    %v3286 = vrot.slane %v3278, %v3285
    %v3288 = vunpack.c.l.s4 1934713408
    %v3289 = vunpack.c.0.s8 %v3288
    %v3290 = vlaneseq
    %v3291 = vshrl.u32 %v3290, 7
    %v3292 = vsub.s32 %v3289, %v3291
    %v3293 = vrot.slane %v3279, %v3292
    %v3294 = vcombine.low %v3229, %v3245
    %v3295 = vcombine.high %v3229, %v3245
    %v3297 = vunpack.c.l.s4 1934713408
    %v3298 = vunpack.c.0.s8 %v3297
    %v3299 = vlaneseq
    %v3300 = vshrl.u32 %v3299, 7
    %v3301 = vsub.s32 %v3298, %v3300
    %v3302 = vrot.slane %v3294, %v3301
    %v3304 = vunpack.c.l.s4 1934713408
    %v3305 = vunpack.c.0.s8 %v3304
    %v3306 = vlaneseq
    %v3307 = vshrl.u32 %v3306, 7
    %v3308 = vsub.s32 %v3305, %v3307
    %v3309 = vrot.slane %v3295, %v3308
    %v3310 = vcombine.low %v3254, %v3270
    %v3311 = vcombine.high %v3254, %v3270
    %v3313 = vunpack.c.l.s4 1934713408
    %v3314 = vunpack.c.0.s8 %v3313
    %v3315 = vlaneseq
    %v3316 = vshrl.u32 %v3315, 7
    %v3317 = vsub.s32 %v3314, %v3316
    %v3318 = vrot.slane %v3310, %v3317
    %v3320 = vunpack.c.l.s4 1934713408
    %v3321 = vunpack.c.0.s8 %v3320
    %v3322 = vlaneseq
    %v3323 = vshrl.u32 %v3322, 7
    %v3324 = vsub.s32 %v3321, %v3323
    %v3325 = vrot.slane %v3311, %v3324
    %v3326 = vcombine.low %v3261, %v3277
    %v3327 = vcombine.high %v3261, %v3277
    %v3329 = vunpack.c.l.s4 1934713408
    %v3330 = vunpack.c.0.s8 %v3329
    %v3331 = vlaneseq
    %v3332 = vshrl.u32 %v3331, 7
    %v3333 = vsub.s32 %v3330, %v3332
    %v3334 = vrot.slane %v3326, %v3333
    %v3336 = vunpack.c.l.s4 1934713408
    %v3337 = vunpack.c.0.s8 %v3336
    %v3338 = vlaneseq
    %v3339 = vshrl.u32 %v3338, 7
    %v3340 = vsub.s32 %v3337, %v3339
    %v3341 = vrot.slane %v3327, %v3340
    %v3342 = vcombine.low %v3286, %v3318
    %v3343 = vcombine.high %v3286, %v3318
    %v3344 = vcombine.low %v3293, %v3325
    %v3345 = vcombine.high %v3293, %v3325
    %v3346 = vcombine.low %v3302, %v3334
    %v3347 = vcombine.high %v3302, %v3334
    %v3348 = vcombine.low %v3309, %v3341
    %v3349 = vcombine.high %v3309, %v3341
    %v3350 = vcombine.low %v576, %v598
    %v3351 = vcombine.high %v576, %v598
    %v3353 = vunpack.c.l.s4 1983009808
    %v3354 = vunpack.c.0.s8 %v3353
    %v3355 = vlaneseq
    %v3356 = vshrl.u32 %v3355, 7
    %v3357 = vsub.s32 %v3354, %v3356
    %v3358 = vrot.slane %v3350, %v3357
    %v3360 = vunpack.c.l.s4 1983009808
    %v3361 = vunpack.c.0.s8 %v3360
    %v3362 = vlaneseq
    %v3363 = vshrl.u32 %v3362, 7
    %v3364 = vsub.s32 %v3361, %v3363
    %v3365 = vrot.slane %v3351, %v3364
    %v3366 = vcombine.low %v587, %v609
    %v3367 = vcombine.high %v587, %v609
    %v3369 = vunpack.c.l.s4 1983009808
    %v3370 = vunpack.c.0.s8 %v3369
    %v3371 = vlaneseq
    %v3372 = vshrl.u32 %v3371, 7
    %v3373 = vsub.s32 %v3370, %v3372
    %v3374 = vrot.slane %v3366, %v3373
    %v3376 = vunpack.c.l.s4 1983009808
    %v3377 = vunpack.c.0.s8 %v3376
    %v3378 = vlaneseq
    %v3379 = vshrl.u32 %v3378, 7
    %v3380 = vsub.s32 %v3377, %v3379
    %v3381 = vrot.slane %v3367, %v3380
    %v3382 = vcombine.low %v620, %v642
    %v3383 = vcombine.high %v620, %v642
    %v3385 = vunpack.c.l.s4 1983009808
    %v3386 = vunpack.c.0.s8 %v3385
    %v3387 = vlaneseq
    %v3388 = vshrl.u32 %v3387, 7
    %v3389 = vsub.s32 %v3386, %v3388
    %v3390 = vrot.slane %v3382, %v3389
    %v3392 = vunpack.c.l.s4 1983009808
    %v3393 = vunpack.c.0.s8 %v3392
    %v3394 = vlaneseq
    %v3395 = vshrl.u32 %v3394, 7
    %v3396 = vsub.s32 %v3393, %v3395
    %v3397 = vrot.slane %v3383, %v3396
    %v3398 = vcombine.low %v631, %v653
    %v3399 = vcombine.high %v631, %v653
    %v3401 = vunpack.c.l.s4 1983009808
    %v3402 = vunpack.c.0.s8 %v3401
    %v3403 = vlaneseq
    %v3404 = vshrl.u32 %v3403, 7
    %v3405 = vsub.s32 %v3402, %v3404
    %v3406 = vrot.slane %v3398, %v3405
    %v3408 = vunpack.c.l.s4 1983009808
    %v3409 = vunpack.c.0.s8 %v3408
    %v3410 = vlaneseq
    %v3411 = vshrl.u32 %v3410, 7
    %v3412 = vsub.s32 %v3409, %v3411
    %v3413 = vrot.slane %v3399, %v3412
    %v3414 = vcombine.low %v3358, %v3374
    %v3415 = vcombine.high %v3358, %v3374
    %v3417 = vunpack.c.l.s4 1934713408
    %v3418 = vunpack.c.0.s8 %v3417
    %v3419 = vlaneseq
    %v3420 = vshrl.u32 %v3419, 7
    %v3421 = vsub.s32 %v3418, %v3420
    %v3422 = vrot.slane %v3414, %v3421
    %v3424 = vunpack.c.l.s4 1934713408
    %v3425 = vunpack.c.0.s8 %v3424
    %v3426 = vlaneseq
    %v3427 = vshrl.u32 %v3426, 7
    %v3428 = vsub.s32 %v3425, %v3427
    %v3429 = vrot.slane %v3415, %v3428
    %v3430 = vcombine.low %v3365, %v3381
    %v3431 = vcombine.high %v3365, %v3381
    %v3433 = vunpack.c.l.s4 1934713408
    %v3434 = vunpack.c.0.s8 %v3433
    %v3435 = vlaneseq
    %v3436 = vshrl.u32 %v3435, 7
    %v3437 = vsub.s32 %v3434, %v3436
    %v3438 = vrot.slane %v3430, %v3437
    %v3440 = vunpack.c.l.s4 1934713408
    %v3441 = vunpack.c.0.s8 %v3440
    %v3442 = vlaneseq
    %v3443 = vshrl.u32 %v3442, 7
    %v3444 = vsub.s32 %v3441, %v3443
    %v3445 = vrot.slane %v3431, %v3444
    %v3446 = vcombine.low %v3390, %v3406
    %v3447 = vcombine.high %v3390, %v3406
    %v3449 = vunpack.c.l.s4 1934713408
    %v3450 = vunpack.c.0.s8 %v3449
    %v3451 = vlaneseq
    %v3452 = vshrl.u32 %v3451, 7
    %v3453 = vsub.s32 %v3450, %v3452
    %v3454 = vrot.slane %v3446, %v3453
    %v3456 = vunpack.c.l.s4 1934713408
    %v3457 = vunpack.c.0.s8 %v3456
    %v3458 = vlaneseq
    %v3459 = vshrl.u32 %v3458, 7
    %v3460 = vsub.s32 %v3457, %v3459
    %v3461 = vrot.slane %v3447, %v3460
    %v3462 = vcombine.low %v3397, %v3413
    %v3463 = vcombine.high %v3397, %v3413
    %v3465 = vunpack.c.l.s4 1934713408
    %v3466 = vunpack.c.0.s8 %v3465
    %v3467 = vlaneseq
    %v3468 = vshrl.u32 %v3467, 7
    %v3469 = vsub.s32 %v3466, %v3468
    %v3470 = vrot.slane %v3462, %v3469
    %v3472 = vunpack.c.l.s4 1934713408
    %v3473 = vunpack.c.0.s8 %v3472
    %v3474 = vlaneseq
    %v3475 = vshrl.u32 %v3474, 7
    %v3476 = vsub.s32 %v3473, %v3475
    %v3477 = vrot.slane %v3463, %v3476
    %v3478 = vcombine.low %v3422, %v3454
    %v3479 = vcombine.high %v3422, %v3454
    %v3480 = vcombine.low %v3429, %v3461
    %v3481 = vcombine.high %v3429, %v3461
    %v3482 = vcombine.low %v3438, %v3470
    %v3483 = vcombine.high %v3438, %v3470
    %v3484 = vcombine.low %v3445, %v3477
    %v3485 = vcombine.high %v3445, %v3477
    %v3486 = vcombine.low %v664, %v686
    %v3487 = vcombine.high %v664, %v686
    %v3489 = vunpack.c.l.s4 1983009808
    %v3490 = vunpack.c.0.s8 %v3489
    %v3491 = vlaneseq
    %v3492 = vshrl.u32 %v3491, 7
    %v3493 = vsub.s32 %v3490, %v3492
    %v3494 = vrot.slane %v3486, %v3493
    %v3496 = vunpack.c.l.s4 1983009808
    %v3497 = vunpack.c.0.s8 %v3496
    %v3498 = vlaneseq
    %v3499 = vshrl.u32 %v3498, 7
    %v3500 = vsub.s32 %v3497, %v3499
    %v3501 = vrot.slane %v3487, %v3500
    %v3502 = vcombine.low %v675, %v697
    %v3503 = vcombine.high %v675, %v697
    %v3505 = vunpack.c.l.s4 1983009808
    %v3506 = vunpack.c.0.s8 %v3505
    %v3507 = vlaneseq
    %v3508 = vshrl.u32 %v3507, 7
    %v3509 = vsub.s32 %v3506, %v3508
    %v3510 = vrot.slane %v3502, %v3509
    %v3512 = vunpack.c.l.s4 1983009808
    %v3513 = vunpack.c.0.s8 %v3512
    %v3514 = vlaneseq
    %v3515 = vshrl.u32 %v3514, 7
    %v3516 = vsub.s32 %v3513, %v3515
    %v3517 = vrot.slane %v3503, %v3516
    %v3518 = vcombine.low %v708, %v730
    %v3519 = vcombine.high %v708, %v730
    %v3521 = vunpack.c.l.s4 1983009808
    %v3522 = vunpack.c.0.s8 %v3521
    %v3523 = vlaneseq
    %v3524 = vshrl.u32 %v3523, 7
    %v3525 = vsub.s32 %v3522, %v3524
    %v3526 = vrot.slane %v3518, %v3525
    %v3528 = vunpack.c.l.s4 1983009808
    %v3529 = vunpack.c.0.s8 %v3528
    %v3530 = vlaneseq
    %v3531 = vshrl.u32 %v3530, 7
    %v3532 = vsub.s32 %v3529, %v3531
    %v3533 = vrot.slane %v3519, %v3532
    %v3534 = vcombine.low %v719, %v741
    %v3535 = vcombine.high %v719, %v741
    %v3537 = vunpack.c.l.s4 1983009808
    %v3538 = vunpack.c.0.s8 %v3537
    %v3539 = vlaneseq
    %v3540 = vshrl.u32 %v3539, 7
    %v3541 = vsub.s32 %v3538, %v3540
    %v3542 = vrot.slane %v3534, %v3541
    %v3544 = vunpack.c.l.s4 1983009808
    %v3545 = vunpack.c.0.s8 %v3544
    %v3546 = vlaneseq
    %v3547 = vshrl.u32 %v3546, 7
    %v3548 = vsub.s32 %v3545, %v3547
    %v3549 = vrot.slane %v3535, %v3548
    %v3550 = vcombine.low %v3494, %v3510
    %v3551 = vcombine.high %v3494, %v3510
    %v3553 = vunpack.c.l.s4 1934713408
    %v3554 = vunpack.c.0.s8 %v3553
    %v3555 = vlaneseq
    %v3556 = vshrl.u32 %v3555, 7
    %v3557 = vsub.s32 %v3554, %v3556
    %v3558 = vrot.slane %v3550, %v3557
    %v3560 = vunpack.c.l.s4 1934713408
    %v3561 = vunpack.c.0.s8 %v3560
    %v3562 = vlaneseq
    %v3563 = vshrl.u32 %v3562, 7
    %v3564 = vsub.s32 %v3561, %v3563
    %v3565 = vrot.slane %v3551, %v3564
    %v3566 = vcombine.low %v3501, %v3517
    %v3567 = vcombine.high %v3501, %v3517
    %v3569 = vunpack.c.l.s4 1934713408
    %v3570 = vunpack.c.0.s8 %v3569
    %v3571 = vlaneseq
    %v3572 = vshrl.u32 %v3571, 7
    %v3573 = vsub.s32 %v3570, %v3572
    %v3574 = vrot.slane %v3566, %v3573
    %v3576 = vunpack.c.l.s4 1934713408
    %v3577 = vunpack.c.0.s8 %v3576
    %v3578 = vlaneseq
    %v3579 = vshrl.u32 %v3578, 7
    %v3580 = vsub.s32 %v3577, %v3579
    %v3581 = vrot.slane %v3567, %v3580
    %v3582 = vcombine.low %v3526, %v3542
    %v3583 = vcombine.high %v3526, %v3542
    %v3585 = vunpack.c.l.s4 1934713408
    %v3586 = vunpack.c.0.s8 %v3585
    %v3587 = vlaneseq
    %v3588 = vshrl.u32 %v3587, 7
    %v3589 = vsub.s32 %v3586, %v3588
    %v3590 = vrot.slane %v3582, %v3589
    %v3592 = vunpack.c.l.s4 1934713408
    %v3593 = vunpack.c.0.s8 %v3592
    %v3594 = vlaneseq
    %v3595 = vshrl.u32 %v3594, 7
    %v3596 = vsub.s32 %v3593, %v3595
    %v3597 = vrot.slane %v3583, %v3596
    %v3598 = vcombine.low %v3533, %v3549
    %v3599 = vcombine.high %v3533, %v3549
    %v3601 = vunpack.c.l.s4 1934713408
    %v3602 = vunpack.c.0.s8 %v3601
    %v3603 = vlaneseq
    %v3604 = vshrl.u32 %v3603, 7
    %v3605 = vsub.s32 %v3602, %v3604
    %v3606 = vrot.slane %v3598, %v3605
    %v3608 = vunpack.c.l.s4 1934713408
    %v3609 = vunpack.c.0.s8 %v3608
    %v3610 = vlaneseq
    %v3611 = vshrl.u32 %v3610, 7
    %v3612 = vsub.s32 %v3609, %v3611
    %v3613 = vrot.slane %v3599, %v3612
    %v3614 = vcombine.low %v3558, %v3590
    %v3615 = vcombine.high %v3558, %v3590
    %v3616 = vcombine.low %v3565, %v3597
    %v3617 = vcombine.high %v3565, %v3597
    %v3618 = vcombine.low %v3574, %v3606
    %v3619 = vcombine.high %v3574, %v3606
    %v3620 = vcombine.low %v3581, %v3613
    %v3621 = vcombine.high %v3581, %v3613
    %v3622 = vcombine.low %v748, %v770
    %v3623 = vcombine.high %v748, %v770
    %v3625 = vunpack.c.l.s4 1983009808
    %v3626 = vunpack.c.0.s8 %v3625
    %v3627 = vlaneseq
    %v3628 = vshrl.u32 %v3627, 7
    %v3629 = vsub.s32 %v3626, %v3628
    %v3630 = vrot.slane %v3622, %v3629
    %v3632 = vunpack.c.l.s4 1983009808
    %v3633 = vunpack.c.0.s8 %v3632
    %v3634 = vlaneseq
    %v3635 = vshrl.u32 %v3634, 7
    %v3636 = vsub.s32 %v3633, %v3635
    %v3637 = vrot.slane %v3623, %v3636
    %v3638 = vcombine.low %v759, %v781
    %v3639 = vcombine.high %v759, %v781
    %v3641 = vunpack.c.l.s4 1983009808
    %v3642 = vunpack.c.0.s8 %v3641
    %v3643 = vlaneseq
    %v3644 = vshrl.u32 %v3643, 7
    %v3645 = vsub.s32 %v3642, %v3644
    %v3646 = vrot.slane %v3638, %v3645
    %v3648 = vunpack.c.l.s4 1983009808
    %v3649 = vunpack.c.0.s8 %v3648
    %v3650 = vlaneseq
    %v3651 = vshrl.u32 %v3650, 7
    %v3652 = vsub.s32 %v3649, %v3651
    %v3653 = vrot.slane %v3639, %v3652
    %v3654 = vcombine.low %v792, %v814
    %v3655 = vcombine.high %v792, %v814
    %v3657 = vunpack.c.l.s4 1983009808
    %v3658 = vunpack.c.0.s8 %v3657
    %v3659 = vlaneseq
    %v3660 = vshrl.u32 %v3659, 7
    %v3661 = vsub.s32 %v3658, %v3660
    %v3662 = vrot.slane %v3654, %v3661
    %v3664 = vunpack.c.l.s4 1983009808
    %v3665 = vunpack.c.0.s8 %v3664
    %v3666 = vlaneseq
    %v3667 = vshrl.u32 %v3666, 7
    %v3668 = vsub.s32 %v3665, %v3667
    %v3669 = vrot.slane %v3655, %v3668
    %v3670 = vcombine.low %v803, %v825
    %v3671 = vcombine.high %v803, %v825
    %v3673 = vunpack.c.l.s4 1983009808
    %v3674 = vunpack.c.0.s8 %v3673
    %v3675 = vlaneseq
    %v3676 = vshrl.u32 %v3675, 7
    %v3677 = vsub.s32 %v3674, %v3676
    %v3678 = vrot.slane %v3670, %v3677
    %v3680 = vunpack.c.l.s4 1983009808
    %v3681 = vunpack.c.0.s8 %v3680
    %v3682 = vlaneseq
    %v3683 = vshrl.u32 %v3682, 7
    %v3684 = vsub.s32 %v3681, %v3683
    %v3685 = vrot.slane %v3671, %v3684
    %v3686 = vcombine.low %v3630, %v3646
    %v3687 = vcombine.high %v3630, %v3646
    %v3689 = vunpack.c.l.s4 1934713408
    %v3690 = vunpack.c.0.s8 %v3689
    %v3691 = vlaneseq
    %v3692 = vshrl.u32 %v3691, 7
    %v3693 = vsub.s32 %v3690, %v3692
    %v3694 = vrot.slane %v3686, %v3693
    %v3696 = vunpack.c.l.s4 1934713408
    %v3697 = vunpack.c.0.s8 %v3696
    %v3698 = vlaneseq
    %v3699 = vshrl.u32 %v3698, 7
    %v3700 = vsub.s32 %v3697, %v3699
    %v3701 = vrot.slane %v3687, %v3700
    %v3702 = vcombine.low %v3637, %v3653
    %v3703 = vcombine.high %v3637, %v3653
    %v3705 = vunpack.c.l.s4 1934713408
    %v3706 = vunpack.c.0.s8 %v3705
    %v3707 = vlaneseq
    %v3708 = vshrl.u32 %v3707, 7
    %v3709 = vsub.s32 %v3706, %v3708
    %v3710 = vrot.slane %v3702, %v3709
    %v3712 = vunpack.c.l.s4 1934713408
    %v3713 = vunpack.c.0.s8 %v3712
    %v3714 = vlaneseq
    %v3715 = vshrl.u32 %v3714, 7
    %v3716 = vsub.s32 %v3713, %v3715
    %v3717 = vrot.slane %v3703, %v3716
    %v3718 = vcombine.low %v3662, %v3678
    %v3719 = vcombine.high %v3662, %v3678
    %v3721 = vunpack.c.l.s4 1934713408
    %v3722 = vunpack.c.0.s8 %v3721
    %v3723 = vlaneseq
    %v3724 = vshrl.u32 %v3723, 7
    %v3725 = vsub.s32 %v3722, %v3724
    %v3726 = vrot.slane %v3718, %v3725
    %v3728 = vunpack.c.l.s4 1934713408
    %v3729 = vunpack.c.0.s8 %v3728
    %v3730 = vlaneseq
    %v3731 = vshrl.u32 %v3730, 7
    %v3732 = vsub.s32 %v3729, %v3731
    %v3733 = vrot.slane %v3719, %v3732
    %v3734 = vcombine.low %v3669, %v3685
    %v3735 = vcombine.high %v3669, %v3685
    %v3737 = vunpack.c.l.s4 1934713408
    %v3738 = vunpack.c.0.s8 %v3737
    %v3739 = vlaneseq
    %v3740 = vshrl.u32 %v3739, 7
    %v3741 = vsub.s32 %v3738, %v3740
    %v3742 = vrot.slane %v3734, %v3741
    %v3744 = vunpack.c.l.s4 1934713408
    %v3745 = vunpack.c.0.s8 %v3744
    %v3746 = vlaneseq
    %v3747 = vshrl.u32 %v3746, 7
    %v3748 = vsub.s32 %v3745, %v3747
    %v3749 = vrot.slane %v3735, %v3748
    %v3750 = vcombine.low %v3694, %v3726
    %v3751 = vcombine.high %v3694, %v3726
    %v3752 = vcombine.low %v3701, %v3733
    %v3753 = vcombine.high %v3701, %v3733
    %v3754 = vcombine.low %v3710, %v3742
    %v3755 = vcombine.high %v3710, %v3742
    %v3756 = vcombine.low %v3717, %v3749
    %v3757 = vcombine.high %v3717, %v3749
    %v3758 = vcombine.low %v836, %v858
    %v3759 = vcombine.high %v836, %v858
    %v3761 = vunpack.c.l.s4 1983009808
    %v3762 = vunpack.c.0.s8 %v3761
    %v3763 = vlaneseq
    %v3764 = vshrl.u32 %v3763, 7
    %v3765 = vsub.s32 %v3762, %v3764
    %v3766 = vrot.slane %v3758, %v3765
    %v3768 = vunpack.c.l.s4 1983009808
    %v3769 = vunpack.c.0.s8 %v3768
    %v3770 = vlaneseq
    %v3771 = vshrl.u32 %v3770, 7
    %v3772 = vsub.s32 %v3769, %v3771
    %v3773 = vrot.slane %v3759, %v3772
    %v3774 = vcombine.low %v847, %v869
    %v3775 = vcombine.high %v847, %v869
    %v3777 = vunpack.c.l.s4 1983009808
    %v3778 = vunpack.c.0.s8 %v3777
    %v3779 = vlaneseq
    %v3780 = vshrl.u32 %v3779, 7
    %v3781 = vsub.s32 %v3778, %v3780
    %v3782 = vrot.slane %v3774, %v3781
    %v3784 = vunpack.c.l.s4 1983009808
    %v3785 = vunpack.c.0.s8 %v3784
    %v3786 = vlaneseq
    %v3787 = vshrl.u32 %v3786, 7
    %v3788 = vsub.s32 %v3785, %v3787
    %v3789 = vrot.slane %v3775, %v3788
    %v3790 = vcombine.low %v880, %v902
    %v3791 = vcombine.high %v880, %v902
    %v3793 = vunpack.c.l.s4 1983009808
    %v3794 = vunpack.c.0.s8 %v3793
    %v3795 = vlaneseq
    %v3796 = vshrl.u32 %v3795, 7
    %v3797 = vsub.s32 %v3794, %v3796
    %v3798 = vrot.slane %v3790, %v3797
    %v3800 = vunpack.c.l.s4 1983009808
    %v3801 = vunpack.c.0.s8 %v3800
    %v3802 = vlaneseq
    %v3803 = vshrl.u32 %v3802, 7
    %v3804 = vsub.s32 %v3801, %v3803
    %v3805 = vrot.slane %v3791, %v3804
    %v3806 = vcombine.low %v891, %v913
    %v3807 = vcombine.high %v891, %v913
    %v3809 = vunpack.c.l.s4 1983009808
    %v3810 = vunpack.c.0.s8 %v3809
    %v3811 = vlaneseq
    %v3812 = vshrl.u32 %v3811, 7
    %v3813 = vsub.s32 %v3810, %v3812
    %v3814 = vrot.slane %v3806, %v3813
    %v3816 = vunpack.c.l.s4 1983009808
    %v3817 = vunpack.c.0.s8 %v3816
    %v3818 = vlaneseq
    %v3819 = vshrl.u32 %v3818, 7
    %v3820 = vsub.s32 %v3817, %v3819
    %v3821 = vrot.slane %v3807, %v3820
    %v3822 = vcombine.low %v3766, %v3782
    %v3823 = vcombine.high %v3766, %v3782
    %v3825 = vunpack.c.l.s4 1934713408
    %v3826 = vunpack.c.0.s8 %v3825
    %v3827 = vlaneseq
    %v3828 = vshrl.u32 %v3827, 7
    %v3829 = vsub.s32 %v3826, %v3828
    %v3830 = vrot.slane %v3822, %v3829
    %v3832 = vunpack.c.l.s4 1934713408
    %v3833 = vunpack.c.0.s8 %v3832
    %v3834 = vlaneseq
    %v3835 = vshrl.u32 %v3834, 7
    %v3836 = vsub.s32 %v3833, %v3835
    %v3837 = vrot.slane %v3823, %v3836
    %v3838 = vcombine.low %v3773, %v3789
    %v3839 = vcombine.high %v3773, %v3789
    %v3841 = vunpack.c.l.s4 1934713408
    %v3842 = vunpack.c.0.s8 %v3841
    %v3843 = vlaneseq
    %v3844 = vshrl.u32 %v3843, 7
    %v3845 = vsub.s32 %v3842, %v3844
    %v3846 = vrot.slane %v3838, %v3845
    %v3848 = vunpack.c.l.s4 1934713408
    %v3849 = vunpack.c.0.s8 %v3848
    %v3850 = vlaneseq
    %v3851 = vshrl.u32 %v3850, 7
    %v3852 = vsub.s32 %v3849, %v3851
    %v3853 = vrot.slane %v3839, %v3852
    %v3854 = vcombine.low %v3798, %v3814
    %v3855 = vcombine.high %v3798, %v3814
    %v3857 = vunpack.c.l.s4 1934713408
    %v3858 = vunpack.c.0.s8 %v3857
    %v3859 = vlaneseq
    %v3860 = vshrl.u32 %v3859, 7
    %v3861 = vsub.s32 %v3858, %v3860
    %v3862 = vrot.slane %v3854, %v3861
    %v3864 = vunpack.c.l.s4 1934713408
    %v3865 = vunpack.c.0.s8 %v3864
    %v3866 = vlaneseq
    %v3867 = vshrl.u32 %v3866, 7
    %v3868 = vsub.s32 %v3865, %v3867
    %v3869 = vrot.slane %v3855, %v3868
    %v3870 = vcombine.low %v3805, %v3821
    %v3871 = vcombine.high %v3805, %v3821
    %v3873 = vunpack.c.l.s4 1934713408
    %v3874 = vunpack.c.0.s8 %v3873
    %v3875 = vlaneseq
    %v3876 = vshrl.u32 %v3875, 7
    %v3877 = vsub.s32 %v3874, %v3876
    %v3878 = vrot.slane %v3870, %v3877
    %v3880 = vunpack.c.l.s4 1934713408
    %v3881 = vunpack.c.0.s8 %v3880
    %v3882 = vlaneseq
    %v3883 = vshrl.u32 %v3882, 7
    %v3884 = vsub.s32 %v3881, %v3883
    %v3885 = vrot.slane %v3871, %v3884
    %v3886 = vcombine.low %v3830, %v3862
    %v3887 = vcombine.high %v3830, %v3862
    %v3888 = vcombine.low %v3837, %v3869
    %v3889 = vcombine.high %v3837, %v3869
    %v3890 = vcombine.low %v3846, %v3878
    %v3891 = vcombine.high %v3846, %v3878
    %v3892 = vcombine.low %v3853, %v3885
    %v3893 = vcombine.high %v3853, %v3885
    %v3894 = vcombine.low %v752, %v774
    %v3895 = vcombine.high %v752, %v774
    %v3897 = vunpack.c.l.s4 1983009808
    %v3898 = vunpack.c.0.s8 %v3897
    %v3899 = vlaneseq
    %v3900 = vshrl.u32 %v3899, 7
    %v3901 = vsub.s32 %v3898, %v3900
    %v3902 = vrot.slane %v3894, %v3901
    %v3904 = vunpack.c.l.s4 1983009808
    %v3905 = vunpack.c.0.s8 %v3904
    %v3906 = vlaneseq
    %v3907 = vshrl.u32 %v3906, 7
    %v3908 = vsub.s32 %v3905, %v3907
    %v3909 = vrot.slane %v3895, %v3908
    %v3910 = vcombine.low %v763, %v785
    %v3911 = vcombine.high %v763, %v785
    %v3913 = vunpack.c.l.s4 1983009808
    %v3914 = vunpack.c.0.s8 %v3913
    %v3915 = vlaneseq
    %v3916 = vshrl.u32 %v3915, 7
    %v3917 = vsub.s32 %v3914, %v3916
    %v3918 = vrot.slane %v3910, %v3917
    %v3920 = vunpack.c.l.s4 1983009808
    %v3921 = vunpack.c.0.s8 %v3920
    %v3922 = vlaneseq
    %v3923 = vshrl.u32 %v3922, 7
    %v3924 = vsub.s32 %v3921, %v3923
    %v3925 = vrot.slane %v3911, %v3924
    %v3926 = vcombine.low %v796, %v818
    %v3927 = vcombine.high %v796, %v818
    %v3929 = vunpack.c.l.s4 1983009808
    %v3930 = vunpack.c.0.s8 %v3929
    %v3931 = vlaneseq
    %v3932 = vshrl.u32 %v3931, 7
    %v3933 = vsub.s32 %v3930, %v3932
    %v3934 = vrot.slane %v3926, %v3933
    %v3936 = vunpack.c.l.s4 1983009808
    %v3937 = vunpack.c.0.s8 %v3936
    %v3938 = vlaneseq
    %v3939 = vshrl.u32 %v3938, 7
    %v3940 = vsub.s32 %v3937, %v3939
    %v3941 = vrot.slane %v3927, %v3940
    %v3942 = vcombine.low %v807, %v829
    %v3943 = vcombine.high %v807, %v829
    %v3945 = vunpack.c.l.s4 1983009808
    %v3946 = vunpack.c.0.s8 %v3945
    %v3947 = vlaneseq
    %v3948 = vshrl.u32 %v3947, 7
    %v3949 = vsub.s32 %v3946, %v3948
    %v3950 = vrot.slane %v3942, %v3949
    %v3952 = vunpack.c.l.s4 1983009808
    %v3953 = vunpack.c.0.s8 %v3952
    %v3954 = vlaneseq
    %v3955 = vshrl.u32 %v3954, 7
    %v3956 = vsub.s32 %v3953, %v3955
    %v3957 = vrot.slane %v3943, %v3956
    %v3958 = vcombine.low %v3902, %v3918
    %v3959 = vcombine.high %v3902, %v3918
    %v3961 = vunpack.c.l.s4 1934713408
    %v3962 = vunpack.c.0.s8 %v3961
    %v3963 = vlaneseq
    %v3964 = vshrl.u32 %v3963, 7
    %v3965 = vsub.s32 %v3962, %v3964
    %v3966 = vrot.slane %v3958, %v3965
    %v3968 = vunpack.c.l.s4 1934713408
    %v3969 = vunpack.c.0.s8 %v3968
    %v3970 = vlaneseq
    %v3971 = vshrl.u32 %v3970, 7
    %v3972 = vsub.s32 %v3969, %v3971
    %v3973 = vrot.slane %v3959, %v3972
    %v3974 = vcombine.low %v3909, %v3925
    %v3975 = vcombine.high %v3909, %v3925
    %v3977 = vunpack.c.l.s4 1934713408
    %v3978 = vunpack.c.0.s8 %v3977
    %v3979 = vlaneseq
    %v3980 = vshrl.u32 %v3979, 7
    %v3981 = vsub.s32 %v3978, %v3980
    %v3982 = vrot.slane %v3974, %v3981
    %v3984 = vunpack.c.l.s4 1934713408
    %v3985 = vunpack.c.0.s8 %v3984
    %v3986 = vlaneseq
    %v3987 = vshrl.u32 %v3986, 7
    %v3988 = vsub.s32 %v3985, %v3987
    %v3989 = vrot.slane %v3975, %v3988
    %v3990 = vcombine.low %v3934, %v3950
    %v3991 = vcombine.high %v3934, %v3950
    %v3993 = vunpack.c.l.s4 1934713408
    %v3994 = vunpack.c.0.s8 %v3993
    %v3995 = vlaneseq
    %v3996 = vshrl.u32 %v3995, 7
    %v3997 = vsub.s32 %v3994, %v3996
    %v3998 = vrot.slane %v3990, %v3997
    %v4000 = vunpack.c.l.s4 1934713408
    %v4001 = vunpack.c.0.s8 %v4000
    %v4002 = vlaneseq
    %v4003 = vshrl.u32 %v4002, 7
    %v4004 = vsub.s32 %v4001, %v4003
    %v4005 = vrot.slane %v3991, %v4004
    %v4006 = vcombine.low %v3941, %v3957
    %v4007 = vcombine.high %v3941, %v3957
    %v4009 = vunpack.c.l.s4 1934713408
    %v4010 = vunpack.c.0.s8 %v4009
    %v4011 = vlaneseq
    %v4012 = vshrl.u32 %v4011, 7
    %v4013 = vsub.s32 %v4010, %v4012
    %v4014 = vrot.slane %v4006, %v4013
    %v4016 = vunpack.c.l.s4 1934713408
    %v4017 = vunpack.c.0.s8 %v4016
    %v4018 = vlaneseq
    %v4019 = vshrl.u32 %v4018, 7
    %v4020 = vsub.s32 %v4017, %v4019
    %v4021 = vrot.slane %v4007, %v4020
    %v4022 = vcombine.low %v3966, %v3998
    %v4023 = vcombine.high %v3966, %v3998
    %v4024 = vcombine.low %v3973, %v4005
    %v4025 = vcombine.high %v3973, %v4005
    %v4026 = vcombine.low %v3982, %v4014
    %v4027 = vcombine.high %v3982, %v4014
    %v4028 = vcombine.low %v3989, %v4021
    %v4029 = vcombine.high %v3989, %v4021
    %v4030 = vcombine.low %v840, %v862
    %v4031 = vcombine.high %v840, %v862
    %v4033 = vunpack.c.l.s4 1983009808
    %v4034 = vunpack.c.0.s8 %v4033
    %v4035 = vlaneseq
    %v4036 = vshrl.u32 %v4035, 7
    %v4037 = vsub.s32 %v4034, %v4036
    %v4038 = vrot.slane %v4030, %v4037
    %v4040 = vunpack.c.l.s4 1983009808
    %v4041 = vunpack.c.0.s8 %v4040
    %v4042 = vlaneseq
    %v4043 = vshrl.u32 %v4042, 7
    %v4044 = vsub.s32 %v4041, %v4043
    %v4045 = vrot.slane %v4031, %v4044
    %v4046 = vcombine.low %v851, %v873
    %v4047 = vcombine.high %v851, %v873
    %v4049 = vunpack.c.l.s4 1983009808
    %v4050 = vunpack.c.0.s8 %v4049
    %v4051 = vlaneseq
    %v4052 = vshrl.u32 %v4051, 7
    %v4053 = vsub.s32 %v4050, %v4052
    %v4054 = vrot.slane %v4046, %v4053
    %v4056 = vunpack.c.l.s4 1983009808
    %v4057 = vunpack.c.0.s8 %v4056
    %v4058 = vlaneseq
    %v4059 = vshrl.u32 %v4058, 7
    %v4060 = vsub.s32 %v4057, %v4059
    %v4061 = vrot.slane %v4047, %v4060
    %v4062 = vcombine.low %v884, %v906
    %v4063 = vcombine.high %v884, %v906
    %v4065 = vunpack.c.l.s4 1983009808
    %v4066 = vunpack.c.0.s8 %v4065
    %v4067 = vlaneseq
    %v4068 = vshrl.u32 %v4067, 7
    %v4069 = vsub.s32 %v4066, %v4068
    %v4070 = vrot.slane %v4062, %v4069
    %v4072 = vunpack.c.l.s4 1983009808
    %v4073 = vunpack.c.0.s8 %v4072
    %v4074 = vlaneseq
    %v4075 = vshrl.u32 %v4074, 7
    %v4076 = vsub.s32 %v4073, %v4075
    %v4077 = vrot.slane %v4063, %v4076
    %v4078 = vcombine.low %v895, %v917
    %v4079 = vcombine.high %v895, %v917
    %v4081 = vunpack.c.l.s4 1983009808
    %v4082 = vunpack.c.0.s8 %v4081
    %v4083 = vlaneseq
    %v4084 = vshrl.u32 %v4083, 7
    %v4085 = vsub.s32 %v4082, %v4084
    %v4086 = vrot.slane %v4078, %v4085
    %v4088 = vunpack.c.l.s4 1983009808
    %v4089 = vunpack.c.0.s8 %v4088
    %v4090 = vlaneseq
    %v4091 = vshrl.u32 %v4090, 7
    %v4092 = vsub.s32 %v4089, %v4091
    %v4093 = vrot.slane %v4079, %v4092
    %v4094 = vcombine.low %v4038, %v4054
    %v4095 = vcombine.high %v4038, %v4054
    %v4097 = vunpack.c.l.s4 1934713408
    %v4098 = vunpack.c.0.s8 %v4097
    %v4099 = vlaneseq
    %v4100 = vshrl.u32 %v4099, 7
    %v4101 = vsub.s32 %v4098, %v4100
    %v4102 = vrot.slane %v4094, %v4101
    %v4104 = vunpack.c.l.s4 1934713408
    %v4105 = vunpack.c.0.s8 %v4104
    %v4106 = vlaneseq
    %v4107 = vshrl.u32 %v4106, 7
    %v4108 = vsub.s32 %v4105, %v4107
    %v4109 = vrot.slane %v4095, %v4108
    %v4110 = vcombine.low %v4045, %v4061
    %v4111 = vcombine.high %v4045, %v4061
    %v4113 = vunpack.c.l.s4 1934713408
    %v4114 = vunpack.c.0.s8 %v4113
    %v4115 = vlaneseq
    %v4116 = vshrl.u32 %v4115, 7
    %v4117 = vsub.s32 %v4114, %v4116
    %v4118 = vrot.slane %v4110, %v4117
    %v4120 = vunpack.c.l.s4 1934713408
    %v4121 = vunpack.c.0.s8 %v4120
    %v4122 = vlaneseq
    %v4123 = vshrl.u32 %v4122, 7
    %v4124 = vsub.s32 %v4121, %v4123
    %v4125 = vrot.slane %v4111, %v4124
    %v4126 = vcombine.low %v4070, %v4086
    %v4127 = vcombine.high %v4070, %v4086
    %v4129 = vunpack.c.l.s4 1934713408
    %v4130 = vunpack.c.0.s8 %v4129
    %v4131 = vlaneseq
    %v4132 = vshrl.u32 %v4131, 7
    %v4133 = vsub.s32 %v4130, %v4132
    %v4134 = vrot.slane %v4126, %v4133
    %v4136 = vunpack.c.l.s4 1934713408
    %v4137 = vunpack.c.0.s8 %v4136
    %v4138 = vlaneseq
    %v4139 = vshrl.u32 %v4138, 7
    %v4140 = vsub.s32 %v4137, %v4139
    %v4141 = vrot.slane %v4127, %v4140
    %v4142 = vcombine.low %v4077, %v4093
    %v4143 = vcombine.high %v4077, %v4093
    %v4145 = vunpack.c.l.s4 1934713408
    %v4146 = vunpack.c.0.s8 %v4145
    %v4147 = vlaneseq
    %v4148 = vshrl.u32 %v4147, 7
    %v4149 = vsub.s32 %v4146, %v4148
    %v4150 = vrot.slane %v4142, %v4149
    %v4152 = vunpack.c.l.s4 1934713408
    %v4153 = vunpack.c.0.s8 %v4152
    %v4154 = vlaneseq
    %v4155 = vshrl.u32 %v4154, 7
    %v4156 = vsub.s32 %v4153, %v4155
    %v4157 = vrot.slane %v4143, %v4156
    %v4158 = vcombine.low %v4102, %v4134
    %v4159 = vcombine.high %v4102, %v4134
    %v4160 = vcombine.low %v4109, %v4141
    %v4161 = vcombine.high %v4109, %v4141
    %v4162 = vcombine.low %v4118, %v4150
    %v4163 = vcombine.high %v4118, %v4150
    %v4164 = vcombine.low %v4125, %v4157
    %v4165 = vcombine.high %v4125, %v4157
    %v4166 = vcombine.low %v924, %v946
    %v4167 = vcombine.high %v924, %v946
    %v4169 = vunpack.c.l.s4 1983009808
    %v4170 = vunpack.c.0.s8 %v4169
    %v4171 = vlaneseq
    %v4172 = vshrl.u32 %v4171, 7
    %v4173 = vsub.s32 %v4170, %v4172
    %v4174 = vrot.slane %v4166, %v4173
    %v4176 = vunpack.c.l.s4 1983009808
    %v4177 = vunpack.c.0.s8 %v4176
    %v4178 = vlaneseq
    %v4179 = vshrl.u32 %v4178, 7
    %v4180 = vsub.s32 %v4177, %v4179
    %v4181 = vrot.slane %v4167, %v4180
    %v4182 = vcombine.low %v935, %v957
    %v4183 = vcombine.high %v935, %v957
    %v4185 = vunpack.c.l.s4 1983009808
    %v4186 = vunpack.c.0.s8 %v4185
    %v4187 = vlaneseq
    %v4188 = vshrl.u32 %v4187, 7
    %v4189 = vsub.s32 %v4186, %v4188
    %v4190 = vrot.slane %v4182, %v4189
    %v4192 = vunpack.c.l.s4 1983009808
    %v4193 = vunpack.c.0.s8 %v4192
    %v4194 = vlaneseq
    %v4195 = vshrl.u32 %v4194, 7
    %v4196 = vsub.s32 %v4193, %v4195
    %v4197 = vrot.slane %v4183, %v4196
    %v4198 = vcombine.low %v968, %v990
    %v4199 = vcombine.high %v968, %v990
    %v4201 = vunpack.c.l.s4 1983009808
    %v4202 = vunpack.c.0.s8 %v4201
    %v4203 = vlaneseq
    %v4204 = vshrl.u32 %v4203, 7
    %v4205 = vsub.s32 %v4202, %v4204
    %v4206 = vrot.slane %v4198, %v4205
    %v4208 = vunpack.c.l.s4 1983009808
    %v4209 = vunpack.c.0.s8 %v4208
    %v4210 = vlaneseq
    %v4211 = vshrl.u32 %v4210, 7
    %v4212 = vsub.s32 %v4209, %v4211
    %v4213 = vrot.slane %v4199, %v4212
    %v4214 = vcombine.low %v979, %v1001
    %v4215 = vcombine.high %v979, %v1001
    %v4217 = vunpack.c.l.s4 1983009808
    %v4218 = vunpack.c.0.s8 %v4217
    %v4219 = vlaneseq
    %v4220 = vshrl.u32 %v4219, 7
    %v4221 = vsub.s32 %v4218, %v4220
    %v4222 = vrot.slane %v4214, %v4221
    %v4224 = vunpack.c.l.s4 1983009808
    %v4225 = vunpack.c.0.s8 %v4224
    %v4226 = vlaneseq
    %v4227 = vshrl.u32 %v4226, 7
    %v4228 = vsub.s32 %v4225, %v4227
    %v4229 = vrot.slane %v4215, %v4228
    %v4230 = vcombine.low %v4174, %v4190
    %v4231 = vcombine.high %v4174, %v4190
    %v4233 = vunpack.c.l.s4 1934713408
    %v4234 = vunpack.c.0.s8 %v4233
    %v4235 = vlaneseq
    %v4236 = vshrl.u32 %v4235, 7
    %v4237 = vsub.s32 %v4234, %v4236
    %v4238 = vrot.slane %v4230, %v4237
    %v4240 = vunpack.c.l.s4 1934713408
    %v4241 = vunpack.c.0.s8 %v4240
    %v4242 = vlaneseq
    %v4243 = vshrl.u32 %v4242, 7
    %v4244 = vsub.s32 %v4241, %v4243
    %v4245 = vrot.slane %v4231, %v4244
    %v4246 = vcombine.low %v4181, %v4197
    %v4247 = vcombine.high %v4181, %v4197
    %v4249 = vunpack.c.l.s4 1934713408
    %v4250 = vunpack.c.0.s8 %v4249
    %v4251 = vlaneseq
    %v4252 = vshrl.u32 %v4251, 7
    %v4253 = vsub.s32 %v4250, %v4252
    %v4254 = vrot.slane %v4246, %v4253
    %v4256 = vunpack.c.l.s4 1934713408
    %v4257 = vunpack.c.0.s8 %v4256
    %v4258 = vlaneseq
    %v4259 = vshrl.u32 %v4258, 7
    %v4260 = vsub.s32 %v4257, %v4259
    %v4261 = vrot.slane %v4247, %v4260
    %v4262 = vcombine.low %v4206, %v4222
    %v4263 = vcombine.high %v4206, %v4222
    %v4265 = vunpack.c.l.s4 1934713408
    %v4266 = vunpack.c.0.s8 %v4265
    %v4267 = vlaneseq
    %v4268 = vshrl.u32 %v4267, 7
    %v4269 = vsub.s32 %v4266, %v4268
    %v4270 = vrot.slane %v4262, %v4269
    %v4272 = vunpack.c.l.s4 1934713408
    %v4273 = vunpack.c.0.s8 %v4272
    %v4274 = vlaneseq
    %v4275 = vshrl.u32 %v4274, 7
    %v4276 = vsub.s32 %v4273, %v4275
    %v4277 = vrot.slane %v4263, %v4276
    %v4278 = vcombine.low %v4213, %v4229
    %v4279 = vcombine.high %v4213, %v4229
    %v4281 = vunpack.c.l.s4 1934713408
    %v4282 = vunpack.c.0.s8 %v4281
    %v4283 = vlaneseq
    %v4284 = vshrl.u32 %v4283, 7
    %v4285 = vsub.s32 %v4282, %v4284
    %v4286 = vrot.slane %v4278, %v4285
    %v4288 = vunpack.c.l.s4 1934713408
    %v4289 = vunpack.c.0.s8 %v4288
    %v4290 = vlaneseq
    %v4291 = vshrl.u32 %v4290, 7
    %v4292 = vsub.s32 %v4289, %v4291
    %v4293 = vrot.slane %v4279, %v4292
    %v4294 = vcombine.low %v4238, %v4270
    %v4295 = vcombine.high %v4238, %v4270
    %v4296 = vcombine.low %v4245, %v4277
    %v4297 = vcombine.high %v4245, %v4277
    %v4298 = vcombine.low %v4254, %v4286
    %v4299 = vcombine.high %v4254, %v4286
    %v4300 = vcombine.low %v4261, %v4293
    %v4301 = vcombine.high %v4261, %v4293
    %v4302 = vcombine.low %v1012, %v1034
    %v4303 = vcombine.high %v1012, %v1034
    %v4305 = vunpack.c.l.s4 1983009808
    %v4306 = vunpack.c.0.s8 %v4305
    %v4307 = vlaneseq
    %v4308 = vshrl.u32 %v4307, 7
    %v4309 = vsub.s32 %v4306, %v4308
    %v4310 = vrot.slane %v4302, %v4309
    %v4312 = vunpack.c.l.s4 1983009808
    %v4313 = vunpack.c.0.s8 %v4312
    %v4314 = vlaneseq
    %v4315 = vshrl.u32 %v4314, 7
    %v4316 = vsub.s32 %v4313, %v4315
    %v4317 = vrot.slane %v4303, %v4316
    %v4318 = vcombine.low %v1023, %v1045
    %v4319 = vcombine.high %v1023, %v1045
    %v4321 = vunpack.c.l.s4 1983009808
    %v4322 = vunpack.c.0.s8 %v4321
    %v4323 = vlaneseq
    %v4324 = vshrl.u32 %v4323, 7
    %v4325 = vsub.s32 %v4322, %v4324
    %v4326 = vrot.slane %v4318, %v4325
    %v4328 = vunpack.c.l.s4 1983009808
    %v4329 = vunpack.c.0.s8 %v4328
    %v4330 = vlaneseq
    %v4331 = vshrl.u32 %v4330, 7
    %v4332 = vsub.s32 %v4329, %v4331
    %v4333 = vrot.slane %v4319, %v4332
    %v4334 = vcombine.low %v1056, %v1078
    %v4335 = vcombine.high %v1056, %v1078
    %v4337 = vunpack.c.l.s4 1983009808
    %v4338 = vunpack.c.0.s8 %v4337
    %v4339 = vlaneseq
    %v4340 = vshrl.u32 %v4339, 7
    %v4341 = vsub.s32 %v4338, %v4340
    %v4342 = vrot.slane %v4334, %v4341
    %v4344 = vunpack.c.l.s4 1983009808
    %v4345 = vunpack.c.0.s8 %v4344
    %v4346 = vlaneseq
    %v4347 = vshrl.u32 %v4346, 7
    %v4348 = vsub.s32 %v4345, %v4347
    %v4349 = vrot.slane %v4335, %v4348
    %v4350 = vcombine.low %v1067, %v1089
    %v4351 = vcombine.high %v1067, %v1089
    %v4353 = vunpack.c.l.s4 1983009808
    %v4354 = vunpack.c.0.s8 %v4353
    %v4355 = vlaneseq
    %v4356 = vshrl.u32 %v4355, 7
    %v4357 = vsub.s32 %v4354, %v4356
    %v4358 = vrot.slane %v4350, %v4357
    %v4360 = vunpack.c.l.s4 1983009808
    %v4361 = vunpack.c.0.s8 %v4360
    %v4362 = vlaneseq
    %v4363 = vshrl.u32 %v4362, 7
    %v4364 = vsub.s32 %v4361, %v4363
    %v4365 = vrot.slane %v4351, %v4364
    %v4366 = vcombine.low %v4310, %v4326
    %v4367 = vcombine.high %v4310, %v4326
    %v4369 = vunpack.c.l.s4 1934713408
    %v4370 = vunpack.c.0.s8 %v4369
    %v4371 = vlaneseq
    %v4372 = vshrl.u32 %v4371, 7
    %v4373 = vsub.s32 %v4370, %v4372
    %v4374 = vrot.slane %v4366, %v4373
    %v4376 = vunpack.c.l.s4 1934713408
    %v4377 = vunpack.c.0.s8 %v4376
    %v4378 = vlaneseq
    %v4379 = vshrl.u32 %v4378, 7
    %v4380 = vsub.s32 %v4377, %v4379
    %v4381 = vrot.slane %v4367, %v4380
    %v4382 = vcombine.low %v4317, %v4333
    %v4383 = vcombine.high %v4317, %v4333
    %v4385 = vunpack.c.l.s4 1934713408
    %v4386 = vunpack.c.0.s8 %v4385
    %v4387 = vlaneseq
    %v4388 = vshrl.u32 %v4387, 7
    %v4389 = vsub.s32 %v4386, %v4388
    %v4390 = vrot.slane %v4382, %v4389
    %v4392 = vunpack.c.l.s4 1934713408
    %v4393 = vunpack.c.0.s8 %v4392
    %v4394 = vlaneseq
    %v4395 = vshrl.u32 %v4394, 7
    %v4396 = vsub.s32 %v4393, %v4395
    %v4397 = vrot.slane %v4383, %v4396
    %v4398 = vcombine.low %v4342, %v4358
    %v4399 = vcombine.high %v4342, %v4358
    %v4401 = vunpack.c.l.s4 1934713408
    %v4402 = vunpack.c.0.s8 %v4401
    %v4403 = vlaneseq
    %v4404 = vshrl.u32 %v4403, 7
    %v4405 = vsub.s32 %v4402, %v4404
    %v4406 = vrot.slane %v4398, %v4405
    %v4408 = vunpack.c.l.s4 1934713408
    %v4409 = vunpack.c.0.s8 %v4408
    %v4410 = vlaneseq
    %v4411 = vshrl.u32 %v4410, 7
    %v4412 = vsub.s32 %v4409, %v4411
    %v4413 = vrot.slane %v4399, %v4412
    %v4414 = vcombine.low %v4349, %v4365
    %v4415 = vcombine.high %v4349, %v4365
    %v4417 = vunpack.c.l.s4 1934713408
    %v4418 = vunpack.c.0.s8 %v4417
    %v4419 = vlaneseq
    %v4420 = vshrl.u32 %v4419, 7
    %v4421 = vsub.s32 %v4418, %v4420
    %v4422 = vrot.slane %v4414, %v4421
    %v4424 = vunpack.c.l.s4 1934713408
    %v4425 = vunpack.c.0.s8 %v4424
    %v4426 = vlaneseq
    %v4427 = vshrl.u32 %v4426, 7
    %v4428 = vsub.s32 %v4425, %v4427
    %v4429 = vrot.slane %v4415, %v4428
    %v4430 = vcombine.low %v4374, %v4406
    %v4431 = vcombine.high %v4374, %v4406
    %v4432 = vcombine.low %v4381, %v4413
    %v4433 = vcombine.high %v4381, %v4413
    %v4434 = vcombine.low %v4390, %v4422
    %v4435 = vcombine.high %v4390, %v4422
    %v4436 = vcombine.low %v4397, %v4429
    %v4437 = vcombine.high %v4397, %v4429
    %v4438 = vcombine.low %v928, %v950
    %v4439 = vcombine.high %v928, %v950
    %v4441 = vunpack.c.l.s4 1983009808
    %v4442 = vunpack.c.0.s8 %v4441
    %v4443 = vlaneseq
    %v4444 = vshrl.u32 %v4443, 7
    %v4445 = vsub.s32 %v4442, %v4444
    %v4446 = vrot.slane %v4438, %v4445
    %v4448 = vunpack.c.l.s4 1983009808
    %v4449 = vunpack.c.0.s8 %v4448
    %v4450 = vlaneseq
    %v4451 = vshrl.u32 %v4450, 7
    %v4452 = vsub.s32 %v4449, %v4451
    %v4453 = vrot.slane %v4439, %v4452
    %v4454 = vcombine.low %v939, %v961
    %v4455 = vcombine.high %v939, %v961
    %v4457 = vunpack.c.l.s4 1983009808
    %v4458 = vunpack.c.0.s8 %v4457
    %v4459 = vlaneseq
    %v4460 = vshrl.u32 %v4459, 7
    %v4461 = vsub.s32 %v4458, %v4460
    %v4462 = vrot.slane %v4454, %v4461
    %v4464 = vunpack.c.l.s4 1983009808
    %v4465 = vunpack.c.0.s8 %v4464
    %v4466 = vlaneseq
    %v4467 = vshrl.u32 %v4466, 7
    %v4468 = vsub.s32 %v4465, %v4467
    %v4469 = vrot.slane %v4455, %v4468
    %v4470 = vcombine.low %v972, %v994
    %v4471 = vcombine.high %v972, %v994
    %v4473 = vunpack.c.l.s4 1983009808
    %v4474 = vunpack.c.0.s8 %v4473
    %v4475 = vlaneseq
    %v4476 = vshrl.u32 %v4475, 7
    %v4477 = vsub.s32 %v4474, %v4476
    %v4478 = vrot.slane %v4470, %v4477
    %v4480 = vunpack.c.l.s4 1983009808
    %v4481 = vunpack.c.0.s8 %v4480
    %v4482 = vlaneseq
    %v4483 = vshrl.u32 %v4482, 7
    %v4484 = vsub.s32 %v4481, %v4483
    %v4485 = vrot.slane %v4471, %v4484
    %v4486 = vcombine.low %v983, %v1005
    %v4487 = vcombine.high %v983, %v1005
    %v4489 = vunpack.c.l.s4 1983009808
    %v4490 = vunpack.c.0.s8 %v4489
    %v4491 = vlaneseq
    %v4492 = vshrl.u32 %v4491, 7
    %v4493 = vsub.s32 %v4490, %v4492
    %v4494 = vrot.slane %v4486, %v4493
    %v4496 = vunpack.c.l.s4 1983009808
    %v4497 = vunpack.c.0.s8 %v4496
    %v4498 = vlaneseq
    %v4499 = vshrl.u32 %v4498, 7
    %v4500 = vsub.s32 %v4497, %v4499
    %v4501 = vrot.slane %v4487, %v4500
    %v4502 = vcombine.low %v4446, %v4462
    %v4503 = vcombine.high %v4446, %v4462
    %v4505 = vunpack.c.l.s4 1934713408
    %v4506 = vunpack.c.0.s8 %v4505
    %v4507 = vlaneseq
    %v4508 = vshrl.u32 %v4507, 7
    %v4509 = vsub.s32 %v4506, %v4508
    %v4510 = vrot.slane %v4502, %v4509
    %v4512 = vunpack.c.l.s4 1934713408
    %v4513 = vunpack.c.0.s8 %v4512
    %v4514 = vlaneseq
    %v4515 = vshrl.u32 %v4514, 7
    %v4516 = vsub.s32 %v4513, %v4515
    %v4517 = vrot.slane %v4503, %v4516
    %v4518 = vcombine.low %v4453, %v4469
    %v4519 = vcombine.high %v4453, %v4469
    %v4521 = vunpack.c.l.s4 1934713408
    %v4522 = vunpack.c.0.s8 %v4521
    %v4523 = vlaneseq
    %v4524 = vshrl.u32 %v4523, 7
    %v4525 = vsub.s32 %v4522, %v4524
    %v4526 = vrot.slane %v4518, %v4525
    %v4528 = vunpack.c.l.s4 1934713408
    %v4529 = vunpack.c.0.s8 %v4528
    %v4530 = vlaneseq
    %v4531 = vshrl.u32 %v4530, 7
    %v4532 = vsub.s32 %v4529, %v4531
    %v4533 = vrot.slane %v4519, %v4532
    %v4534 = vcombine.low %v4478, %v4494
    %v4535 = vcombine.high %v4478, %v4494
    %v4537 = vunpack.c.l.s4 1934713408
    %v4538 = vunpack.c.0.s8 %v4537
    %v4539 = vlaneseq
    %v4540 = vshrl.u32 %v4539, 7
    %v4541 = vsub.s32 %v4538, %v4540
    %v4542 = vrot.slane %v4534, %v4541
    %v4544 = vunpack.c.l.s4 1934713408
    %v4545 = vunpack.c.0.s8 %v4544
    %v4546 = vlaneseq
    %v4547 = vshrl.u32 %v4546, 7
    %v4548 = vsub.s32 %v4545, %v4547
    %v4549 = vrot.slane %v4535, %v4548
    %v4550 = vcombine.low %v4485, %v4501
    %v4551 = vcombine.high %v4485, %v4501
    %v4553 = vunpack.c.l.s4 1934713408
    %v4554 = vunpack.c.0.s8 %v4553
    %v4555 = vlaneseq
    %v4556 = vshrl.u32 %v4555, 7
    %v4557 = vsub.s32 %v4554, %v4556
    %v4558 = vrot.slane %v4550, %v4557
    %v4560 = vunpack.c.l.s4 1934713408
    %v4561 = vunpack.c.0.s8 %v4560
    %v4562 = vlaneseq
    %v4563 = vshrl.u32 %v4562, 7
    %v4564 = vsub.s32 %v4561, %v4563
    %v4565 = vrot.slane %v4551, %v4564
    %v4566 = vcombine.low %v4510, %v4542
    %v4567 = vcombine.high %v4510, %v4542
    %v4568 = vcombine.low %v4517, %v4549
    %v4569 = vcombine.high %v4517, %v4549
    %v4570 = vcombine.low %v4526, %v4558
    %v4571 = vcombine.high %v4526, %v4558
    %v4572 = vcombine.low %v4533, %v4565
    %v4573 = vcombine.high %v4533, %v4565
    %v4574 = vcombine.low %v1016, %v1038
    %v4575 = vcombine.high %v1016, %v1038
    %v4577 = vunpack.c.l.s4 1983009808
    %v4578 = vunpack.c.0.s8 %v4577
    %v4579 = vlaneseq
    %v4580 = vshrl.u32 %v4579, 7
    %v4581 = vsub.s32 %v4578, %v4580
    %v4582 = vrot.slane %v4574, %v4581
    %v4584 = vunpack.c.l.s4 1983009808
    %v4585 = vunpack.c.0.s8 %v4584
    %v4586 = vlaneseq
    %v4587 = vshrl.u32 %v4586, 7
    %v4588 = vsub.s32 %v4585, %v4587
    %v4589 = vrot.slane %v4575, %v4588
    %v4590 = vcombine.low %v1027, %v1049
    %v4591 = vcombine.high %v1027, %v1049
    %v4593 = vunpack.c.l.s4 1983009808
    %v4594 = vunpack.c.0.s8 %v4593
    %v4595 = vlaneseq
    %v4596 = vshrl.u32 %v4595, 7
    %v4597 = vsub.s32 %v4594, %v4596
    %v4598 = vrot.slane %v4590, %v4597
    %v4600 = vunpack.c.l.s4 1983009808
    %v4601 = vunpack.c.0.s8 %v4600
    %v4602 = vlaneseq
    %v4603 = vshrl.u32 %v4602, 7
    %v4604 = vsub.s32 %v4601, %v4603
    %v4605 = vrot.slane %v4591, %v4604
    %v4606 = vcombine.low %v1060, %v1082
    %v4607 = vcombine.high %v1060, %v1082
    %v4609 = vunpack.c.l.s4 1983009808
    %v4610 = vunpack.c.0.s8 %v4609
    %v4611 = vlaneseq
    %v4612 = vshrl.u32 %v4611, 7
    %v4613 = vsub.s32 %v4610, %v4612
    %v4614 = vrot.slane %v4606, %v4613
    %v4616 = vunpack.c.l.s4 1983009808
    %v4617 = vunpack.c.0.s8 %v4616
    %v4618 = vlaneseq
    %v4619 = vshrl.u32 %v4618, 7
    %v4620 = vsub.s32 %v4617, %v4619
    %v4621 = vrot.slane %v4607, %v4620
    %v4622 = vcombine.low %v1071, %v1093
    %v4623 = vcombine.high %v1071, %v1093
    %v4625 = vunpack.c.l.s4 1983009808
    %v4626 = vunpack.c.0.s8 %v4625
    %v4627 = vlaneseq
    %v4628 = vshrl.u32 %v4627, 7
    %v4629 = vsub.s32 %v4626, %v4628
    %v4630 = vrot.slane %v4622, %v4629
    %v4632 = vunpack.c.l.s4 1983009808
    %v4633 = vunpack.c.0.s8 %v4632
    %v4634 = vlaneseq
    %v4635 = vshrl.u32 %v4634, 7
    %v4636 = vsub.s32 %v4633, %v4635
    %v4637 = vrot.slane %v4623, %v4636
    %v4638 = vcombine.low %v4582, %v4598
    %v4639 = vcombine.high %v4582, %v4598
    %v4641 = vunpack.c.l.s4 1934713408
    %v4642 = vunpack.c.0.s8 %v4641
    %v4643 = vlaneseq
    %v4644 = vshrl.u32 %v4643, 7
    %v4645 = vsub.s32 %v4642, %v4644
    %v4646 = vrot.slane %v4638, %v4645
    %v4648 = vunpack.c.l.s4 1934713408
    %v4649 = vunpack.c.0.s8 %v4648
    %v4650 = vlaneseq
    %v4651 = vshrl.u32 %v4650, 7
    %v4652 = vsub.s32 %v4649, %v4651
    %v4653 = vrot.slane %v4639, %v4652
    %v4654 = vcombine.low %v4589, %v4605
    %v4655 = vcombine.high %v4589, %v4605
    %v4657 = vunpack.c.l.s4 1934713408
    %v4658 = vunpack.c.0.s8 %v4657
    %v4659 = vlaneseq
    %v4660 = vshrl.u32 %v4659, 7
    %v4661 = vsub.s32 %v4658, %v4660
    %v4662 = vrot.slane %v4654, %v4661
    %v4664 = vunpack.c.l.s4 1934713408
    %v4665 = vunpack.c.0.s8 %v4664
    %v4666 = vlaneseq
    %v4667 = vshrl.u32 %v4666, 7
    %v4668 = vsub.s32 %v4665, %v4667
    %v4669 = vrot.slane %v4655, %v4668
    %v4670 = vcombine.low %v4614, %v4630
    %v4671 = vcombine.high %v4614, %v4630
    %v4673 = vunpack.c.l.s4 1934713408
    %v4674 = vunpack.c.0.s8 %v4673
    %v4675 = vlaneseq
    %v4676 = vshrl.u32 %v4675, 7
    %v4677 = vsub.s32 %v4674, %v4676
    %v4678 = vrot.slane %v4670, %v4677
    %v4680 = vunpack.c.l.s4 1934713408
    %v4681 = vunpack.c.0.s8 %v4680
    %v4682 = vlaneseq
    %v4683 = vshrl.u32 %v4682, 7
    %v4684 = vsub.s32 %v4681, %v4683
    %v4685 = vrot.slane %v4671, %v4684
    %v4686 = vcombine.low %v4621, %v4637
    %v4687 = vcombine.high %v4621, %v4637
    %v4689 = vunpack.c.l.s4 1934713408
    %v4690 = vunpack.c.0.s8 %v4689
    %v4691 = vlaneseq
    %v4692 = vshrl.u32 %v4691, 7
    %v4693 = vsub.s32 %v4690, %v4692
    %v4694 = vrot.slane %v4686, %v4693
    %v4696 = vunpack.c.l.s4 1934713408
    %v4697 = vunpack.c.0.s8 %v4696
    %v4698 = vlaneseq
    %v4699 = vshrl.u32 %v4698, 7
    %v4700 = vsub.s32 %v4697, %v4699
    %v4701 = vrot.slane %v4687, %v4700
    %v4702 = vcombine.low %v4646, %v4678
    %v4703 = vcombine.high %v4646, %v4678
    %v4704 = vcombine.low %v4653, %v4685
    %v4705 = vcombine.high %v4653, %v4685
    %v4706 = vcombine.low %v4662, %v4694
    %v4707 = vcombine.high %v4662, %v4694
    %v4708 = vcombine.low %v4669, %v4701
    %v4709 = vcombine.high %v4669, %v4701
    %v4710 = vcombine.low %v1100, %v1122
    %v4711 = vcombine.high %v1100, %v1122
    %v4713 = vunpack.c.l.s4 1983009808
    %v4714 = vunpack.c.0.s8 %v4713
    %v4715 = vlaneseq
    %v4716 = vshrl.u32 %v4715, 7
    %v4717 = vsub.s32 %v4714, %v4716
    %v4718 = vrot.slane %v4710, %v4717
    %v4720 = vunpack.c.l.s4 1983009808
    %v4721 = vunpack.c.0.s8 %v4720
    %v4722 = vlaneseq
    %v4723 = vshrl.u32 %v4722, 7
    %v4724 = vsub.s32 %v4721, %v4723
    %v4725 = vrot.slane %v4711, %v4724
    %v4726 = vcombine.low %v1111, %v1133
    %v4727 = vcombine.high %v1111, %v1133
    %v4729 = vunpack.c.l.s4 1983009808
    %v4730 = vunpack.c.0.s8 %v4729
    %v4731 = vlaneseq
    %v4732 = vshrl.u32 %v4731, 7
    %v4733 = vsub.s32 %v4730, %v4732
    %v4734 = vrot.slane %v4726, %v4733
    %v4736 = vunpack.c.l.s4 1983009808
    %v4737 = vunpack.c.0.s8 %v4736
    %v4738 = vlaneseq
    %v4739 = vshrl.u32 %v4738, 7
    %v4740 = vsub.s32 %v4737, %v4739
    %v4741 = vrot.slane %v4727, %v4740
    %v4742 = vcombine.low %v1144, %v1166
    %v4743 = vcombine.high %v1144, %v1166
    %v4745 = vunpack.c.l.s4 1983009808
    %v4746 = vunpack.c.0.s8 %v4745
    %v4747 = vlaneseq
    %v4748 = vshrl.u32 %v4747, 7
    %v4749 = vsub.s32 %v4746, %v4748
    %v4750 = vrot.slane %v4742, %v4749
    %v4752 = vunpack.c.l.s4 1983009808
    %v4753 = vunpack.c.0.s8 %v4752
    %v4754 = vlaneseq
    %v4755 = vshrl.u32 %v4754, 7
    %v4756 = vsub.s32 %v4753, %v4755
    %v4757 = vrot.slane %v4743, %v4756
    %v4758 = vcombine.low %v1155, %v1177
    %v4759 = vcombine.high %v1155, %v1177
    %v4761 = vunpack.c.l.s4 1983009808
    %v4762 = vunpack.c.0.s8 %v4761
    %v4763 = vlaneseq
    %v4764 = vshrl.u32 %v4763, 7
    %v4765 = vsub.s32 %v4762, %v4764
    %v4766 = vrot.slane %v4758, %v4765
    %v4768 = vunpack.c.l.s4 1983009808
    %v4769 = vunpack.c.0.s8 %v4768
    %v4770 = vlaneseq
    %v4771 = vshrl.u32 %v4770, 7
    %v4772 = vsub.s32 %v4769, %v4771
    %v4773 = vrot.slane %v4759, %v4772
    %v4774 = vcombine.low %v4718, %v4734
    %v4775 = vcombine.high %v4718, %v4734
    %v4777 = vunpack.c.l.s4 1934713408
    %v4778 = vunpack.c.0.s8 %v4777
    %v4779 = vlaneseq
    %v4780 = vshrl.u32 %v4779, 7
    %v4781 = vsub.s32 %v4778, %v4780
    %v4782 = vrot.slane %v4774, %v4781
    %v4784 = vunpack.c.l.s4 1934713408
    %v4785 = vunpack.c.0.s8 %v4784
    %v4786 = vlaneseq
    %v4787 = vshrl.u32 %v4786, 7
    %v4788 = vsub.s32 %v4785, %v4787
    %v4789 = vrot.slane %v4775, %v4788
    %v4790 = vcombine.low %v4725, %v4741
    %v4791 = vcombine.high %v4725, %v4741
    %v4793 = vunpack.c.l.s4 1934713408
    %v4794 = vunpack.c.0.s8 %v4793
    %v4795 = vlaneseq
    %v4796 = vshrl.u32 %v4795, 7
    %v4797 = vsub.s32 %v4794, %v4796
    %v4798 = vrot.slane %v4790, %v4797
    %v4800 = vunpack.c.l.s4 1934713408
    %v4801 = vunpack.c.0.s8 %v4800
    %v4802 = vlaneseq
    %v4803 = vshrl.u32 %v4802, 7
    %v4804 = vsub.s32 %v4801, %v4803
    %v4805 = vrot.slane %v4791, %v4804
    %v4806 = vcombine.low %v4750, %v4766
    %v4807 = vcombine.high %v4750, %v4766
    %v4809 = vunpack.c.l.s4 1934713408
    %v4810 = vunpack.c.0.s8 %v4809
    %v4811 = vlaneseq
    %v4812 = vshrl.u32 %v4811, 7
    %v4813 = vsub.s32 %v4810, %v4812
    %v4814 = vrot.slane %v4806, %v4813
    %v4816 = vunpack.c.l.s4 1934713408
    %v4817 = vunpack.c.0.s8 %v4816
    %v4818 = vlaneseq
    %v4819 = vshrl.u32 %v4818, 7
    %v4820 = vsub.s32 %v4817, %v4819
    %v4821 = vrot.slane %v4807, %v4820
    %v4822 = vcombine.low %v4757, %v4773
    %v4823 = vcombine.high %v4757, %v4773
    %v4825 = vunpack.c.l.s4 1934713408
    %v4826 = vunpack.c.0.s8 %v4825
    %v4827 = vlaneseq
    %v4828 = vshrl.u32 %v4827, 7
    %v4829 = vsub.s32 %v4826, %v4828
    %v4830 = vrot.slane %v4822, %v4829
    %v4832 = vunpack.c.l.s4 1934713408
    %v4833 = vunpack.c.0.s8 %v4832
    %v4834 = vlaneseq
    %v4835 = vshrl.u32 %v4834, 7
    %v4836 = vsub.s32 %v4833, %v4835
    %v4837 = vrot.slane %v4823, %v4836
    %v4838 = vcombine.low %v4782, %v4814
    %v4839 = vcombine.high %v4782, %v4814
    %v4840 = vcombine.low %v4789, %v4821
    %v4841 = vcombine.high %v4789, %v4821
    %v4842 = vcombine.low %v4798, %v4830
    %v4843 = vcombine.high %v4798, %v4830
    %v4844 = vcombine.low %v4805, %v4837
    %v4845 = vcombine.high %v4805, %v4837
    %v4846 = vcombine.low %v1188, %v1210
    %v4847 = vcombine.high %v1188, %v1210
    %v4849 = vunpack.c.l.s4 1983009808
    %v4850 = vunpack.c.0.s8 %v4849
    %v4851 = vlaneseq
    %v4852 = vshrl.u32 %v4851, 7
    %v4853 = vsub.s32 %v4850, %v4852
    %v4854 = vrot.slane %v4846, %v4853
    %v4856 = vunpack.c.l.s4 1983009808
    %v4857 = vunpack.c.0.s8 %v4856
    %v4858 = vlaneseq
    %v4859 = vshrl.u32 %v4858, 7
    %v4860 = vsub.s32 %v4857, %v4859
    %v4861 = vrot.slane %v4847, %v4860
    %v4862 = vcombine.low %v1199, %v1221
    %v4863 = vcombine.high %v1199, %v1221
    %v4865 = vunpack.c.l.s4 1983009808
    %v4866 = vunpack.c.0.s8 %v4865
    %v4867 = vlaneseq
    %v4868 = vshrl.u32 %v4867, 7
    %v4869 = vsub.s32 %v4866, %v4868
    %v4870 = vrot.slane %v4862, %v4869
    %v4872 = vunpack.c.l.s4 1983009808
    %v4873 = vunpack.c.0.s8 %v4872
    %v4874 = vlaneseq
    %v4875 = vshrl.u32 %v4874, 7
    %v4876 = vsub.s32 %v4873, %v4875
    %v4877 = vrot.slane %v4863, %v4876
    %v4878 = vcombine.low %v1232, %v1254
    %v4879 = vcombine.high %v1232, %v1254
    %v4881 = vunpack.c.l.s4 1983009808
    %v4882 = vunpack.c.0.s8 %v4881
    %v4883 = vlaneseq
    %v4884 = vshrl.u32 %v4883, 7
    %v4885 = vsub.s32 %v4882, %v4884
    %v4886 = vrot.slane %v4878, %v4885
    %v4888 = vunpack.c.l.s4 1983009808
    %v4889 = vunpack.c.0.s8 %v4888
    %v4890 = vlaneseq
    %v4891 = vshrl.u32 %v4890, 7
    %v4892 = vsub.s32 %v4889, %v4891
    %v4893 = vrot.slane %v4879, %v4892
    %v4894 = vcombine.low %v1243, %v1265
    %v4895 = vcombine.high %v1243, %v1265
    %v4897 = vunpack.c.l.s4 1983009808
    %v4898 = vunpack.c.0.s8 %v4897
    %v4899 = vlaneseq
    %v4900 = vshrl.u32 %v4899, 7
    %v4901 = vsub.s32 %v4898, %v4900
    %v4902 = vrot.slane %v4894, %v4901
    %v4904 = vunpack.c.l.s4 1983009808
    %v4905 = vunpack.c.0.s8 %v4904
    %v4906 = vlaneseq
    %v4907 = vshrl.u32 %v4906, 7
    %v4908 = vsub.s32 %v4905, %v4907
    %v4909 = vrot.slane %v4895, %v4908
    %v4910 = vcombine.low %v4854, %v4870
    %v4911 = vcombine.high %v4854, %v4870
    %v4913 = vunpack.c.l.s4 1934713408
    %v4914 = vunpack.c.0.s8 %v4913
    %v4915 = vlaneseq
    %v4916 = vshrl.u32 %v4915, 7
    %v4917 = vsub.s32 %v4914, %v4916
    %v4918 = vrot.slane %v4910, %v4917
    %v4920 = vunpack.c.l.s4 1934713408
    %v4921 = vunpack.c.0.s8 %v4920
    %v4922 = vlaneseq
    %v4923 = vshrl.u32 %v4922, 7
    %v4924 = vsub.s32 %v4921, %v4923
    %v4925 = vrot.slane %v4911, %v4924
    %v4926 = vcombine.low %v4861, %v4877
    %v4927 = vcombine.high %v4861, %v4877
    %v4929 = vunpack.c.l.s4 1934713408
    %v4930 = vunpack.c.0.s8 %v4929
    %v4931 = vlaneseq
    %v4932 = vshrl.u32 %v4931, 7
    %v4933 = vsub.s32 %v4930, %v4932
    %v4934 = vrot.slane %v4926, %v4933
    %v4936 = vunpack.c.l.s4 1934713408
    %v4937 = vunpack.c.0.s8 %v4936
    %v4938 = vlaneseq
    %v4939 = vshrl.u32 %v4938, 7
    %v4940 = vsub.s32 %v4937, %v4939
    %v4941 = vrot.slane %v4927, %v4940
    %v4942 = vcombine.low %v4886, %v4902
    %v4943 = vcombine.high %v4886, %v4902
    %v4945 = vunpack.c.l.s4 1934713408
    %v4946 = vunpack.c.0.s8 %v4945
    %v4947 = vlaneseq
    %v4948 = vshrl.u32 %v4947, 7
    %v4949 = vsub.s32 %v4946, %v4948
    %v4950 = vrot.slane %v4942, %v4949
    %v4952 = vunpack.c.l.s4 1934713408
    %v4953 = vunpack.c.0.s8 %v4952
    %v4954 = vlaneseq
    %v4955 = vshrl.u32 %v4954, 7
    %v4956 = vsub.s32 %v4953, %v4955
    %v4957 = vrot.slane %v4943, %v4956
    %v4958 = vcombine.low %v4893, %v4909
    %v4959 = vcombine.high %v4893, %v4909
    %v4961 = vunpack.c.l.s4 1934713408
    %v4962 = vunpack.c.0.s8 %v4961
    %v4963 = vlaneseq
    %v4964 = vshrl.u32 %v4963, 7
    %v4965 = vsub.s32 %v4962, %v4964
    %v4966 = vrot.slane %v4958, %v4965
    %v4968 = vunpack.c.l.s4 1934713408
    %v4969 = vunpack.c.0.s8 %v4968
    %v4970 = vlaneseq
    %v4971 = vshrl.u32 %v4970, 7
    %v4972 = vsub.s32 %v4969, %v4971
    %v4973 = vrot.slane %v4959, %v4972
    %v4974 = vcombine.low %v4918, %v4950
    %v4975 = vcombine.high %v4918, %v4950
    %v4976 = vcombine.low %v4925, %v4957
    %v4977 = vcombine.high %v4925, %v4957
    %v4978 = vcombine.low %v4934, %v4966
    %v4979 = vcombine.high %v4934, %v4966
    %v4980 = vcombine.low %v4941, %v4973
    %v4981 = vcombine.high %v4941, %v4973
    %v4982 = vcombine.low %v1104, %v1126
    %v4983 = vcombine.high %v1104, %v1126
    %v4985 = vunpack.c.l.s4 1983009808
    %v4986 = vunpack.c.0.s8 %v4985
    %v4987 = vlaneseq
    %v4988 = vshrl.u32 %v4987, 7
    %v4989 = vsub.s32 %v4986, %v4988
    %v4990 = vrot.slane %v4982, %v4989
    %v4992 = vunpack.c.l.s4 1983009808
    %v4993 = vunpack.c.0.s8 %v4992
    %v4994 = vlaneseq
    %v4995 = vshrl.u32 %v4994, 7
    %v4996 = vsub.s32 %v4993, %v4995
    %v4997 = vrot.slane %v4983, %v4996
    %v4998 = vcombine.low %v1115, %v1137
    %v4999 = vcombine.high %v1115, %v1137
    %v5001 = vunpack.c.l.s4 1983009808
    %v5002 = vunpack.c.0.s8 %v5001
    %v5003 = vlaneseq
    %v5004 = vshrl.u32 %v5003, 7
    %v5005 = vsub.s32 %v5002, %v5004
    %v5006 = vrot.slane %v4998, %v5005
    %v5008 = vunpack.c.l.s4 1983009808
    %v5009 = vunpack.c.0.s8 %v5008
    %v5010 = vlaneseq
    %v5011 = vshrl.u32 %v5010, 7
    %v5012 = vsub.s32 %v5009, %v5011
    %v5013 = vrot.slane %v4999, %v5012
    %v5014 = vcombine.low %v1148, %v1170
    %v5015 = vcombine.high %v1148, %v1170
    %v5017 = vunpack.c.l.s4 1983009808
    %v5018 = vunpack.c.0.s8 %v5017
    %v5019 = vlaneseq
    %v5020 = vshrl.u32 %v5019, 7
    %v5021 = vsub.s32 %v5018, %v5020
    %v5022 = vrot.slane %v5014, %v5021
    %v5024 = vunpack.c.l.s4 1983009808
    %v5025 = vunpack.c.0.s8 %v5024
    %v5026 = vlaneseq
    %v5027 = vshrl.u32 %v5026, 7
    %v5028 = vsub.s32 %v5025, %v5027
    %v5029 = vrot.slane %v5015, %v5028
    %v5030 = vcombine.low %v1159, %v1181
    %v5031 = vcombine.high %v1159, %v1181
    %v5033 = vunpack.c.l.s4 1983009808
    %v5034 = vunpack.c.0.s8 %v5033
    %v5035 = vlaneseq
    %v5036 = vshrl.u32 %v5035, 7
    %v5037 = vsub.s32 %v5034, %v5036
    %v5038 = vrot.slane %v5030, %v5037
    %v5040 = vunpack.c.l.s4 1983009808
    %v5041 = vunpack.c.0.s8 %v5040
    %v5042 = vlaneseq
    %v5043 = vshrl.u32 %v5042, 7
    %v5044 = vsub.s32 %v5041, %v5043
    %v5045 = vrot.slane %v5031, %v5044
    %v5046 = vcombine.low %v4990, %v5006
    %v5047 = vcombine.high %v4990, %v5006
    %v5049 = vunpack.c.l.s4 1934713408
    %v5050 = vunpack.c.0.s8 %v5049
    %v5051 = vlaneseq
    %v5052 = vshrl.u32 %v5051, 7
    %v5053 = vsub.s32 %v5050, %v5052
    %v5054 = vrot.slane %v5046, %v5053
    %v5056 = vunpack.c.l.s4 1934713408
    %v5057 = vunpack.c.0.s8 %v5056
    %v5058 = vlaneseq
    %v5059 = vshrl.u32 %v5058, 7
    %v5060 = vsub.s32 %v5057, %v5059
    %v5061 = vrot.slane %v5047, %v5060
    %v5062 = vcombine.low %v4997, %v5013
    %v5063 = vcombine.high %v4997, %v5013
    %v5065 = vunpack.c.l.s4 1934713408
    %v5066 = vunpack.c.0.s8 %v5065
    %v5067 = vlaneseq
    %v5068 = vshrl.u32 %v5067, 7
    %v5069 = vsub.s32 %v5066, %v5068
    %v5070 = vrot.slane %v5062, %v5069
    %v5072 = vunpack.c.l.s4 1934713408
    %v5073 = vunpack.c.0.s8 %v5072
    %v5074 = vlaneseq
    %v5075 = vshrl.u32 %v5074, 7
    %v5076 = vsub.s32 %v5073, %v5075
    %v5077 = vrot.slane %v5063, %v5076
    %v5078 = vcombine.low %v5022, %v5038
    %v5079 = vcombine.high %v5022, %v5038
    %v5081 = vunpack.c.l.s4 1934713408
    %v5082 = vunpack.c.0.s8 %v5081
    %v5083 = vlaneseq
    %v5084 = vshrl.u32 %v5083, 7
    %v5085 = vsub.s32 %v5082, %v5084
    %v5086 = vrot.slane %v5078, %v5085
    %v5088 = vunpack.c.l.s4 1934713408
    %v5089 = vunpack.c.0.s8 %v5088
    %v5090 = vlaneseq
    %v5091 = vshrl.u32 %v5090, 7
    %v5092 = vsub.s32 %v5089, %v5091
    %v5093 = vrot.slane %v5079, %v5092
    %v5094 = vcombine.low %v5029, %v5045
    %v5095 = vcombine.high %v5029, %v5045
    %v5097 = vunpack.c.l.s4 1934713408
    %v5098 = vunpack.c.0.s8 %v5097
    %v5099 = vlaneseq
    %v5100 = vshrl.u32 %v5099, 7
    %v5101 = vsub.s32 %v5098, %v5100
    %v5102 = vrot.slane %v5094, %v5101
    %v5104 = vunpack.c.l.s4 1934713408
    %v5105 = vunpack.c.0.s8 %v5104
    %v5106 = vlaneseq
    %v5107 = vshrl.u32 %v5106, 7
    %v5108 = vsub.s32 %v5105, %v5107
    %v5109 = vrot.slane %v5095, %v5108
    %v5110 = vcombine.low %v5054, %v5086
    %v5111 = vcombine.high %v5054, %v5086
    %v5112 = vcombine.low %v5061, %v5093
    %v5113 = vcombine.high %v5061, %v5093
    %v5114 = vcombine.low %v5070, %v5102
    %v5115 = vcombine.high %v5070, %v5102
    %v5116 = vcombine.low %v5077, %v5109
    %v5117 = vcombine.high %v5077, %v5109
    %v5118 = vcombine.low %v1192, %v1214
    %v5119 = vcombine.high %v1192, %v1214
    %v5121 = vunpack.c.l.s4 1983009808
    %v5122 = vunpack.c.0.s8 %v5121
    %v5123 = vlaneseq
    %v5124 = vshrl.u32 %v5123, 7
    %v5125 = vsub.s32 %v5122, %v5124
    %v5126 = vrot.slane %v5118, %v5125
    %v5128 = vunpack.c.l.s4 1983009808
    %v5129 = vunpack.c.0.s8 %v5128
    %v5130 = vlaneseq
    %v5131 = vshrl.u32 %v5130, 7
    %v5132 = vsub.s32 %v5129, %v5131
    %v5133 = vrot.slane %v5119, %v5132
    %v5134 = vcombine.low %v1203, %v1225
    %v5135 = vcombine.high %v1203, %v1225
    %v5137 = vunpack.c.l.s4 1983009808
    %v5138 = vunpack.c.0.s8 %v5137
    %v5139 = vlaneseq
    %v5140 = vshrl.u32 %v5139, 7
    %v5141 = vsub.s32 %v5138, %v5140
    %v5142 = vrot.slane %v5134, %v5141
    %v5144 = vunpack.c.l.s4 1983009808
    %v5145 = vunpack.c.0.s8 %v5144
    %v5146 = vlaneseq
    %v5147 = vshrl.u32 %v5146, 7
    %v5148 = vsub.s32 %v5145, %v5147
    %v5149 = vrot.slane %v5135, %v5148
    %v5150 = vcombine.low %v1236, %v1258
    %v5151 = vcombine.high %v1236, %v1258
    %v5153 = vunpack.c.l.s4 1983009808
    %v5154 = vunpack.c.0.s8 %v5153
    %v5155 = vlaneseq
    %v5156 = vshrl.u32 %v5155, 7
    %v5157 = vsub.s32 %v5154, %v5156
    %v5158 = vrot.slane %v5150, %v5157
    %v5160 = vunpack.c.l.s4 1983009808
    %v5161 = vunpack.c.0.s8 %v5160
    %v5162 = vlaneseq
    %v5163 = vshrl.u32 %v5162, 7
    %v5164 = vsub.s32 %v5161, %v5163
    %v5165 = vrot.slane %v5151, %v5164
    %v5166 = vcombine.low %v1247, %v1269
    %v5167 = vcombine.high %v1247, %v1269
    %v5169 = vunpack.c.l.s4 1983009808
    %v5170 = vunpack.c.0.s8 %v5169
    %v5171 = vlaneseq
    %v5172 = vshrl.u32 %v5171, 7
    %v5173 = vsub.s32 %v5170, %v5172
    %v5174 = vrot.slane %v5166, %v5173
    %v5176 = vunpack.c.l.s4 1983009808
    %v5177 = vunpack.c.0.s8 %v5176
    %v5178 = vlaneseq
    %v5179 = vshrl.u32 %v5178, 7
    %v5180 = vsub.s32 %v5177, %v5179
    %v5181 = vrot.slane %v5167, %v5180
    %v5182 = vcombine.low %v5126, %v5142
    %v5183 = vcombine.high %v5126, %v5142
    %v5185 = vunpack.c.l.s4 1934713408
    %v5186 = vunpack.c.0.s8 %v5185
    %v5187 = vlaneseq
    %v5188 = vshrl.u32 %v5187, 7
    %v5189 = vsub.s32 %v5186, %v5188
    %v5190 = vrot.slane %v5182, %v5189
    %v5192 = vunpack.c.l.s4 1934713408
    %v5193 = vunpack.c.0.s8 %v5192
    %v5194 = vlaneseq
    %v5195 = vshrl.u32 %v5194, 7
    %v5196 = vsub.s32 %v5193, %v5195
    %v5197 = vrot.slane %v5183, %v5196
    %v5198 = vcombine.low %v5133, %v5149
    %v5199 = vcombine.high %v5133, %v5149
    %v5201 = vunpack.c.l.s4 1934713408
    %v5202 = vunpack.c.0.s8 %v5201
    %v5203 = vlaneseq
    %v5204 = vshrl.u32 %v5203, 7
    %v5205 = vsub.s32 %v5202, %v5204
    %v5206 = vrot.slane %v5198, %v5205
    %v5208 = vunpack.c.l.s4 1934713408
    %v5209 = vunpack.c.0.s8 %v5208
    %v5210 = vlaneseq
    %v5211 = vshrl.u32 %v5210, 7
    %v5212 = vsub.s32 %v5209, %v5211
    %v5213 = vrot.slane %v5199, %v5212
    %v5214 = vcombine.low %v5158, %v5174
    %v5215 = vcombine.high %v5158, %v5174
    %v5217 = vunpack.c.l.s4 1934713408
    %v5218 = vunpack.c.0.s8 %v5217
    %v5219 = vlaneseq
    %v5220 = vshrl.u32 %v5219, 7
    %v5221 = vsub.s32 %v5218, %v5220
    %v5222 = vrot.slane %v5214, %v5221
    %v5224 = vunpack.c.l.s4 1934713408
    %v5225 = vunpack.c.0.s8 %v5224
    %v5226 = vlaneseq
    %v5227 = vshrl.u32 %v5226, 7
    %v5228 = vsub.s32 %v5225, %v5227
    %v5229 = vrot.slane %v5215, %v5228
    %v5230 = vcombine.low %v5165, %v5181
    %v5231 = vcombine.high %v5165, %v5181
    %v5233 = vunpack.c.l.s4 1934713408
    %v5234 = vunpack.c.0.s8 %v5233
    %v5235 = vlaneseq
    %v5236 = vshrl.u32 %v5235, 7
    %v5237 = vsub.s32 %v5234, %v5236
    %v5238 = vrot.slane %v5230, %v5237
    %v5240 = vunpack.c.l.s4 1934713408
    %v5241 = vunpack.c.0.s8 %v5240
    %v5242 = vlaneseq
    %v5243 = vshrl.u32 %v5242, 7
    %v5244 = vsub.s32 %v5241, %v5243
    %v5245 = vrot.slane %v5231, %v5244
    %v5246 = vcombine.low %v5190, %v5222
    %v5247 = vcombine.high %v5190, %v5222
    %v5248 = vcombine.low %v5197, %v5229
    %v5249 = vcombine.high %v5197, %v5229
    %v5250 = vcombine.low %v5206, %v5238
    %v5251 = vcombine.high %v5206, %v5238
    %v5252 = vcombine.low %v5213, %v5245
    %v5253 = vcombine.high %v5213, %v5245
    %v5254 = vcombine.low %v1276, %v1298
    %v5255 = vcombine.high %v1276, %v1298
    %v5257 = vunpack.c.l.s4 1983009808
    %v5258 = vunpack.c.0.s8 %v5257
    %v5259 = vlaneseq
    %v5260 = vshrl.u32 %v5259, 7
    %v5261 = vsub.s32 %v5258, %v5260
    %v5262 = vrot.slane %v5254, %v5261
    %v5264 = vunpack.c.l.s4 1983009808
    %v5265 = vunpack.c.0.s8 %v5264
    %v5266 = vlaneseq
    %v5267 = vshrl.u32 %v5266, 7
    %v5268 = vsub.s32 %v5265, %v5267
    %v5269 = vrot.slane %v5255, %v5268
    %v5270 = vcombine.low %v1287, %v1309
    %v5271 = vcombine.high %v1287, %v1309
    %v5273 = vunpack.c.l.s4 1983009808
    %v5274 = vunpack.c.0.s8 %v5273
    %v5275 = vlaneseq
    %v5276 = vshrl.u32 %v5275, 7
    %v5277 = vsub.s32 %v5274, %v5276
    %v5278 = vrot.slane %v5270, %v5277
    %v5280 = vunpack.c.l.s4 1983009808
    %v5281 = vunpack.c.0.s8 %v5280
    %v5282 = vlaneseq
    %v5283 = vshrl.u32 %v5282, 7
    %v5284 = vsub.s32 %v5281, %v5283
    %v5285 = vrot.slane %v5271, %v5284
    %v5286 = vcombine.low %v1320, %v1342
    %v5287 = vcombine.high %v1320, %v1342
    %v5289 = vunpack.c.l.s4 1983009808
    %v5290 = vunpack.c.0.s8 %v5289
    %v5291 = vlaneseq
    %v5292 = vshrl.u32 %v5291, 7
    %v5293 = vsub.s32 %v5290, %v5292
    %v5294 = vrot.slane %v5286, %v5293
    %v5296 = vunpack.c.l.s4 1983009808
    %v5297 = vunpack.c.0.s8 %v5296
    %v5298 = vlaneseq
    %v5299 = vshrl.u32 %v5298, 7
    %v5300 = vsub.s32 %v5297, %v5299
    %v5301 = vrot.slane %v5287, %v5300
    %v5302 = vcombine.low %v1331, %v1353
    %v5303 = vcombine.high %v1331, %v1353
    %v5305 = vunpack.c.l.s4 1983009808
    %v5306 = vunpack.c.0.s8 %v5305
    %v5307 = vlaneseq
    %v5308 = vshrl.u32 %v5307, 7
    %v5309 = vsub.s32 %v5306, %v5308
    %v5310 = vrot.slane %v5302, %v5309
    %v5312 = vunpack.c.l.s4 1983009808
    %v5313 = vunpack.c.0.s8 %v5312
    %v5314 = vlaneseq
    %v5315 = vshrl.u32 %v5314, 7
    %v5316 = vsub.s32 %v5313, %v5315
    %v5317 = vrot.slane %v5303, %v5316
    %v5318 = vcombine.low %v5262, %v5278
    %v5319 = vcombine.high %v5262, %v5278
    %v5321 = vunpack.c.l.s4 1934713408
    %v5322 = vunpack.c.0.s8 %v5321
    %v5323 = vlaneseq
    %v5324 = vshrl.u32 %v5323, 7
    %v5325 = vsub.s32 %v5322, %v5324
    %v5326 = vrot.slane %v5318, %v5325
    %v5328 = vunpack.c.l.s4 1934713408
    %v5329 = vunpack.c.0.s8 %v5328
    %v5330 = vlaneseq
    %v5331 = vshrl.u32 %v5330, 7
    %v5332 = vsub.s32 %v5329, %v5331
    %v5333 = vrot.slane %v5319, %v5332
    %v5334 = vcombine.low %v5269, %v5285
    %v5335 = vcombine.high %v5269, %v5285
    %v5337 = vunpack.c.l.s4 1934713408
    %v5338 = vunpack.c.0.s8 %v5337
    %v5339 = vlaneseq
    %v5340 = vshrl.u32 %v5339, 7
    %v5341 = vsub.s32 %v5338, %v5340
    %v5342 = vrot.slane %v5334, %v5341
    %v5344 = vunpack.c.l.s4 1934713408
    %v5345 = vunpack.c.0.s8 %v5344
    %v5346 = vlaneseq
    %v5347 = vshrl.u32 %v5346, 7
    %v5348 = vsub.s32 %v5345, %v5347
    %v5349 = vrot.slane %v5335, %v5348
    %v5350 = vcombine.low %v5294, %v5310
    %v5351 = vcombine.high %v5294, %v5310
    %v5353 = vunpack.c.l.s4 1934713408
    %v5354 = vunpack.c.0.s8 %v5353
    %v5355 = vlaneseq
    %v5356 = vshrl.u32 %v5355, 7
    %v5357 = vsub.s32 %v5354, %v5356
    %v5358 = vrot.slane %v5350, %v5357
    %v5360 = vunpack.c.l.s4 1934713408
    %v5361 = vunpack.c.0.s8 %v5360
    %v5362 = vlaneseq
    %v5363 = vshrl.u32 %v5362, 7
    %v5364 = vsub.s32 %v5361, %v5363
    %v5365 = vrot.slane %v5351, %v5364
    %v5366 = vcombine.low %v5301, %v5317
    %v5367 = vcombine.high %v5301, %v5317
    %v5369 = vunpack.c.l.s4 1934713408
    %v5370 = vunpack.c.0.s8 %v5369
    %v5371 = vlaneseq
    %v5372 = vshrl.u32 %v5371, 7
    %v5373 = vsub.s32 %v5370, %v5372
    %v5374 = vrot.slane %v5366, %v5373
    %v5376 = vunpack.c.l.s4 1934713408
    %v5377 = vunpack.c.0.s8 %v5376
    %v5378 = vlaneseq
    %v5379 = vshrl.u32 %v5378, 7
    %v5380 = vsub.s32 %v5377, %v5379
    %v5381 = vrot.slane %v5367, %v5380
    %v5382 = vcombine.low %v5326, %v5358
    %v5383 = vcombine.high %v5326, %v5358
    %v5384 = vcombine.low %v5333, %v5365
    %v5385 = vcombine.high %v5333, %v5365
    %v5386 = vcombine.low %v5342, %v5374
    %v5387 = vcombine.high %v5342, %v5374
    %v5388 = vcombine.low %v5349, %v5381
    %v5389 = vcombine.high %v5349, %v5381
    %v5390 = vcombine.low %v1364, %v1386
    %v5391 = vcombine.high %v1364, %v1386
    %v5393 = vunpack.c.l.s4 1983009808
    %v5394 = vunpack.c.0.s8 %v5393
    %v5395 = vlaneseq
    %v5396 = vshrl.u32 %v5395, 7
    %v5397 = vsub.s32 %v5394, %v5396
    %v5398 = vrot.slane %v5390, %v5397
    %v5400 = vunpack.c.l.s4 1983009808
    %v5401 = vunpack.c.0.s8 %v5400
    %v5402 = vlaneseq
    %v5403 = vshrl.u32 %v5402, 7
    %v5404 = vsub.s32 %v5401, %v5403
    %v5405 = vrot.slane %v5391, %v5404
    %v5406 = vcombine.low %v1375, %v1397
    %v5407 = vcombine.high %v1375, %v1397
    %v5409 = vunpack.c.l.s4 1983009808
    %v5410 = vunpack.c.0.s8 %v5409
    %v5411 = vlaneseq
    %v5412 = vshrl.u32 %v5411, 7
    %v5413 = vsub.s32 %v5410, %v5412
    %v5414 = vrot.slane %v5406, %v5413
    %v5416 = vunpack.c.l.s4 1983009808
    %v5417 = vunpack.c.0.s8 %v5416
    %v5418 = vlaneseq
    %v5419 = vshrl.u32 %v5418, 7
    %v5420 = vsub.s32 %v5417, %v5419
    %v5421 = vrot.slane %v5407, %v5420
    %v5422 = vcombine.low %v1408, %v1430
    %v5423 = vcombine.high %v1408, %v1430
    %v5425 = vunpack.c.l.s4 1983009808
    %v5426 = vunpack.c.0.s8 %v5425
    %v5427 = vlaneseq
    %v5428 = vshrl.u32 %v5427, 7
    %v5429 = vsub.s32 %v5426, %v5428
    %v5430 = vrot.slane %v5422, %v5429
    %v5432 = vunpack.c.l.s4 1983009808
    %v5433 = vunpack.c.0.s8 %v5432
    %v5434 = vlaneseq
    %v5435 = vshrl.u32 %v5434, 7
    %v5436 = vsub.s32 %v5433, %v5435
    %v5437 = vrot.slane %v5423, %v5436
    %v5438 = vcombine.low %v1419, %v1441
    %v5439 = vcombine.high %v1419, %v1441
    %v5441 = vunpack.c.l.s4 1983009808
    %v5442 = vunpack.c.0.s8 %v5441
    %v5443 = vlaneseq
    %v5444 = vshrl.u32 %v5443, 7
    %v5445 = vsub.s32 %v5442, %v5444
    %v5446 = vrot.slane %v5438, %v5445
    %v5448 = vunpack.c.l.s4 1983009808
    %v5449 = vunpack.c.0.s8 %v5448
    %v5450 = vlaneseq
    %v5451 = vshrl.u32 %v5450, 7
    %v5452 = vsub.s32 %v5449, %v5451
    %v5453 = vrot.slane %v5439, %v5452
    %v5454 = vcombine.low %v5398, %v5414
    %v5455 = vcombine.high %v5398, %v5414
    %v5457 = vunpack.c.l.s4 1934713408
    %v5458 = vunpack.c.0.s8 %v5457
    %v5459 = vlaneseq
    %v5460 = vshrl.u32 %v5459, 7
    %v5461 = vsub.s32 %v5458, %v5460
    %v5462 = vrot.slane %v5454, %v5461
    %v5464 = vunpack.c.l.s4 1934713408
    %v5465 = vunpack.c.0.s8 %v5464
    %v5466 = vlaneseq
    %v5467 = vshrl.u32 %v5466, 7
    %v5468 = vsub.s32 %v5465, %v5467
    %v5469 = vrot.slane %v5455, %v5468
    %v5470 = vcombine.low %v5405, %v5421
    %v5471 = vcombine.high %v5405, %v5421
    %v5473 = vunpack.c.l.s4 1934713408
    %v5474 = vunpack.c.0.s8 %v5473
    %v5475 = vlaneseq
    %v5476 = vshrl.u32 %v5475, 7
    %v5477 = vsub.s32 %v5474, %v5476
    %v5478 = vrot.slane %v5470, %v5477
    %v5480 = vunpack.c.l.s4 1934713408
    %v5481 = vunpack.c.0.s8 %v5480
    %v5482 = vlaneseq
    %v5483 = vshrl.u32 %v5482, 7
    %v5484 = vsub.s32 %v5481, %v5483
    %v5485 = vrot.slane %v5471, %v5484
    %v5486 = vcombine.low %v5430, %v5446
    %v5487 = vcombine.high %v5430, %v5446
    %v5489 = vunpack.c.l.s4 1934713408
    %v5490 = vunpack.c.0.s8 %v5489
    %v5491 = vlaneseq
    %v5492 = vshrl.u32 %v5491, 7
    %v5493 = vsub.s32 %v5490, %v5492
    %v5494 = vrot.slane %v5486, %v5493
    %v5496 = vunpack.c.l.s4 1934713408
    %v5497 = vunpack.c.0.s8 %v5496
    %v5498 = vlaneseq
    %v5499 = vshrl.u32 %v5498, 7
    %v5500 = vsub.s32 %v5497, %v5499
    %v5501 = vrot.slane %v5487, %v5500
    %v5502 = vcombine.low %v5437, %v5453
    %v5503 = vcombine.high %v5437, %v5453
    %v5505 = vunpack.c.l.s4 1934713408
    %v5506 = vunpack.c.0.s8 %v5505
    %v5507 = vlaneseq
    %v5508 = vshrl.u32 %v5507, 7
    %v5509 = vsub.s32 %v5506, %v5508
    %v5510 = vrot.slane %v5502, %v5509
    %v5512 = vunpack.c.l.s4 1934713408
    %v5513 = vunpack.c.0.s8 %v5512
    %v5514 = vlaneseq
    %v5515 = vshrl.u32 %v5514, 7
    %v5516 = vsub.s32 %v5513, %v5515
    %v5517 = vrot.slane %v5503, %v5516
    %v5518 = vcombine.low %v5462, %v5494
    %v5519 = vcombine.high %v5462, %v5494
    %v5520 = vcombine.low %v5469, %v5501
    %v5521 = vcombine.high %v5469, %v5501
    %v5522 = vcombine.low %v5478, %v5510
    %v5523 = vcombine.high %v5478, %v5510
    %v5524 = vcombine.low %v5485, %v5517
    %v5525 = vcombine.high %v5485, %v5517
    %v5526 = vcombine.low %v1280, %v1302
    %v5527 = vcombine.high %v1280, %v1302
    %v5529 = vunpack.c.l.s4 1983009808
    %v5530 = vunpack.c.0.s8 %v5529
    %v5531 = vlaneseq
    %v5532 = vshrl.u32 %v5531, 7
    %v5533 = vsub.s32 %v5530, %v5532
    %v5534 = vrot.slane %v5526, %v5533
    %v5536 = vunpack.c.l.s4 1983009808
    %v5537 = vunpack.c.0.s8 %v5536
    %v5538 = vlaneseq
    %v5539 = vshrl.u32 %v5538, 7
    %v5540 = vsub.s32 %v5537, %v5539
    %v5541 = vrot.slane %v5527, %v5540
    %v5542 = vcombine.low %v1291, %v1313
    %v5543 = vcombine.high %v1291, %v1313
    %v5545 = vunpack.c.l.s4 1983009808
    %v5546 = vunpack.c.0.s8 %v5545
    %v5547 = vlaneseq
    %v5548 = vshrl.u32 %v5547, 7
    %v5549 = vsub.s32 %v5546, %v5548
    %v5550 = vrot.slane %v5542, %v5549
    %v5552 = vunpack.c.l.s4 1983009808
    %v5553 = vunpack.c.0.s8 %v5552
    %v5554 = vlaneseq
    %v5555 = vshrl.u32 %v5554, 7
    %v5556 = vsub.s32 %v5553, %v5555
    %v5557 = vrot.slane %v5543, %v5556
    %v5558 = vcombine.low %v1324, %v1346
    %v5559 = vcombine.high %v1324, %v1346
    %v5561 = vunpack.c.l.s4 1983009808
    %v5562 = vunpack.c.0.s8 %v5561
    %v5563 = vlaneseq
    %v5564 = vshrl.u32 %v5563, 7
    %v5565 = vsub.s32 %v5562, %v5564
    %v5566 = vrot.slane %v5558, %v5565
    %v5568 = vunpack.c.l.s4 1983009808
    %v5569 = vunpack.c.0.s8 %v5568
    %v5570 = vlaneseq
    %v5571 = vshrl.u32 %v5570, 7
    %v5572 = vsub.s32 %v5569, %v5571
    %v5573 = vrot.slane %v5559, %v5572
    %v5574 = vcombine.low %v1335, %v1357
    %v5575 = vcombine.high %v1335, %v1357
    %v5577 = vunpack.c.l.s4 1983009808
    %v5578 = vunpack.c.0.s8 %v5577
    %v5579 = vlaneseq
    %v5580 = vshrl.u32 %v5579, 7
    %v5581 = vsub.s32 %v5578, %v5580
    %v5582 = vrot.slane %v5574, %v5581
    %v5584 = vunpack.c.l.s4 1983009808
    %v5585 = vunpack.c.0.s8 %v5584
    %v5586 = vlaneseq
    %v5587 = vshrl.u32 %v5586, 7
    %v5588 = vsub.s32 %v5585, %v5587
    %v5589 = vrot.slane %v5575, %v5588
    %v5590 = vcombine.low %v5534, %v5550
    %v5591 = vcombine.high %v5534, %v5550
    %v5593 = vunpack.c.l.s4 1934713408
    %v5594 = vunpack.c.0.s8 %v5593
    %v5595 = vlaneseq
    %v5596 = vshrl.u32 %v5595, 7
    %v5597 = vsub.s32 %v5594, %v5596
    %v5598 = vrot.slane %v5590, %v5597
    %v5600 = vunpack.c.l.s4 1934713408
    %v5601 = vunpack.c.0.s8 %v5600
    %v5602 = vlaneseq
    %v5603 = vshrl.u32 %v5602, 7
    %v5604 = vsub.s32 %v5601, %v5603
    %v5605 = vrot.slane %v5591, %v5604
    %v5606 = vcombine.low %v5541, %v5557
    %v5607 = vcombine.high %v5541, %v5557
    %v5609 = vunpack.c.l.s4 1934713408
    %v5610 = vunpack.c.0.s8 %v5609
    %v5611 = vlaneseq
    %v5612 = vshrl.u32 %v5611, 7
    %v5613 = vsub.s32 %v5610, %v5612
    %v5614 = vrot.slane %v5606, %v5613
    %v5616 = vunpack.c.l.s4 1934713408
    %v5617 = vunpack.c.0.s8 %v5616
    %v5618 = vlaneseq
    %v5619 = vshrl.u32 %v5618, 7
    %v5620 = vsub.s32 %v5617, %v5619
    %v5621 = vrot.slane %v5607, %v5620
    %v5622 = vcombine.low %v5566, %v5582
    %v5623 = vcombine.high %v5566, %v5582
    %v5625 = vunpack.c.l.s4 1934713408
    %v5626 = vunpack.c.0.s8 %v5625
    %v5627 = vlaneseq
    %v5628 = vshrl.u32 %v5627, 7
    %v5629 = vsub.s32 %v5626, %v5628
    %v5630 = vrot.slane %v5622, %v5629
    %v5632 = vunpack.c.l.s4 1934713408
    %v5633 = vunpack.c.0.s8 %v5632
    %v5634 = vlaneseq
    %v5635 = vshrl.u32 %v5634, 7
    %v5636 = vsub.s32 %v5633, %v5635
    %v5637 = vrot.slane %v5623, %v5636
    %v5638 = vcombine.low %v5573, %v5589
    %v5639 = vcombine.high %v5573, %v5589
    %v5641 = vunpack.c.l.s4 1934713408
    %v5642 = vunpack.c.0.s8 %v5641
    %v5643 = vlaneseq
    %v5644 = vshrl.u32 %v5643, 7
    %v5645 = vsub.s32 %v5642, %v5644
    %v5646 = vrot.slane %v5638, %v5645
    %v5648 = vunpack.c.l.s4 1934713408
    %v5649 = vunpack.c.0.s8 %v5648
    %v5650 = vlaneseq
    %v5651 = vshrl.u32 %v5650, 7
    %v5652 = vsub.s32 %v5649, %v5651
    %v5653 = vrot.slane %v5639, %v5652
    %v5654 = vcombine.low %v5598, %v5630
    %v5655 = vcombine.high %v5598, %v5630
    %v5656 = vcombine.low %v5605, %v5637
    %v5657 = vcombine.high %v5605, %v5637
    %v5658 = vcombine.low %v5614, %v5646
    %v5659 = vcombine.high %v5614, %v5646
    %v5660 = vcombine.low %v5621, %v5653
    %v5661 = vcombine.high %v5621, %v5653
    %v5662 = vcombine.low %v1368, %v1390
    %v5663 = vcombine.high %v1368, %v1390
    %v5665 = vunpack.c.l.s4 1983009808
    %v5666 = vunpack.c.0.s8 %v5665
    %v5667 = vlaneseq
    %v5668 = vshrl.u32 %v5667, 7
    %v5669 = vsub.s32 %v5666, %v5668
    %v5670 = vrot.slane %v5662, %v5669
    %v5672 = vunpack.c.l.s4 1983009808
    %v5673 = vunpack.c.0.s8 %v5672
    %v5674 = vlaneseq
    %v5675 = vshrl.u32 %v5674, 7
    %v5676 = vsub.s32 %v5673, %v5675
    %v5677 = vrot.slane %v5663, %v5676
    %v5678 = vcombine.low %v1379, %v1401
    %v5679 = vcombine.high %v1379, %v1401
    %v5681 = vunpack.c.l.s4 1983009808
    %v5682 = vunpack.c.0.s8 %v5681
    %v5683 = vlaneseq
    %v5684 = vshrl.u32 %v5683, 7
    %v5685 = vsub.s32 %v5682, %v5684
    %v5686 = vrot.slane %v5678, %v5685
    %v5688 = vunpack.c.l.s4 1983009808
    %v5689 = vunpack.c.0.s8 %v5688
    %v5690 = vlaneseq
    %v5691 = vshrl.u32 %v5690, 7
    %v5692 = vsub.s32 %v5689, %v5691
    %v5693 = vrot.slane %v5679, %v5692
    %v5694 = vcombine.low %v1412, %v1434
    %v5695 = vcombine.high %v1412, %v1434
    %v5697 = vunpack.c.l.s4 1983009808
    %v5698 = vunpack.c.0.s8 %v5697
    %v5699 = vlaneseq
    %v5700 = vshrl.u32 %v5699, 7
    %v5701 = vsub.s32 %v5698, %v5700
    %v5702 = vrot.slane %v5694, %v5701
    %v5704 = vunpack.c.l.s4 1983009808
    %v5705 = vunpack.c.0.s8 %v5704
    %v5706 = vlaneseq
    %v5707 = vshrl.u32 %v5706, 7
    %v5708 = vsub.s32 %v5705, %v5707
    %v5709 = vrot.slane %v5695, %v5708
    %v5710 = vcombine.low %v1423, %v1445
    %v5711 = vcombine.high %v1423, %v1445
    %v5713 = vunpack.c.l.s4 1983009808
    %v5714 = vunpack.c.0.s8 %v5713
    %v5715 = vlaneseq
    %v5716 = vshrl.u32 %v5715, 7
    %v5717 = vsub.s32 %v5714, %v5716
    %v5718 = vrot.slane %v5710, %v5717
    %v5720 = vunpack.c.l.s4 1983009808
    %v5721 = vunpack.c.0.s8 %v5720
    %v5722 = vlaneseq
    %v5723 = vshrl.u32 %v5722, 7
    %v5724 = vsub.s32 %v5721, %v5723
    %v5725 = vrot.slane %v5711, %v5724
    %v5726 = vcombine.low %v5670, %v5686
    %v5727 = vcombine.high %v5670, %v5686
    %v5729 = vunpack.c.l.s4 1934713408
    %v5730 = vunpack.c.0.s8 %v5729
    %v5731 = vlaneseq
    %v5732 = vshrl.u32 %v5731, 7
    %v5733 = vsub.s32 %v5730, %v5732
    %v5734 = vrot.slane %v5726, %v5733
    %v5736 = vunpack.c.l.s4 1934713408
    %v5737 = vunpack.c.0.s8 %v5736
    %v5738 = vlaneseq
    %v5739 = vshrl.u32 %v5738, 7
    %v5740 = vsub.s32 %v5737, %v5739
    %v5741 = vrot.slane %v5727, %v5740
    %v5742 = vcombine.low %v5677, %v5693
    %v5743 = vcombine.high %v5677, %v5693
    %v5745 = vunpack.c.l.s4 1934713408
    %v5746 = vunpack.c.0.s8 %v5745
    %v5747 = vlaneseq
    %v5748 = vshrl.u32 %v5747, 7
    %v5749 = vsub.s32 %v5746, %v5748
    %v5750 = vrot.slane %v5742, %v5749
    %v5752 = vunpack.c.l.s4 1934713408
    %v5753 = vunpack.c.0.s8 %v5752
    %v5754 = vlaneseq
    %v5755 = vshrl.u32 %v5754, 7
    %v5756 = vsub.s32 %v5753, %v5755
    %v5757 = vrot.slane %v5743, %v5756
    %v5758 = vcombine.low %v5702, %v5718
    %v5759 = vcombine.high %v5702, %v5718
    %v5761 = vunpack.c.l.s4 1934713408
    %v5762 = vunpack.c.0.s8 %v5761
    %v5763 = vlaneseq
    %v5764 = vshrl.u32 %v5763, 7
    %v5765 = vsub.s32 %v5762, %v5764
    %v5766 = vrot.slane %v5758, %v5765
    %v5768 = vunpack.c.l.s4 1934713408
    %v5769 = vunpack.c.0.s8 %v5768
    %v5770 = vlaneseq
    %v5771 = vshrl.u32 %v5770, 7
    %v5772 = vsub.s32 %v5769, %v5771
    %v5773 = vrot.slane %v5759, %v5772
    %v5774 = vcombine.low %v5709, %v5725
    %v5775 = vcombine.high %v5709, %v5725
    %v5777 = vunpack.c.l.s4 1934713408
    %v5778 = vunpack.c.0.s8 %v5777
    %v5779 = vlaneseq
    %v5780 = vshrl.u32 %v5779, 7
    %v5781 = vsub.s32 %v5778, %v5780
    %v5782 = vrot.slane %v5774, %v5781
    %v5784 = vunpack.c.l.s4 1934713408
    %v5785 = vunpack.c.0.s8 %v5784
    %v5786 = vlaneseq
    %v5787 = vshrl.u32 %v5786, 7
    %v5788 = vsub.s32 %v5785, %v5787
    %v5789 = vrot.slane %v5775, %v5788
    %v5790 = vcombine.low %v5734, %v5766
    %v5791 = vcombine.high %v5734, %v5766
    %v5792 = vcombine.low %v5741, %v5773
    %v5793 = vcombine.high %v5741, %v5773
    %v5794 = vcombine.low %v5750, %v5782
    %v5795 = vcombine.high %v5750, %v5782
    %v5796 = vcombine.low %v5757, %v5789
    %v5797 = vcombine.high %v5757, %v5789
    %5814 = vrot.lane.b32.xlu0 %v1575, 2
    %v5815 = vpop.permute.xlu0 %5814
    %5816 = vrot.lane.b32.xlu0 %v1711, 2
    %v5817 = vpop.permute.xlu0 %5816
    %5818 = vrot.lane.b32.xlu0 %v2119, 2
    %v5819 = vpop.permute.xlu0 %5818
    %5820 = vrot.lane.b32.xlu0 %v2255, 2
    %v5821 = vpop.permute.xlu0 %5820
    %5822 = vrot.lane.b32.xlu0 %v2663, 2
    %v5823 = vpop.permute.xlu0 %5822
    %5824 = vrot.lane.b32.xlu0 %v2799, 2
    %v5825 = vpop.permute.xlu0 %5824
    %5826 = vrot.lane.b32.xlu0 %v3207, 2
    %v5827 = vpop.permute.xlu0 %5826
    %5828 = vrot.lane.b32.xlu0 %v3343, 2
    %v5829 = vpop.permute.xlu0 %5828
    %5830 = vrot.lane.b32.xlu0 %v3751, 2
    %v5831 = vpop.permute.xlu0 %5830
    %5832 = vrot.lane.b32.xlu0 %v3887, 2
    %v5833 = vpop.permute.xlu0 %5832
    %5834 = vrot.lane.b32.xlu0 %v4295, 2
    %v5835 = vpop.permute.xlu0 %5834
    %5836 = vrot.lane.b32.xlu0 %v4431, 2
    %v5837 = vpop.permute.xlu0 %5836
    %5838 = vrot.lane.b32.xlu0 %v4839, 2
    %v5839 = vpop.permute.xlu0 %5838
    %5840 = vrot.lane.b32.xlu0 %v4975, 2
    %v5841 = vpop.permute.xlu0 %5840
    %5842 = vrot.lane.b32.xlu0 %v5383, 2
    %v5843 = vpop.permute.xlu0 %5842
    %5844 = vrot.lane.b32.xlu0 %v5519, 2
    %v5845 = vpop.permute.xlu0 %5844
    %5878 = vrot.lane.b32.xlu0 %v1576, 4
    %v5879 = vpop.permute.xlu0 %5878
    %5880 = vrot.lane.b32.xlu0 %v1712, 4
    %v5881 = vpop.permute.xlu0 %5880
    %5882 = vrot.lane.b32.xlu0 %v2120, 4
    %v5883 = vpop.permute.xlu0 %5882
    %5884 = vrot.lane.b32.xlu0 %v2256, 4
    %v5885 = vpop.permute.xlu0 %5884
    %5886 = vrot.lane.b32.xlu0 %v2664, 4
    %v5887 = vpop.permute.xlu0 %5886
    %5888 = vrot.lane.b32.xlu0 %v2800, 4
    %v5889 = vpop.permute.xlu0 %5888
    %5890 = vrot.lane.b32.xlu0 %v3208, 4
    %v5891 = vpop.permute.xlu0 %5890
    %5892 = vrot.lane.b32.xlu0 %v3344, 4
    %v5893 = vpop.permute.xlu0 %5892
    %5894 = vrot.lane.b32.xlu0 %v3752, 4
    %v5895 = vpop.permute.xlu0 %5894
    %5896 = vrot.lane.b32.xlu0 %v3888, 4
    %v5897 = vpop.permute.xlu0 %5896
    %5898 = vrot.lane.b32.xlu0 %v4296, 4
    %v5899 = vpop.permute.xlu0 %5898
    %5900 = vrot.lane.b32.xlu0 %v4432, 4
    %v5901 = vpop.permute.xlu0 %5900
    %5902 = vrot.lane.b32.xlu0 %v4840, 4
    %v5903 = vpop.permute.xlu0 %5902
    %5904 = vrot.lane.b32.xlu0 %v4976, 4
    %v5905 = vpop.permute.xlu0 %5904
    %5906 = vrot.lane.b32.xlu0 %v5384, 4
    %v5907 = vpop.permute.xlu0 %5906
    %5908 = vrot.lane.b32.xlu0 %v5520, 4
    %v5909 = vpop.permute.xlu0 %5908
    %5942 = vrot.lane.b32.xlu0 %v1577, 6
    %v5943 = vpop.permute.xlu0 %5942
    %5944 = vrot.lane.b32.xlu0 %v1713, 6
    %v5945 = vpop.permute.xlu0 %5944
    %5946 = vrot.lane.b32.xlu0 %v2121, 6
    %v5947 = vpop.permute.xlu0 %5946
    %5948 = vrot.lane.b32.xlu0 %v2257, 6
    %v5949 = vpop.permute.xlu0 %5948
    %5950 = vrot.lane.b32.xlu0 %v2665, 6
    %v5951 = vpop.permute.xlu0 %5950
    %5952 = vrot.lane.b32.xlu0 %v2801, 6
    %v5953 = vpop.permute.xlu0 %5952
    %5954 = vrot.lane.b32.xlu0 %v3209, 6
    %v5955 = vpop.permute.xlu0 %5954
    %5956 = vrot.lane.b32.xlu0 %v3345, 6
    %v5957 = vpop.permute.xlu0 %5956
    %5958 = vrot.lane.b32.xlu0 %v3753, 6
    %v5959 = vpop.permute.xlu0 %5958
    %5960 = vrot.lane.b32.xlu0 %v3889, 6
    %v5961 = vpop.permute.xlu0 %5960
    %5962 = vrot.lane.b32.xlu0 %v4297, 6
    %v5963 = vpop.permute.xlu0 %5962
    %5964 = vrot.lane.b32.xlu0 %v4433, 6
    %v5965 = vpop.permute.xlu0 %5964
    %5966 = vrot.lane.b32.xlu0 %v4841, 6
    %v5967 = vpop.permute.xlu0 %5966
    %5968 = vrot.lane.b32.xlu0 %v4977, 6
    %v5969 = vpop.permute.xlu0 %5968
    %5970 = vrot.lane.b32.xlu0 %v5385, 6
    %v5971 = vpop.permute.xlu0 %5970
    %5972 = vrot.lane.b32.xlu0 %v5521, 6
    %v5973 = vpop.permute.xlu0 %5972
    %6006 = vrot.lane.b32.xlu0 %v1578, 8
    %v6007 = vpop.permute.xlu0 %6006
    %6008 = vrot.lane.b32.xlu0 %v1714, 8
    %v6009 = vpop.permute.xlu0 %6008
    %6010 = vrot.lane.b32.xlu0 %v2122, 8
    %v6011 = vpop.permute.xlu0 %6010
    %6012 = vrot.lane.b32.xlu0 %v2258, 8
    %v6013 = vpop.permute.xlu0 %6012
    %6014 = vrot.lane.b32.xlu0 %v2666, 8
    %v6015 = vpop.permute.xlu0 %6014
    %6016 = vrot.lane.b32.xlu0 %v2802, 8
    %v6017 = vpop.permute.xlu0 %6016
    %6018 = vrot.lane.b32.xlu0 %v3210, 8
    %v6019 = vpop.permute.xlu0 %6018
    %6020 = vrot.lane.b32.xlu0 %v3346, 8
    %v6021 = vpop.permute.xlu0 %6020
    %6022 = vrot.lane.b32.xlu0 %v3754, 8
    %v6023 = vpop.permute.xlu0 %6022
    %6024 = vrot.lane.b32.xlu0 %v3890, 8
    %v6025 = vpop.permute.xlu0 %6024
    %6026 = vrot.lane.b32.xlu0 %v4298, 8
    %v6027 = vpop.permute.xlu0 %6026
    %6028 = vrot.lane.b32.xlu0 %v4434, 8
    %v6029 = vpop.permute.xlu0 %6028
    %6030 = vrot.lane.b32.xlu0 %v4842, 8
    %v6031 = vpop.permute.xlu0 %6030
    %6032 = vrot.lane.b32.xlu0 %v4978, 8
    %v6033 = vpop.permute.xlu0 %6032
    %6034 = vrot.lane.b32.xlu0 %v5386, 8
    %v6035 = vpop.permute.xlu0 %6034
    %6036 = vrot.lane.b32.xlu0 %v5522, 8
    %v6037 = vpop.permute.xlu0 %6036
    %6070 = vrot.lane.b32.xlu0 %v1579, 10
    %v6071 = vpop.permute.xlu0 %6070
    %6072 = vrot.lane.b32.xlu0 %v1715, 10
    %v6073 = vpop.permute.xlu0 %6072
    %6074 = vrot.lane.b32.xlu0 %v2123, 10
    %v6075 = vpop.permute.xlu0 %6074
    %6076 = vrot.lane.b32.xlu0 %v2259, 10
    %v6077 = vpop.permute.xlu0 %6076
    %6078 = vrot.lane.b32.xlu0 %v2667, 10
    %v6079 = vpop.permute.xlu0 %6078
    %6080 = vrot.lane.b32.xlu0 %v2803, 10
    %v6081 = vpop.permute.xlu0 %6080
    %6082 = vrot.lane.b32.xlu0 %v3211, 10
    %v6083 = vpop.permute.xlu0 %6082
    %6084 = vrot.lane.b32.xlu0 %v3347, 10
    %v6085 = vpop.permute.xlu0 %6084
    %6086 = vrot.lane.b32.xlu0 %v3755, 10
    %v6087 = vpop.permute.xlu0 %6086
    %6088 = vrot.lane.b32.xlu0 %v3891, 10
    %v6089 = vpop.permute.xlu0 %6088
    %6090 = vrot.lane.b32.xlu0 %v4299, 10
    %v6091 = vpop.permute.xlu0 %6090
    %6092 = vrot.lane.b32.xlu0 %v4435, 10
    %v6093 = vpop.permute.xlu0 %6092
    %6094 = vrot.lane.b32.xlu0 %v4843, 10
    %v6095 = vpop.permute.xlu0 %6094
    %6096 = vrot.lane.b32.xlu0 %v4979, 10
    %v6097 = vpop.permute.xlu0 %6096
    %6098 = vrot.lane.b32.xlu0 %v5387, 10
    %v6099 = vpop.permute.xlu0 %6098
    %6100 = vrot.lane.b32.xlu0 %v5523, 10
    %v6101 = vpop.permute.xlu0 %6100
    %6134 = vrot.lane.b32.xlu0 %v1580, 12
    %v6135 = vpop.permute.xlu0 %6134
    %6136 = vrot.lane.b32.xlu0 %v1716, 12
    %v6137 = vpop.permute.xlu0 %6136
    %6138 = vrot.lane.b32.xlu0 %v2124, 12
    %v6139 = vpop.permute.xlu0 %6138
    %6140 = vrot.lane.b32.xlu0 %v2260, 12
    %v6141 = vpop.permute.xlu0 %6140
    %6142 = vrot.lane.b32.xlu0 %v2668, 12
    %v6143 = vpop.permute.xlu0 %6142
    %6144 = vrot.lane.b32.xlu0 %v2804, 12
    %v6145 = vpop.permute.xlu0 %6144
    %6146 = vrot.lane.b32.xlu0 %v3212, 12
    %v6147 = vpop.permute.xlu0 %6146
    %6148 = vrot.lane.b32.xlu0 %v3348, 12
    %v6149 = vpop.permute.xlu0 %6148
    %6150 = vrot.lane.b32.xlu0 %v3756, 12
    %v6151 = vpop.permute.xlu0 %6150
    %6152 = vrot.lane.b32.xlu0 %v3892, 12
    %v6153 = vpop.permute.xlu0 %6152
    %6154 = vrot.lane.b32.xlu0 %v4300, 12
    %v6155 = vpop.permute.xlu0 %6154
    %6156 = vrot.lane.b32.xlu0 %v4436, 12
    %v6157 = vpop.permute.xlu0 %6156
    %6158 = vrot.lane.b32.xlu0 %v4844, 12
    %v6159 = vpop.permute.xlu0 %6158
    %6160 = vrot.lane.b32.xlu0 %v4980, 12
    %v6161 = vpop.permute.xlu0 %6160
    %6162 = vrot.lane.b32.xlu0 %v5388, 12
    %v6163 = vpop.permute.xlu0 %6162
    %6164 = vrot.lane.b32.xlu0 %v5524, 12
    %v6165 = vpop.permute.xlu0 %6164
    %6198 = vrot.lane.b32.xlu0 %v1581, 14
    %v6199 = vpop.permute.xlu0 %6198
    %6200 = vrot.lane.b32.xlu0 %v1717, 14
    %v6201 = vpop.permute.xlu0 %6200
    %6202 = vrot.lane.b32.xlu0 %v2125, 14
    %v6203 = vpop.permute.xlu0 %6202
    %6204 = vrot.lane.b32.xlu0 %v2261, 14
    %v6205 = vpop.permute.xlu0 %6204
    %6206 = vrot.lane.b32.xlu0 %v2669, 14
    %v6207 = vpop.permute.xlu0 %6206
    %6208 = vrot.lane.b32.xlu0 %v2805, 14
    %v6209 = vpop.permute.xlu0 %6208
    %6210 = vrot.lane.b32.xlu0 %v3213, 14
    %v6211 = vpop.permute.xlu0 %6210
    %6212 = vrot.lane.b32.xlu0 %v3349, 14
    %v6213 = vpop.permute.xlu0 %6212
    %6214 = vrot.lane.b32.xlu0 %v3757, 14
    %v6215 = vpop.permute.xlu0 %6214
    %6216 = vrot.lane.b32.xlu0 %v3893, 14
    %v6217 = vpop.permute.xlu0 %6216
    %6218 = vrot.lane.b32.xlu0 %v4301, 14
    %v6219 = vpop.permute.xlu0 %6218
    %6220 = vrot.lane.b32.xlu0 %v4437, 14
    %v6221 = vpop.permute.xlu0 %6220
    %6222 = vrot.lane.b32.xlu0 %v4845, 14
    %v6223 = vpop.permute.xlu0 %6222
    %6224 = vrot.lane.b32.xlu0 %v4981, 14
    %v6225 = vpop.permute.xlu0 %6224
    %6226 = vrot.lane.b32.xlu0 %v5389, 14
    %v6227 = vpop.permute.xlu0 %6226
    %6228 = vrot.lane.b32.xlu0 %v5525, 14
    %v6229 = vpop.permute.xlu0 %6228
    %6262 = vrot.lane.b32.xlu0 %v1846, 16
    %v6263 = vpop.permute.xlu0 %6262
    %6264 = vrot.lane.b32.xlu0 %v1982, 16
    %v6265 = vpop.permute.xlu0 %6264
    %6266 = vrot.lane.b32.xlu0 %v2390, 16
    %v6267 = vpop.permute.xlu0 %6266
    %6268 = vrot.lane.b32.xlu0 %v2526, 16
    %v6269 = vpop.permute.xlu0 %6268
    %6270 = vrot.lane.b32.xlu0 %v2934, 16
    %v6271 = vpop.permute.xlu0 %6270
    %6272 = vrot.lane.b32.xlu0 %v3070, 16
    %v6273 = vpop.permute.xlu0 %6272
    %6274 = vrot.lane.b32.xlu0 %v3478, 16
    %v6275 = vpop.permute.xlu0 %6274
    %6276 = vrot.lane.b32.xlu0 %v3614, 16
    %v6277 = vpop.permute.xlu0 %6276
    %6278 = vrot.lane.b32.xlu0 %v4022, 16
    %v6279 = vpop.permute.xlu0 %6278
    %6280 = vrot.lane.b32.xlu0 %v4158, 16
    %v6281 = vpop.permute.xlu0 %6280
    %6282 = vrot.lane.b32.xlu0 %v4566, 16
    %v6283 = vpop.permute.xlu0 %6282
    %6284 = vrot.lane.b32.xlu0 %v4702, 16
    %v6285 = vpop.permute.xlu0 %6284
    %6286 = vrot.lane.b32.xlu0 %v5110, 16
    %v6287 = vpop.permute.xlu0 %6286
    %6288 = vrot.lane.b32.xlu0 %v5246, 16
    %v6289 = vpop.permute.xlu0 %6288
    %6290 = vrot.lane.b32.xlu0 %v5654, 16
    %v6291 = vpop.permute.xlu0 %6290
    %6292 = vrot.lane.b32.xlu0 %v5790, 16
    %v6293 = vpop.permute.xlu0 %6292
    %6326 = vrot.lane.b32.xlu0 %v1847, 18
    %v6327 = vpop.permute.xlu0 %6326
    %6328 = vrot.lane.b32.xlu0 %v1983, 18
    %v6329 = vpop.permute.xlu0 %6328
    %6330 = vrot.lane.b32.xlu0 %v2391, 18
    %v6331 = vpop.permute.xlu0 %6330
    %6332 = vrot.lane.b32.xlu0 %v2527, 18
    %v6333 = vpop.permute.xlu0 %6332
    %6334 = vrot.lane.b32.xlu0 %v2935, 18
    %v6335 = vpop.permute.xlu0 %6334
    %6336 = vrot.lane.b32.xlu0 %v3071, 18
    %v6337 = vpop.permute.xlu0 %6336
    %6338 = vrot.lane.b32.xlu0 %v3479, 18
    %v6339 = vpop.permute.xlu0 %6338
    %6340 = vrot.lane.b32.xlu0 %v3615, 18
    %v6341 = vpop.permute.xlu0 %6340
    %6342 = vrot.lane.b32.xlu0 %v4023, 18
    %v6343 = vpop.permute.xlu0 %6342
    %6344 = vrot.lane.b32.xlu0 %v4159, 18
    %v6345 = vpop.permute.xlu0 %6344
    %6346 = vrot.lane.b32.xlu0 %v4567, 18
    %v6347 = vpop.permute.xlu0 %6346
    %6348 = vrot.lane.b32.xlu0 %v4703, 18
    %v6349 = vpop.permute.xlu0 %6348
    %6350 = vrot.lane.b32.xlu0 %v5111, 18
    %v6351 = vpop.permute.xlu0 %6350
    %6352 = vrot.lane.b32.xlu0 %v5247, 18
    %v6353 = vpop.permute.xlu0 %6352
    %6354 = vrot.lane.b32.xlu0 %v5655, 18
    %v6355 = vpop.permute.xlu0 %6354
    %6356 = vrot.lane.b32.xlu0 %v5791, 18
    %v6357 = vpop.permute.xlu0 %6356
    %6390 = vrot.lane.b32.xlu0 %v1848, 20
    %v6391 = vpop.permute.xlu0 %6390
    %6392 = vrot.lane.b32.xlu0 %v1984, 20
    %v6393 = vpop.permute.xlu0 %6392
    %6394 = vrot.lane.b32.xlu0 %v2392, 20
    %v6395 = vpop.permute.xlu0 %6394
    %6396 = vrot.lane.b32.xlu0 %v2528, 20
    %v6397 = vpop.permute.xlu0 %6396
    %6398 = vrot.lane.b32.xlu0 %v2936, 20
    %v6399 = vpop.permute.xlu0 %6398
    %6400 = vrot.lane.b32.xlu0 %v3072, 20
    %v6401 = vpop.permute.xlu0 %6400
    %6402 = vrot.lane.b32.xlu0 %v3480, 20
    %v6403 = vpop.permute.xlu0 %6402
    %6404 = vrot.lane.b32.xlu0 %v3616, 20
    %v6405 = vpop.permute.xlu0 %6404
    %6406 = vrot.lane.b32.xlu0 %v4024, 20
    %v6407 = vpop.permute.xlu0 %6406
    %6408 = vrot.lane.b32.xlu0 %v4160, 20
    %v6409 = vpop.permute.xlu0 %6408
    %6410 = vrot.lane.b32.xlu0 %v4568, 20
    %v6411 = vpop.permute.xlu0 %6410
    %6412 = vrot.lane.b32.xlu0 %v4704, 20
    %v6413 = vpop.permute.xlu0 %6412
    %6414 = vrot.lane.b32.xlu0 %v5112, 20
    %v6415 = vpop.permute.xlu0 %6414
    %6416 = vrot.lane.b32.xlu0 %v5248, 20
    %v6417 = vpop.permute.xlu0 %6416
    %6418 = vrot.lane.b32.xlu0 %v5656, 20
    %v6419 = vpop.permute.xlu0 %6418
    %6420 = vrot.lane.b32.xlu0 %v5792, 20
    %v6421 = vpop.permute.xlu0 %6420
    %6454 = vrot.lane.b32.xlu0 %v1849, 22
    %v6455 = vpop.permute.xlu0 %6454
    %6456 = vrot.lane.b32.xlu0 %v1985, 22
    %v6457 = vpop.permute.xlu0 %6456
    %6458 = vrot.lane.b32.xlu0 %v2393, 22
    %v6459 = vpop.permute.xlu0 %6458
    %6460 = vrot.lane.b32.xlu0 %v2529, 22
    %v6461 = vpop.permute.xlu0 %6460
    %6462 = vrot.lane.b32.xlu0 %v2937, 22
    %v6463 = vpop.permute.xlu0 %6462
    %6464 = vrot.lane.b32.xlu0 %v3073, 22
    %v6465 = vpop.permute.xlu0 %6464
    %6466 = vrot.lane.b32.xlu0 %v3481, 22
    %v6467 = vpop.permute.xlu0 %6466
    %6468 = vrot.lane.b32.xlu0 %v3617, 22
    %v6469 = vpop.permute.xlu0 %6468
    %6470 = vrot.lane.b32.xlu0 %v4025, 22
    %v6471 = vpop.permute.xlu0 %6470
    %6472 = vrot.lane.b32.xlu0 %v4161, 22
    %v6473 = vpop.permute.xlu0 %6472
    %6474 = vrot.lane.b32.xlu0 %v4569, 22
    %v6475 = vpop.permute.xlu0 %6474
    %6476 = vrot.lane.b32.xlu0 %v4705, 22
    %v6477 = vpop.permute.xlu0 %6476
    %6478 = vrot.lane.b32.xlu0 %v5113, 22
    %v6479 = vpop.permute.xlu0 %6478
    %6480 = vrot.lane.b32.xlu0 %v5249, 22
    %v6481 = vpop.permute.xlu0 %6480
    %6482 = vrot.lane.b32.xlu0 %v5657, 22
    %v6483 = vpop.permute.xlu0 %6482
    %6484 = vrot.lane.b32.xlu0 %v5793, 22
    %v6485 = vpop.permute.xlu0 %6484
    %6518 = vrot.lane.b32.xlu0 %v1850, 24
    %v6519 = vpop.permute.xlu0 %6518
    %6520 = vrot.lane.b32.xlu0 %v1986, 24
    %v6521 = vpop.permute.xlu0 %6520
    %6522 = vrot.lane.b32.xlu0 %v2394, 24
    %v6523 = vpop.permute.xlu0 %6522
    %6524 = vrot.lane.b32.xlu0 %v2530, 24
    %v6525 = vpop.permute.xlu0 %6524
    %6526 = vrot.lane.b32.xlu0 %v2938, 24
    %v6527 = vpop.permute.xlu0 %6526
    %6528 = vrot.lane.b32.xlu0 %v3074, 24
    %v6529 = vpop.permute.xlu0 %6528
    %6530 = vrot.lane.b32.xlu0 %v3482, 24
    %v6531 = vpop.permute.xlu0 %6530
    %6532 = vrot.lane.b32.xlu0 %v3618, 24
    %v6533 = vpop.permute.xlu0 %6532
    %6534 = vrot.lane.b32.xlu0 %v4026, 24
    %v6535 = vpop.permute.xlu0 %6534
    %6536 = vrot.lane.b32.xlu0 %v4162, 24
    %v6537 = vpop.permute.xlu0 %6536
    %6538 = vrot.lane.b32.xlu0 %v4570, 24
    %v6539 = vpop.permute.xlu0 %6538
    %6540 = vrot.lane.b32.xlu0 %v4706, 24
    %v6541 = vpop.permute.xlu0 %6540
    %6542 = vrot.lane.b32.xlu0 %v5114, 24
    %v6543 = vpop.permute.xlu0 %6542
    %6544 = vrot.lane.b32.xlu0 %v5250, 24
    %v6545 = vpop.permute.xlu0 %6544
    %6546 = vrot.lane.b32.xlu0 %v5658, 24
    %v6547 = vpop.permute.xlu0 %6546
    %6548 = vrot.lane.b32.xlu0 %v5794, 24
    %v6549 = vpop.permute.xlu0 %6548
    %6582 = vrot.lane.b32.xlu0 %v1851, 26
    %v6583 = vpop.permute.xlu0 %6582
    %6584 = vrot.lane.b32.xlu0 %v1987, 26
    %v6585 = vpop.permute.xlu0 %6584
    %6586 = vrot.lane.b32.xlu0 %v2395, 26
    %v6587 = vpop.permute.xlu0 %6586
    %6588 = vrot.lane.b32.xlu0 %v2531, 26
    %v6589 = vpop.permute.xlu0 %6588
    %6590 = vrot.lane.b32.xlu0 %v2939, 26
    %v6591 = vpop.permute.xlu0 %6590
    %6592 = vrot.lane.b32.xlu0 %v3075, 26
    %v6593 = vpop.permute.xlu0 %6592
    %6594 = vrot.lane.b32.xlu0 %v3483, 26
    %v6595 = vpop.permute.xlu0 %6594
    %6596 = vrot.lane.b32.xlu0 %v3619, 26
    %v6597 = vpop.permute.xlu0 %6596
    %6598 = vrot.lane.b32.xlu0 %v4027, 26
    %v6599 = vpop.permute.xlu0 %6598
    %6600 = vrot.lane.b32.xlu0 %v4163, 26
    %v6601 = vpop.permute.xlu0 %6600
    %6602 = vrot.lane.b32.xlu0 %v4571, 26
    %v6603 = vpop.permute.xlu0 %6602
    %6604 = vrot.lane.b32.xlu0 %v4707, 26
    %v6605 = vpop.permute.xlu0 %6604
    %6606 = vrot.lane.b32.xlu0 %v5115, 26
    %v6607 = vpop.permute.xlu0 %6606
    %6608 = vrot.lane.b32.xlu0 %v5251, 26
    %v6609 = vpop.permute.xlu0 %6608
    %6610 = vrot.lane.b32.xlu0 %v5659, 26
    %v6611 = vpop.permute.xlu0 %6610
    %6612 = vrot.lane.b32.xlu0 %v5795, 26
    %v6613 = vpop.permute.xlu0 %6612
    %6646 = vrot.lane.b32.xlu0 %v1852, 28
    %v6647 = vpop.permute.xlu0 %6646
    %6648 = vrot.lane.b32.xlu0 %v1988, 28
    %v6649 = vpop.permute.xlu0 %6648
    %6650 = vrot.lane.b32.xlu0 %v2396, 28
    %v6651 = vpop.permute.xlu0 %6650
    %6652 = vrot.lane.b32.xlu0 %v2532, 28
    %v6653 = vpop.permute.xlu0 %6652
    %6654 = vrot.lane.b32.xlu0 %v2940, 28
    %v6655 = vpop.permute.xlu0 %6654
    %6656 = vrot.lane.b32.xlu0 %v3076, 28
    %v6657 = vpop.permute.xlu0 %6656
    %6658 = vrot.lane.b32.xlu0 %v3484, 28
    %v6659 = vpop.permute.xlu0 %6658
    %6660 = vrot.lane.b32.xlu0 %v3620, 28
    %v6661 = vpop.permute.xlu0 %6660
    %6662 = vrot.lane.b32.xlu0 %v4028, 28
    %v6663 = vpop.permute.xlu0 %6662
    %6664 = vrot.lane.b32.xlu0 %v4164, 28
    %v6665 = vpop.permute.xlu0 %6664
    %6666 = vrot.lane.b32.xlu0 %v4572, 28
    %v6667 = vpop.permute.xlu0 %6666
    %6668 = vrot.lane.b32.xlu0 %v4708, 28
    %v6669 = vpop.permute.xlu0 %6668
    %6670 = vrot.lane.b32.xlu0 %v5116, 28
    %v6671 = vpop.permute.xlu0 %6670
    %6672 = vrot.lane.b32.xlu0 %v5252, 28
    %v6673 = vpop.permute.xlu0 %6672
    %6674 = vrot.lane.b32.xlu0 %v5660, 28
    %v6675 = vpop.permute.xlu0 %6674
    %6676 = vrot.lane.b32.xlu0 %v5796, 28
    %v6677 = vpop.permute.xlu0 %6676
    %6710 = vrot.lane.b32.xlu0 %v1853, 30
    %v6711 = vpop.permute.xlu0 %6710
    %6712 = vrot.lane.b32.xlu0 %v1989, 30
    %v6713 = vpop.permute.xlu0 %6712
    %6714 = vrot.lane.b32.xlu0 %v2397, 30
    %v6715 = vpop.permute.xlu0 %6714
    %6716 = vrot.lane.b32.xlu0 %v2533, 30
    %v6717 = vpop.permute.xlu0 %6716
    %6718 = vrot.lane.b32.xlu0 %v2941, 30
    %v6719 = vpop.permute.xlu0 %6718
    %6720 = vrot.lane.b32.xlu0 %v3077, 30
    %v6721 = vpop.permute.xlu0 %6720
    %6722 = vrot.lane.b32.xlu0 %v3485, 30
    %v6723 = vpop.permute.xlu0 %6722
    %6724 = vrot.lane.b32.xlu0 %v3621, 30
    %v6725 = vpop.permute.xlu0 %6724
    %6726 = vrot.lane.b32.xlu0 %v4029, 30
    %v6727 = vpop.permute.xlu0 %6726
    %6728 = vrot.lane.b32.xlu0 %v4165, 30
    %v6729 = vpop.permute.xlu0 %6728
    %6730 = vrot.lane.b32.xlu0 %v4573, 30
    %v6731 = vpop.permute.xlu0 %6730
    %6732 = vrot.lane.b32.xlu0 %v4709, 30
    %v6733 = vpop.permute.xlu0 %6732
    %6734 = vrot.lane.b32.xlu0 %v5117, 30
    %v6735 = vpop.permute.xlu0 %6734
    %6736 = vrot.lane.b32.xlu0 %v5253, 30
    %v6737 = vpop.permute.xlu0 %6736
    %6738 = vrot.lane.b32.xlu0 %v5661, 30
    %v6739 = vpop.permute.xlu0 %6738
    %6740 = vrot.lane.b32.xlu0 %v5797, 30
    %v6741 = vpop.permute.xlu0 %6740
    %vm6758 = vcmask 15360
    %v6759 = vsel %vm6758, %v1574, %v5815
    %v6760 = vsel %vm6758, %v1710, %v5817
    %v6761 = vsel %vm6758, %v2118, %v5819
    %v6762 = vsel %vm6758, %v2254, %v5821
    %v6763 = vsel %vm6758, %v2662, %v5823
    %v6764 = vsel %vm6758, %v2798, %v5825
    %v6765 = vsel %vm6758, %v3206, %v5827
    %v6766 = vsel %vm6758, %v3342, %v5829
    %v6767 = vsel %vm6758, %v3750, %v5831
    %v6768 = vsel %vm6758, %v3886, %v5833
    %v6769 = vsel %vm6758, %v4294, %v5835
    %v6770 = vsel %vm6758, %v4430, %v5837
    %v6771 = vsel %vm6758, %v4838, %v5839
    %v6772 = vsel %vm6758, %v4974, %v5841
    %v6773 = vsel %vm6758, %v5382, %v5843
    %v6774 = vsel %vm6758, %v5518, %v5845
    %vm6775 = vcmask 31744
    %v6776 = vsel %vm6775, %v6759, %v5879
    %v6777 = vsel %vm6775, %v6760, %v5881
    %v6778 = vsel %vm6775, %v6761, %v5883
    %v6779 = vsel %vm6775, %v6762, %v5885
    %v6780 = vsel %vm6775, %v6763, %v5887
    %v6781 = vsel %vm6775, %v6764, %v5889
    %v6782 = vsel %vm6775, %v6765, %v5891
    %v6783 = vsel %vm6775, %v6766, %v5893
    %v6784 = vsel %vm6775, %v6767, %v5895
    %v6785 = vsel %vm6775, %v6768, %v5897
    %v6786 = vsel %vm6775, %v6769, %v5899
    %v6787 = vsel %vm6775, %v6770, %v5901
    %v6788 = vsel %vm6775, %v6771, %v5903
    %v6789 = vsel %vm6775, %v6772, %v5905
    %v6790 = vsel %vm6775, %v6773, %v5907
    %v6791 = vsel %vm6775, %v6774, %v5909
    %vm6792 = vcmask 48128
    %v6793 = vsel %vm6792, %v6776, %v5943
    %v6794 = vsel %vm6792, %v6777, %v5945
    %v6795 = vsel %vm6792, %v6778, %v5947
    %v6796 = vsel %vm6792, %v6779, %v5949
    %v6797 = vsel %vm6792, %v6780, %v5951
    %v6798 = vsel %vm6792, %v6781, %v5953
    %v6799 = vsel %vm6792, %v6782, %v5955
    %v6800 = vsel %vm6792, %v6783, %v5957
    %v6801 = vsel %vm6792, %v6784, %v5959
    %v6802 = vsel %vm6792, %v6785, %v5961
    %v6803 = vsel %vm6792, %v6786, %v5963
    %v6804 = vsel %vm6792, %v6787, %v5965
    %v6805 = vsel %vm6792, %v6788, %v5967
    %v6806 = vsel %vm6792, %v6789, %v5969
    %v6807 = vsel %vm6792, %v6790, %v5971
    %v6808 = vsel %vm6792, %v6791, %v5973
    %vm6809 = vcmask 64512
    %v6810 = vsel %vm6809, %v6793, %v6007
    %v6811 = vsel %vm6809, %v6794, %v6009
    %v6812 = vsel %vm6809, %v6795, %v6011
    %v6813 = vsel %vm6809, %v6796, %v6013
    %v6814 = vsel %vm6809, %v6797, %v6015
    %v6815 = vsel %vm6809, %v6798, %v6017
    %v6816 = vsel %vm6809, %v6799, %v6019
    %v6817 = vsel %vm6809, %v6800, %v6021
    %v6818 = vsel %vm6809, %v6801, %v6023
    %v6819 = vsel %vm6809, %v6802, %v6025
    %v6820 = vsel %vm6809, %v6803, %v6027
    %v6821 = vsel %vm6809, %v6804, %v6029
    %v6822 = vsel %vm6809, %v6805, %v6031
    %v6823 = vsel %vm6809, %v6806, %v6033
    %v6824 = vsel %vm6809, %v6807, %v6035
    %v6825 = vsel %vm6809, %v6808, %v6037
    %vm6826 = vcmask 80896
    %v6827 = vsel %vm6826, %v6810, %v6071
    %v6828 = vsel %vm6826, %v6811, %v6073
    %v6829 = vsel %vm6826, %v6812, %v6075
    %v6830 = vsel %vm6826, %v6813, %v6077
    %v6831 = vsel %vm6826, %v6814, %v6079
    %v6832 = vsel %vm6826, %v6815, %v6081
    %v6833 = vsel %vm6826, %v6816, %v6083
    %v6834 = vsel %vm6826, %v6817, %v6085
    %v6835 = vsel %vm6826, %v6818, %v6087
    %v6836 = vsel %vm6826, %v6819, %v6089
    %v6837 = vsel %vm6826, %v6820, %v6091
    %v6838 = vsel %vm6826, %v6821, %v6093
    %v6839 = vsel %vm6826, %v6822, %v6095
    %v6840 = vsel %vm6826, %v6823, %v6097
    %v6841 = vsel %vm6826, %v6824, %v6099
    %v6842 = vsel %vm6826, %v6825, %v6101
    %vm6843 = vcmask 97280
    %v6844 = vsel %vm6843, %v6827, %v6135
    %v6845 = vsel %vm6843, %v6828, %v6137
    %v6846 = vsel %vm6843, %v6829, %v6139
    %v6847 = vsel %vm6843, %v6830, %v6141
    %v6848 = vsel %vm6843, %v6831, %v6143
    %v6849 = vsel %vm6843, %v6832, %v6145
    %v6850 = vsel %vm6843, %v6833, %v6147
    %v6851 = vsel %vm6843, %v6834, %v6149
    %v6852 = vsel %vm6843, %v6835, %v6151
    %v6853 = vsel %vm6843, %v6836, %v6153
    %v6854 = vsel %vm6843, %v6837, %v6155
    %v6855 = vsel %vm6843, %v6838, %v6157
    %v6856 = vsel %vm6843, %v6839, %v6159
    %v6857 = vsel %vm6843, %v6840, %v6161
    %v6858 = vsel %vm6843, %v6841, %v6163
    %v6859 = vsel %vm6843, %v6842, %v6165
    %vm6860 = vcmask 113664
    %v6861 = vsel %vm6860, %v6844, %v6199
    %v6862 = vsel %vm6860, %v6845, %v6201
    %v6863 = vsel %vm6860, %v6846, %v6203
    %v6864 = vsel %vm6860, %v6847, %v6205
    %v6865 = vsel %vm6860, %v6848, %v6207
    %v6866 = vsel %vm6860, %v6849, %v6209
    %v6867 = vsel %vm6860, %v6850, %v6211
    %v6868 = vsel %vm6860, %v6851, %v6213
    %v6869 = vsel %vm6860, %v6852, %v6215
    %v6870 = vsel %vm6860, %v6853, %v6217
    %v6871 = vsel %vm6860, %v6854, %v6219
    %v6872 = vsel %vm6860, %v6855, %v6221
    %v6873 = vsel %vm6860, %v6856, %v6223
    %v6874 = vsel %vm6860, %v6857, %v6225
    %v6875 = vsel %vm6860, %v6858, %v6227
    %v6876 = vsel %vm6860, %v6859, %v6229
    %vm6877 = vcmask 130048
    %v6878 = vsel %vm6877, %v6861, %v6263
    %v6879 = vsel %vm6877, %v6862, %v6265
    %v6880 = vsel %vm6877, %v6863, %v6267
    %v6881 = vsel %vm6877, %v6864, %v6269
    %v6882 = vsel %vm6877, %v6865, %v6271
    %v6883 = vsel %vm6877, %v6866, %v6273
    %v6884 = vsel %vm6877, %v6867, %v6275
    %v6885 = vsel %vm6877, %v6868, %v6277
    %v6886 = vsel %vm6877, %v6869, %v6279
    %v6887 = vsel %vm6877, %v6870, %v6281
    %v6888 = vsel %vm6877, %v6871, %v6283
    %v6889 = vsel %vm6877, %v6872, %v6285
    %v6890 = vsel %vm6877, %v6873, %v6287
    %v6891 = vsel %vm6877, %v6874, %v6289
    %v6892 = vsel %vm6877, %v6875, %v6291
    %v6893 = vsel %vm6877, %v6876, %v6293
    %vm6894 = vcmask 146432
    %v6895 = vsel %vm6894, %v6878, %v6327
    %v6896 = vsel %vm6894, %v6879, %v6329
    %v6897 = vsel %vm6894, %v6880, %v6331
    %v6898 = vsel %vm6894, %v6881, %v6333
    %v6899 = vsel %vm6894, %v6882, %v6335
    %v6900 = vsel %vm6894, %v6883, %v6337
    %v6901 = vsel %vm6894, %v6884, %v6339
    %v6902 = vsel %vm6894, %v6885, %v6341
    %v6903 = vsel %vm6894, %v6886, %v6343
    %v6904 = vsel %vm6894, %v6887, %v6345
    %v6905 = vsel %vm6894, %v6888, %v6347
    %v6906 = vsel %vm6894, %v6889, %v6349
    %v6907 = vsel %vm6894, %v6890, %v6351
    %v6908 = vsel %vm6894, %v6891, %v6353
    %v6909 = vsel %vm6894, %v6892, %v6355
    %v6910 = vsel %vm6894, %v6893, %v6357
    %vm6911 = vcmask 162816
    %v6912 = vsel %vm6911, %v6895, %v6391
    %v6913 = vsel %vm6911, %v6896, %v6393
    %v6914 = vsel %vm6911, %v6897, %v6395
    %v6915 = vsel %vm6911, %v6898, %v6397
    %v6916 = vsel %vm6911, %v6899, %v6399
    %v6917 = vsel %vm6911, %v6900, %v6401
    %v6918 = vsel %vm6911, %v6901, %v6403
    %v6919 = vsel %vm6911, %v6902, %v6405
    %v6920 = vsel %vm6911, %v6903, %v6407
    %v6921 = vsel %vm6911, %v6904, %v6409
    %v6922 = vsel %vm6911, %v6905, %v6411
    %v6923 = vsel %vm6911, %v6906, %v6413
    %v6924 = vsel %vm6911, %v6907, %v6415
    %v6925 = vsel %vm6911, %v6908, %v6417
    %v6926 = vsel %vm6911, %v6909, %v6419
    %v6927 = vsel %vm6911, %v6910, %v6421
    %vm6928 = vcmask 179200
    %v6929 = vsel %vm6928, %v6912, %v6455
    %v6930 = vsel %vm6928, %v6913, %v6457
    %v6931 = vsel %vm6928, %v6914, %v6459
    %v6932 = vsel %vm6928, %v6915, %v6461
    %v6933 = vsel %vm6928, %v6916, %v6463
    %v6934 = vsel %vm6928, %v6917, %v6465
    %v6935 = vsel %vm6928, %v6918, %v6467
    %v6936 = vsel %vm6928, %v6919, %v6469
    %v6937 = vsel %vm6928, %v6920, %v6471
    %v6938 = vsel %vm6928, %v6921, %v6473
    %v6939 = vsel %vm6928, %v6922, %v6475
    %v6940 = vsel %vm6928, %v6923, %v6477
    %v6941 = vsel %vm6928, %v6924, %v6479
    %v6942 = vsel %vm6928, %v6925, %v6481
    %v6943 = vsel %vm6928, %v6926, %v6483
    %v6944 = vsel %vm6928, %v6927, %v6485
    %vm6945 = vcmask 195584
    %v6946 = vsel %vm6945, %v6929, %v6519
    %v6947 = vsel %vm6945, %v6930, %v6521
    %v6948 = vsel %vm6945, %v6931, %v6523
    %v6949 = vsel %vm6945, %v6932, %v6525
    %v6950 = vsel %vm6945, %v6933, %v6527
    %v6951 = vsel %vm6945, %v6934, %v6529
    %v6952 = vsel %vm6945, %v6935, %v6531
    %v6953 = vsel %vm6945, %v6936, %v6533
    %v6954 = vsel %vm6945, %v6937, %v6535
    %v6955 = vsel %vm6945, %v6938, %v6537
    %v6956 = vsel %vm6945, %v6939, %v6539
    %v6957 = vsel %vm6945, %v6940, %v6541
    %v6958 = vsel %vm6945, %v6941, %v6543
    %v6959 = vsel %vm6945, %v6942, %v6545
    %v6960 = vsel %vm6945, %v6943, %v6547
    %v6961 = vsel %vm6945, %v6944, %v6549
    %vm6962 = vcmask 211968
    %v6963 = vsel %vm6962, %v6946, %v6583
    %v6964 = vsel %vm6962, %v6947, %v6585
    %v6965 = vsel %vm6962, %v6948, %v6587
    %v6966 = vsel %vm6962, %v6949, %v6589
    %v6967 = vsel %vm6962, %v6950, %v6591
    %v6968 = vsel %vm6962, %v6951, %v6593
    %v6969 = vsel %vm6962, %v6952, %v6595
    %v6970 = vsel %vm6962, %v6953, %v6597
    %v6971 = vsel %vm6962, %v6954, %v6599
    %v6972 = vsel %vm6962, %v6955, %v6601
    %v6973 = vsel %vm6962, %v6956, %v6603
    %v6974 = vsel %vm6962, %v6957, %v6605
    %v6975 = vsel %vm6962, %v6958, %v6607
    %v6976 = vsel %vm6962, %v6959, %v6609
    %v6977 = vsel %vm6962, %v6960, %v6611
    %v6978 = vsel %vm6962, %v6961, %v6613
    %vm6979 = vcmask 228352
    %v6980 = vsel %vm6979, %v6963, %v6647
    %v6981 = vsel %vm6979, %v6964, %v6649
    %v6982 = vsel %vm6979, %v6965, %v6651
    %v6983 = vsel %vm6979, %v6966, %v6653
    %v6984 = vsel %vm6979, %v6967, %v6655
    %v6985 = vsel %vm6979, %v6968, %v6657
    %v6986 = vsel %vm6979, %v6969, %v6659
    %v6987 = vsel %vm6979, %v6970, %v6661
    %v6988 = vsel %vm6979, %v6971, %v6663
    %v6989 = vsel %vm6979, %v6972, %v6665
    %v6990 = vsel %vm6979, %v6973, %v6667
    %v6991 = vsel %vm6979, %v6974, %v6669
    %v6992 = vsel %vm6979, %v6975, %v6671
    %v6993 = vsel %vm6979, %v6976, %v6673
    %v6994 = vsel %vm6979, %v6977, %v6675
    %v6995 = vsel %vm6979, %v6978, %v6677
    %vm6996 = vcmask 244736
    %v6997 = vsel %vm6996, %v6980, %v6711
    %v6998 = vsel %vm6996, %v6981, %v6713
    %v6999 = vsel %vm6996, %v6982, %v6715
    %v7000 = vsel %vm6996, %v6983, %v6717
    %v7001 = vsel %vm6996, %v6984, %v6719
    %v7002 = vsel %vm6996, %v6985, %v6721
    %v7003 = vsel %vm6996, %v6986, %v6723
    %v7004 = vsel %vm6996, %v6987, %v6725
    %v7005 = vsel %vm6996, %v6988, %v6727
    %v7006 = vsel %vm6996, %v6989, %v6729
    %v7007 = vsel %vm6996, %v6990, %v6731
    %v7008 = vsel %vm6996, %v6991, %v6733
    %v7009 = vsel %vm6996, %v6992, %v6735
    %v7010 = vsel %vm6996, %v6993, %v6737
    %v7011 = vsel %vm6996, %v6994, %v6739
    %v7012 = vsel %vm6996, %v6995, %v6741
    %7029 = vrot.lane.b32.xlu0 %v6997, 32
    %v7030 = vpop.permute.xlu0 %7029
    %7031 = vrot.lane.b32.xlu0 %v6998, 32
    %v7032 = vpop.permute.xlu0 %7031
    %7033 = vrot.lane.b32.xlu0 %v6999, 32
    %v7034 = vpop.permute.xlu0 %7033
    %7035 = vrot.lane.b32.xlu0 %v7000, 32
    %v7036 = vpop.permute.xlu0 %7035
    %7037 = vrot.lane.b32.xlu0 %v7001, 32
    %v7038 = vpop.permute.xlu0 %7037
    %7039 = vrot.lane.b32.xlu0 %v7002, 32
    %v7040 = vpop.permute.xlu0 %7039
    %7041 = vrot.lane.b32.xlu0 %v7003, 32
    %v7042 = vpop.permute.xlu0 %7041
    %7043 = vrot.lane.b32.xlu0 %v7004, 32
    %v7044 = vpop.permute.xlu0 %7043
    %7045 = vrot.lane.b32.xlu0 %v7005, 32
    %v7046 = vpop.permute.xlu0 %7045
    %7047 = vrot.lane.b32.xlu0 %v7006, 32
    %v7048 = vpop.permute.xlu0 %7047
    %7049 = vrot.lane.b32.xlu0 %v7007, 32
    %v7050 = vpop.permute.xlu0 %7049
    %7051 = vrot.lane.b32.xlu0 %v7008, 32
    %v7052 = vpop.permute.xlu0 %7051
    %7053 = vrot.lane.b32.xlu0 %v7009, 32
    %v7054 = vpop.permute.xlu0 %7053
    %7055 = vrot.lane.b32.xlu0 %v7010, 32
    %v7056 = vpop.permute.xlu0 %7055
    %7057 = vrot.lane.b32.xlu0 %v7011, 32
    %v7058 = vpop.permute.xlu0 %7057
    %7059 = vrot.lane.b32.xlu0 %v7012, 32
    %v7060 = vpop.permute.xlu0 %7059
    %vm7077 = vcmask 261120
    %v7078 = vsel %vm7077, %v6997, %v7030
    %v7079 = vsel %vm7077, %v6998, %v7032
    %v7080 = vsel %vm7077, %v6999, %v7034
    %v7081 = vsel %vm7077, %v7000, %v7036
    %v7082 = vsel %vm7077, %v7001, %v7038
    %v7083 = vsel %vm7077, %v7002, %v7040
    %v7084 = vsel %vm7077, %v7003, %v7042
    %v7085 = vsel %vm7077, %v7004, %v7044
    %v7086 = vsel %vm7077, %v7005, %v7046
    %v7087 = vsel %vm7077, %v7006, %v7048
    %v7088 = vsel %vm7077, %v7007, %v7050
    %v7089 = vsel %vm7077, %v7008, %v7052
    %v7090 = vsel %vm7077, %v7009, %v7054
    %v7091 = vsel %vm7077, %v7010, %v7056
    %v7092 = vsel %vm7077, %v7011, %v7058
    %v7093 = vsel %vm7077, %v7012, %v7060
    %vm7094 = vcmask 523264
    %7095 = vst.msk [vmem:[%s1] sm:$0xff] %vm7094, %v7078
    %7096 = vst.msk [vmem:[%s1 + $0x8] sm:$0xff] %vm7094, %v7079
    %7097 = vst.msk [vmem:[%s1 + $0x10] sm:$0xff] %vm7094, %v7080
    %7098 = vst.msk [vmem:[%s1 + $0x18] sm:$0xff] %vm7094, %v7081
    %7099 = vst.msk [vmem:[%s1 + $0x20] sm:$0xff] %vm7094, %v7082
    %7100 = vst.msk [vmem:[%s1 + $0x28] sm:$0xff] %vm7094, %v7083
    %7101 = vst.msk [vmem:[%s1 + $0x30] sm:$0xff] %vm7094, %v7084
    %7102 = vst.msk [vmem:[%s1 + $0x38] sm:$0xff] %vm7094, %v7085
    %7103 = vst.msk [vmem:[%s1 + $0x40] sm:$0xff] %vm7094, %v7086
    %7104 = vst.msk [vmem:[%s1 + $0x48] sm:$0xff] %vm7094, %v7087
    %7105 = vst.msk [vmem:[%s1 + $0x50] sm:$0xff] %vm7094, %v7088
    %7106 = vst.msk [vmem:[%s1 + $0x58] sm:$0xff] %vm7094, %v7089
    %7107 = vst.msk [vmem:[%s1 + $0x60] sm:$0xff] %vm7094, %v7090
    %7108 = vst.msk [vmem:[%s1 + $0x68] sm:$0xff] %vm7094, %v7091
    %7109 = vst.msk [vmem:[%s1 + $0x70] sm:$0xff] %vm7094, %v7092
    %7110 = vst.msk [vmem:[%s1 + $0x78] sm:$0xff] %vm7094, %v7093
    // Predicated region
    $region10: #{upsample_nearest_2x.1} parent=1 // pred_check
      _
    $region11: #{upsample_nearest_2x.1} parent=1 // pred_check_branch
      %7112 = sbr.rel (0) target = $region13
    $region12: #{upsample_nearest_2x.1} parent=1 // pred_region
      _
    $region13: #{upsample_nearest_2x.1} parent=1 // pred_fallthru
      _
    // Predicated region
    $region14: #{upsample_nearest_2x.1} parent=1 // pred_check
      _
    $region15: #{upsample_nearest_2x.1} parent=1 // pred_check_branch
      %7114 = sbr.rel (0) target = $region17
    $region16: #{upsample_nearest_2x.1} parent=1 // pred_region
      _
    $region17: #{upsample_nearest_2x.1} parent=1 // pred_fallthru
      _
    %7115 = vsyncpa [#allocation3], 1

</llo_original>
